<compile_context>
chip_gen: v6e
topology: v6e:2x2x1
jax: 0.10.0
libtpu: 0.0.40
codegen_flags: <defaults>
</compile_context>

<pallas_src>
import jax
import jax.numpy as jnp
from jax import lax
from jax.experimental import pallas as pl
from jax.experimental.pallas import tpu as pltpu

N_HIDDEN = 51     # logical hidden size (PyTorch module)
HP = 128          # per-gate padded width (lane-aligned)


def lstm_predictor_kernel(x_ref, wih1_ref, whh1_ref, b1_ref, wih2_ref, whh2_ref,
                          b2_ref, wlin_ref, blin_ref, out_ref, xg_ref, hist_ref):
    S, BT, _ = x_ref.shape
    Hp = hist_ref.shape[-1]

    # Hoisted layer-1 input projection for every timestep, with b1 folded in.
    # Pure VPU broadcast-multiply/add, off the per-step critical path.
    xg_ref[...] = (x_ref[...] * wih1_ref[...][None, :, :]
                   + b1_ref[...][None, :, :])                    # (S, BT, 4*Hp)

    whh1 = whh1_ref[...]                                         # (Hp, 4*Hp)
    wih2 = wih2_ref[...]                                         # (Hp, 4*Hp)
    whh2 = whh2_ref[...]                                         # (Hp, 4*Hp)
    b2 = b2_ref[...]                                             # (1, 4*Hp)

    def sigmoid(z):
        # tanh-form sigmoid: one EUP op + a VPU fma (vs exp + reciprocal), and exact.
        return 0.5 * jnp.tanh(0.5 * z) + 0.5

    def cell_update(gates, c):
        # Gate order after wrapper reordering is [i, f, o, g]; each block is exactly Hp=128
        # lanes, so the slices below are plain vreg views and one sigmoid covers i|f|o.
        ifo = sigmoid(gates[:, :3 * Hp])
        g = jnp.tanh(gates[:, 3 * Hp:])
        i = ifo[:, 0 * Hp:1 * Hp]
        f = ifo[:, 1 * Hp:2 * Hp]
        o = ifo[:, 2 * Hp:3 * Hp]
        c_new = f * c + i * g
        h_new = o * jnp.tanh(c_new)
        return h_new, c_new

    def body(t, carry):
        h1, c1, h2, c2 = carry
        # Layer-2's h2-dependent matmul only needs step t-1 state: keep it as an
        # independent dot (no concat) so its MXU push can overlap layer-1's EUP chain.
        g2h = jnp.dot(h2, whh2, preferred_element_type=jnp.float32) + b2
        # Layer 1: precomputed input contribution (+b1) + one (BT,Hp)@(Hp,4Hp) matmul.
        g1 = xg_ref[t] + jnp.dot(h1, whh1, preferred_element_type=jnp.float32)
        h1, c1 = cell_update(g1, c1)
        # Layer 2: add the h1-dependent matmul.
        g2 = g2h + jnp.dot(h1, wih2, preferred_element_type=jnp.float32)
        h2, c2 = cell_update(g2, c2)
        hist_ref[t] = h2                                         # lane-dense (BT, Hp) store
        return (h1, c1, h2, c2)

    zeros = jnp.zeros((BT, Hp), jnp.float32)
    # Full unroll only for small static S (lets adjacent-step MXU/EUP/VPU work interleave);
    # partial unroll for longer sequences to avoid instruction-memory / live-range bloat.
    lax.fori_loop(0, S, body, (zeros, zeros, zeros, zeros),
                  unroll=True if S <= 16 else 8)

    # Linear head hoisted out of the time loop: one multiply + lane reduce over the whole
    # h2 history, followed by a single dense store (no per-step 1-lane masked stores).
    hist = hist_ref[...]                                         # (S, BT, Hp)
    out_ref[...] = jnp.sum(hist * wlin_ref[...][None, :, :], axis=-1) + blin_ref[...]


def _reorder_pad_gates(w, h, hp):
    """w: (in, 4H) in PyTorch gate order [i,f,g,o] -> (in, 4*hp) in order [i,f,o,g],
    each gate block zero-padded from h to hp columns."""
    i_ = w[:, 0 * h:1 * h]
    f_ = w[:, 1 * h:2 * h]
    g_ = w[:, 2 * h:3 * h]
    o_ = w[:, 3 * h:4 * h]
    pad = lambda blk: jnp.pad(blk, ((0, 0), (0, hp - h)))
    return jnp.concatenate([pad(i_), pad(f_), pad(o_), pad(g_)], axis=1)


def _vmem_limit_bytes(s, bt, hp):
    """Size the scoped VMEM limit to the actual buffers (+headroom); matters on v5e whose
    default scoped limit is 16 MiB."""
    f32 = 4
    scratch = s * bt * 4 * hp + s * bt * hp                      # xg + hist
    x_io = 2 * s * bt * 128                                      # (S,BT,1) lane-pads 1->128
    out_io = 2 * max(s, 8) * max(bt, 128)                        # (S,BT) out block, x2 bufs
    weights = 2 * (4 * hp * (3 * hp + 3 * 8) + 2 * 8 * 128)      # double-buffered weights
    total = f32 * (scratch + x_io + out_io + weights)
    return int(min(max(1.5 * total + (2 << 20), 8 << 20), 64 << 20))


def lstm_predictor(x, params, h=N_HIDDEN, hp=HP):
    """x: (B, S) float32.  params: dict of PyTorch-convention weights."""
    B, S = x.shape

    # Batch tiling: a single sublane-aligned tile at small B; 128-row tiles for large B so
    # VMEM stays O(tile) and the "parallel" batch axis can split across v7x's 2 TensorCores.
    if B <= 128:
        bt = max(8, ((B + 7) // 8) * 8)
    else:
        bt = 128
    bp = ((B + bt - 1) // bt) * bt
    n_tiles = bp // bt

    # ---- layer 1 ----
    wih1 = _reorder_pad_gates(params["w_ih1"].T, h, hp)                    # (1, 4Hp)
    whh1 = jnp.pad(_reorder_pad_gates(params["w_hh1"].T, h, hp),
                   ((0, hp - h), (0, 0)))                                  # (Hp, 4Hp)
    b1 = _reorder_pad_gates((params["b_ih1"] + params["b_hh1"])[None, :], h, hp)

    # ---- layer 2 (kept as two separate matmuls per step; no fused concat) ----
    wih2 = jnp.pad(_reorder_pad_gates(params["w_ih2"].T, h, hp), ((0, hp - h), (0, 0)))
    whh2 = jnp.pad(_reorder_pad_gates(params["w_hh2"].T, h, hp), ((0, hp - h), (0, 0)))
    b2 = _reorder_pad_gates((params["b_ih2"] + params["b_hh2"])[None, :], h, hp)

    # ---- head ----
    wlin = jnp.pad(params["w_lin"], ((0, 0), (0, hp - h)))                 # (1, Hp)
    blin = params["b_lin"].reshape(1, 1)

    # Time-major, batch-padded input with a trailing singleton feature dim.
    # Padded batch rows (x=0) develop nonzero h/c (gates reduce to the biases) -- harmless:
    # rows are independent and sliced away below; never reduce over them in the kernel.
    x_tm = jnp.pad(x, ((0, bp - B), (0, 0))).T[:, :, None]                 # (S, Bp, 1)

    const2 = lambda b: (0, 0)
    in_specs = [
        pl.BlockSpec((S, bt, 1), lambda b: (0, b, 0)),   # x tile (batch-tiled)
        pl.BlockSpec((1, 4 * hp), const2),               # wih1
        pl.BlockSpec((hp, 4 * hp), const2),              # whh1
        pl.BlockSpec((1, 4 * hp), const2),               # b1
        pl.BlockSpec((hp, 4 * hp), const2),              # wih2
        pl.BlockSpec((hp, 4 * hp), const2),              # whh2
        pl.BlockSpec((1, 4 * hp), const2),               # b2
        pl.BlockSpec((1, hp), const2),                   # wlin
        pl.BlockSpec((1, 1), const2),                    # blin
    ]

    out_sb = pl.pallas_call(
        lstm_predictor_kernel,
        out_shape=jax.ShapeDtypeStruct((S, bp), jnp.float32),
        grid=(n_tiles,),
        in_specs=in_specs,
        out_specs=pl.BlockSpec((S, bt), lambda b: (0, b)),
        scratch_shapes=[pltpu.VMEM((S, bt, 4 * hp), jnp.float32),  # hoisted input proj (+b1)
                        pltpu.VMEM((S, bt, hp), jnp.float32)],     # h2 history for the head
        compiler_params=pltpu.CompilerParams(
            dimension_semantics=("parallel",),           # v7x: batch tiles split across TCs
            vmem_limit_bytes=_vmem_limit_bytes(S, bt, hp)),
    )(x_tm, wih1, whh1, b1, wih2, whh2, b2, wlin, blin)

    return out_sb[:, :B].T                                                 # (B, S)


def make_params(key, h=N_HIDDEN):
    """Deterministic init matching nn.LSTMCell / nn.Linear shapes (uniform +-1/sqrt(h))."""
    ks = jax.random.split(key, 10)
    bound = 1.0 / jnp.sqrt(h)

    def u(k, shape):
        return jax.random.uniform(k, shape, jnp.float32, -bound, bound)

    return {
        "w_ih1": u(ks[0], (4 * h, 1)),
        "w_hh1": u(ks[1], (4 * h, h)),
        "b_ih1": u(ks[2], (4 * h,)),
        "b_hh1": u(ks[3], (4 * h,)),
        "w_ih2": u(ks[4], (4 * h, h)),
        "w_hh2": u(ks[5], (4 * h, h)),
        "b_ih2": u(ks[6], (4 * h,)),
        "b_hh2": u(ks[7], (4 * h,)),
        "w_lin": u(ks[8], (1, h)),
        "b_lin": u(ks[9], (1,)),
    }


def reference_forward(x, params, h=N_HIDDEN):
    """Pure-JAX reference mirroring the PyTorch loop (original gate order i,f,g,o)."""
    B, S = x.shape
    h1 = c1 = h2 = c2 = jnp.zeros((B, h), jnp.float32)

    def cell(inp, hh, cc, w_ih, w_hh, b_ih, b_hh):
        g = inp @ w_ih.T + b_ih + hh @ w_hh.T + b_hh
        i = jax.nn.sigmoid(g[:, 0 * h:1 * h])
        f = jax.nn.sigmoid(g[:, 1 * h:2 * h])
        gg = jnp.tanh(g[:, 2 * h:3 * h])
        o = jax.nn.sigmoid(g[:, 3 * h:4 * h])
        cc = f * cc + i * gg
        return o * jnp.tanh(cc), cc

    outs = []
    for t in range(S):
        x_t = x[:, t:t + 1]
        h1, c1 = cell(x_t, h1, c1, params["w_ih1"], params["w_hh1"],
                      params["b_ih1"], params["b_hh1"])
        h2, c2 = cell(h1, h2, c2, params["w_ih2"], params["w_hh2"],
                      params["b_ih2"], params["b_hh2"])
        outs.append(h2 @ params["w_lin"].T + params["b_lin"])
    return jnp.concatenate(outs, axis=1)


if __name__ == "__main__":
    key = jax.random.PRNGKey(0)
    k_x, k_p = jax.random.split(key)

    B, S = 2, 8
    x = jax.random.normal(k_x, (B, S), jnp.float32)
    params = make_params(k_p)

    out = lstm_predictor(x, params)
    out = jax.block_until_ready(out)

    ref = reference_forward(x, params)
    assert out.shape == (B, S)
    # Tolerance tightened from 5e-3 to 1e-4: the tanh-form sigmoid removed the approximate
    # EUP reciprocal error; remaining differences are f32 matmul rounding only.
    assert jnp.allclose(out, ref, atol=1e-4, rtol=1e-4), (out, ref)

    print("KERNEL_OK")
</pallas_src>

<mosaic_0001>
module attributes {stable_mosaic.version = 11 : i64} {
  func.func @lstm_predictor_kernel(%arg0: i32, %arg1: memref<8x8x1xf32, #tpu.memory_space<vmem>>, %arg2: memref<1x512xf32, #tpu.memory_space<vmem>>, %arg3: memref<128x512xf32, #tpu.memory_space<vmem>>, %arg4: memref<1x512xf32, #tpu.memory_space<vmem>>, %arg5: memref<128x512xf32, #tpu.memory_space<vmem>>, %arg6: memref<128x512xf32, #tpu.memory_space<vmem>>, %arg7: memref<1x512xf32, #tpu.memory_space<vmem>>, %arg8: memref<1x128xf32, #tpu.memory_space<vmem>>, %arg9: memref<1x1xf32, #tpu.memory_space<vmem>>, %arg10: memref<8x8xf32, #tpu.memory_space<vmem>>, %arg11: memref<8x8x512xf32, #tpu.memory_space<vmem>>, %arg12: memref<8x8x128xf32, #tpu.memory_space<vmem>>) attributes {dimension_semantics = [#tpu.dimension_semantics<parallel>], iteration_bounds = array<i64: 1>, scalar_prefetch = 0 : i64, scratch_operands = 2 : i64, tpu.core_type = #tpu.core_type<tc>, window_params = [{transform_indices = @transform_0, window_bounds = array<i64: 8, 8, 1>}, {pipeline_mode = #tpu.pipeline_mode<synchronous>, transform_indices = @transform_1, window_bounds = array<i64: 1, 512>}, {pipeline_mode = #tpu.pipeline_mode<synchronous>, transform_indices = @transform_2, window_bounds = array<i64: 128, 512>}, {pipeline_mode = #tpu.pipeline_mode<synchronous>, transform_indices = @transform_3, window_bounds = array<i64: 1, 512>}, {pipeline_mode = #tpu.pipeline_mode<synchronous>, transform_indices = @transform_4, window_bounds = array<i64: 128, 512>}, {pipeline_mode = #tpu.pipeline_mode<synchronous>, transform_indices = @transform_5, window_bounds = array<i64: 128, 512>}, {pipeline_mode = #tpu.pipeline_mode<synchronous>, transform_indices = @transform_6, window_bounds = array<i64: 1, 512>}, {pipeline_mode = #tpu.pipeline_mode<synchronous>, transform_indices = @transform_7, window_bounds = array<i64: 1, 128>}, {pipeline_mode = #tpu.pipeline_mode<synchronous>, transform_indices = @transform_8, window_bounds = array<i64: 1, 1>}, {transform_indices = @transform_9, window_bounds = array<i64: 8, 8>}]} {
    %c0 = arith.constant 0 : index
    %c0_0 = arith.constant 0 : index
    %c0_1 = arith.constant 0 : index
    %0 = vector.load %arg1[%c0, %c0_0, %c0_1] : memref<8x8x1xf32, #tpu.memory_space<vmem>>, vector<8x8x1xf32>
    %c0_2 = arith.constant 0 : index
    %c0_3 = arith.constant 0 : index
    %1 = vector.load %arg2[%c0_2, %c0_3] : memref<1x512xf32, #tpu.memory_space<vmem>>, vector<1x512xf32>
    %2 = vector.shape_cast %1 : vector<1x512xf32> to vector<1x1x512xf32>
    %3 = vector.broadcast %0 : vector<8x8x1xf32> to vector<8x8x512xf32>
    %4 = vector.broadcast %2 : vector<1x1x512xf32> to vector<8x8x512xf32>
    %5 = arith.mulf %3, %4 : vector<8x8x512xf32>
    %c0_4 = arith.constant 0 : index
    %c0_5 = arith.constant 0 : index
    %6 = vector.load %arg4[%c0_4, %c0_5] : memref<1x512xf32, #tpu.memory_space<vmem>>, vector<1x512xf32>
    %7 = vector.shape_cast %6 : vector<1x512xf32> to vector<1x1x512xf32>
    %8 = vector.broadcast %7 : vector<1x1x512xf32> to vector<8x8x512xf32>
    %9 = arith.addf %5, %8 : vector<8x8x512xf32>
    %c0_6 = arith.constant 0 : index
    %c0_7 = arith.constant 0 : index
    %c0_8 = arith.constant 0 : index
    %10 = vector.load %arg11[%c0_6, %c0_7, %c0_8] : memref<8x8x512xf32, #tpu.memory_space<vmem>>, vector<8x8x512xf32>
    tpu.vector_store %arg11[%c0_6, %c0_7, %c0_8], %9 {strides = array<i32>} : memref<8x8x512xf32, #tpu.memory_space<vmem>>, vector<8x8x512xf32>,
    %c0_9 = arith.constant 0 : index
    %c0_10 = arith.constant 0 : index
    %11 = vector.load %arg3[%c0_9, %c0_10] : memref<128x512xf32, #tpu.memory_space<vmem>>, vector<128x512xf32>
    %c0_11 = arith.constant 0 : index
    %c0_12 = arith.constant 0 : index
    %12 = vector.load %arg5[%c0_11, %c0_12] : memref<128x512xf32, #tpu.memory_space<vmem>>, vector<128x512xf32>
    %c0_13 = arith.constant 0 : index
    %c0_14 = arith.constant 0 : index
    %13 = vector.load %arg6[%c0_13, %c0_14] : memref<128x512xf32, #tpu.memory_space<vmem>>, vector<128x512xf32>
    %c0_15 = arith.constant 0 : index
    %c0_16 = arith.constant 0 : index
    %14 = vector.load %arg7[%c0_15, %c0_16] : memref<1x512xf32, #tpu.memory_space<vmem>>, vector<1x512xf32>
    %cst = arith.constant 0.000000e+00 : f32
    %15 = vector.broadcast %cst : f32 to vector<8x128xf32>
    %c0_i32 = arith.constant 0 : i32
    %cst_17 = arith.constant dense<0.000000e+00> : vector<8x512xf32>
    %16 = tpu.matmul %15, %13, %cst_17 {dimension_numbers = #tpu.dot_dimension_numbers<[1], [0], [0], [1], [0, 0, 1, 1], [], []>} : vector<8x128xf32>, vector<128x512xf32>, vector<8x512xf32> -> vector<8x512xf32>
    %17 = vector.broadcast %14 : vector<1x512xf32> to vector<8x512xf32>
    %18 = arith.addf %16, %17 : vector<8x512xf32>
    %19 = arith.index_cast %c0_i32 : i32 to index
    %c0_18 = arith.constant 0 : index
    %c0_19 = arith.constant 0 : index
    %20 = vector.load %arg11[%19, %c0_18, %c0_19] : memref<8x8x512xf32, #tpu.memory_space<vmem>>, vector<1x8x512xf32>
    %21 = vector.shape_cast %20 : vector<1x8x512xf32> to vector<8x512xf32>
    %cst_20 = arith.constant dense<0.000000e+00> : vector<8x512xf32>
    %22 = tpu.matmul %15, %11, %cst_20 {dimension_numbers = #tpu.dot_dimension_numbers<[1], [0], [0], [1], [0, 0, 1, 1], [], []>} : vector<8x128xf32>, vector<128x512xf32>, vector<8x512xf32> -> vector<8x512xf32>
    %23 = arith.addf %21, %22 : vector<8x512xf32>
    %24 = vector.extract_strided_slice %23 {offsets = [0, 0], sizes = [8, 384], strides = [1, 1]} : vector<8x512xf32> to vector<8x384xf32>
    %cst_21 = arith.constant 5.000000e-01 : f32
    %25 = vector.broadcast %cst_21 : f32 to vector<8x384xf32>
    %26 = arith.mulf %25, %24 : vector<8x384xf32>
    %27 = math.tanh %26 : vector<8x384xf32>
    %cst_22 = arith.constant 5.000000e-01 : f32
    %28 = vector.broadcast %cst_22 : f32 to vector<8x384xf32>
    %29 = arith.mulf %28, %27 : vector<8x384xf32>
    %cst_23 = arith.constant 5.000000e-01 : f32
    %30 = vector.broadcast %cst_23 : f32 to vector<8x384xf32>
    %31 = arith.addf %29, %30 : vector<8x384xf32>
    %32 = vector.extract_strided_slice %23 {offsets = [0, 384], sizes = [8, 128], strides = [1, 1]} : vector<8x512xf32> to vector<8x128xf32>
    %33 = math.tanh %32 : vector<8x128xf32>
    %34 = vector.extract_strided_slice %31 {offsets = [0, 0], sizes = [8, 128], strides = [1, 1]} : vector<8x384xf32> to vector<8x128xf32>
    %35 = vector.extract_strided_slice %31 {offsets = [0, 128], sizes = [8, 128], strides = [1, 1]} : vector<8x384xf32> to vector<8x128xf32>
    %36 = vector.extract_strided_slice %31 {offsets = [0, 256], sizes = [8, 128], strides = [1, 1]} : vector<8x384xf32> to vector<8x128xf32>
    %37 = arith.mulf %35, %15 : vector<8x128xf32>
    %38 = arith.mulf %34, %33 : vector<8x128xf32>
    %39 = arith.addf %37, %38 : vector<8x128xf32>
    %40 = math.tanh %39 : vector<8x128xf32>
    %41 = arith.mulf %36, %40 : vector<8x128xf32>
    %cst_24 = arith.constant dense<0.000000e+00> : vector<8x512xf32>
    %42 = tpu.matmul %41, %12, %cst_24 {dimension_numbers = #tpu.dot_dimension_numbers<[1], [0], [0], [1], [0, 0, 1, 1], [], []>} : vector<8x128xf32>, vector<128x512xf32>, vector<8x512xf32> -> vector<8x512xf32>
    %43 = arith.addf %18, %42 : vector<8x512xf32>
    %44 = vector.extract_strided_slice %43 {offsets = [0, 0], sizes = [8, 384], strides = [1, 1]} : vector<8x512xf32> to vector<8x384xf32>
    %cst_25 = arith.constant 5.000000e-01 : f32
    %45 = vector.broadcast %cst_25 : f32 to vector<8x384xf32>
    %46 = arith.mulf %45, %44 : vector<8x384xf32>
    %47 = math.tanh %46 : vector<8x384xf32>
    %cst_26 = arith.constant 5.000000e-01 : f32
    %48 = vector.broadcast %cst_26 : f32 to vector<8x384xf32>
    %49 = arith.mulf %48, %47 : vector<8x384xf32>
    %cst_27 = arith.constant 5.000000e-01 : f32
    %50 = vector.broadcast %cst_27 : f32 to vector<8x384xf32>
    %51 = arith.addf %49, %50 : vector<8x384xf32>
    %52 = vector.extract_strided_slice %43 {offsets = [0, 384], sizes = [8, 128], strides = [1, 1]} : vector<8x512xf32> to vector<8x128xf32>
    %53 = math.tanh %52 : vector<8x128xf32>
    %54 = vector.extract_strided_slice %51 {offsets = [0, 0], sizes = [8, 128], strides = [1, 1]} : vector<8x384xf32> to vector<8x128xf32>
    %55 = vector.extract_strided_slice %51 {offsets = [0, 128], sizes = [8, 128], strides = [1, 1]} : vector<8x384xf32> to vector<8x128xf32>
    %56 = vector.extract_strided_slice %51 {offsets = [0, 256], sizes = [8, 128], strides = [1, 1]} : vector<8x384xf32> to vector<8x128xf32>
    %57 = arith.mulf %55, %15 : vector<8x128xf32>
    %58 = arith.mulf %54, %53 : vector<8x128xf32>
    %59 = arith.addf %57, %58 : vector<8x128xf32>
    %60 = math.tanh %59 : vector<8x128xf32>
    %61 = arith.mulf %56, %60 : vector<8x128xf32>
    %62 = arith.index_cast %c0_i32 : i32 to index
    %c0_28 = arith.constant 0 : index
    %c0_29 = arith.constant 0 : index
    %63 = vector.load %arg12[%62, %c0_28, %c0_29] : memref<8x8x128xf32, #tpu.memory_space<vmem>>, vector<1x8x128xf32>
    %64 = vector.shape_cast %63 : vector<1x8x128xf32> to vector<8x128xf32>
    %65 = vector.shape_cast %61 : vector<8x128xf32> to vector<1x8x128xf32>
    tpu.vector_store %arg12[%62, %c0_28, %c0_29], %65 {strides = array<i32>} : memref<8x8x128xf32, #tpu.memory_space<vmem>>, vector<1x8x128xf32>,
    %c1_i32 = arith.constant 1 : i32
    %cst_30 = arith.constant dense<0.000000e+00> : vector<8x512xf32>
    %66 = tpu.matmul %61, %13, %cst_30 {dimension_numbers = #tpu.dot_dimension_numbers<[1], [0], [0], [1], [0, 0, 1, 1], [], []>} : vector<8x128xf32>, vector<128x512xf32>, vector<8x512xf32> -> vector<8x512xf32>
    %67 = vector.broadcast %14 : vector<1x512xf32> to vector<8x512xf32>
    %68 = arith.addf %66, %67 : vector<8x512xf32>
    %69 = arith.index_cast %c1_i32 : i32 to index
    %c0_31 = arith.constant 0 : index
    %c0_32 = arith.constant 0 : index
    %70 = vector.load %arg11[%69, %c0_31, %c0_32] : memref<8x8x512xf32, #tpu.memory_space<vmem>>, vector<1x8x512xf32>
    %71 = vector.shape_cast %70 : vector<1x8x512xf32> to vector<8x512xf32>
    %cst_33 = arith.constant dense<0.000000e+00> : vector<8x512xf32>
    %72 = tpu.matmul %41, %11, %cst_33 {dimension_numbers = #tpu.dot_dimension_numbers<[1], [0], [0], [1], [0, 0, 1, 1], [], []>} : vector<8x128xf32>, vector<128x512xf32>, vector<8x512xf32> -> vector<8x512xf32>
    %73 = arith.addf %71, %72 : vector<8x512xf32>
    %74 = vector.extract_strided_slice %73 {offsets = [0, 0], sizes = [8, 384], strides = [1, 1]} : vector<8x512xf32> to vector<8x384xf32>
    %cst_34 = arith.constant 5.000000e-01 : f32
    %75 = vector.broadcast %cst_34 : f32 to vector<8x384xf32>
    %76 = arith.mulf %75, %74 : vector<8x384xf32>
    %77 = math.tanh %76 : vector<8x384xf32>
    %cst_35 = arith.constant 5.000000e-01 : f32
    %78 = vector.broadcast %cst_35 : f32 to vector<8x384xf32>
    %79 = arith.mulf %78, %77 : vector<8x384xf32>
    %cst_36 = arith.constant 5.000000e-01 : f32
    %80 = vector.broadcast %cst_36 : f32 to vector<8x384xf32>
    %81 = arith.addf %79, %80 : vector<8x384xf32>
    %82 = vector.extract_strided_slice %73 {offsets = [0, 384], sizes = [8, 128], strides = [1, 1]} : vector<8x512xf32> to vector<8x128xf32>
    %83 = math.tanh %82 : vector<8x128xf32>
    %84 = vector.extract_strided_slice %81 {offsets = [0, 0], sizes = [8, 128], strides = [1, 1]} : vector<8x384xf32> to vector<8x128xf32>
    %85 = vector.extract_strided_slice %81 {offsets = [0, 128], sizes = [8, 128], strides = [1, 1]} : vector<8x384xf32> to vector<8x128xf32>
    %86 = vector.extract_strided_slice %81 {offsets = [0, 256], sizes = [8, 128], strides = [1, 1]} : vector<8x384xf32> to vector<8x128xf32>
    %87 = arith.mulf %85, %39 : vector<8x128xf32>
    %88 = arith.mulf %84, %83 : vector<8x128xf32>
    %89 = arith.addf %87, %88 : vector<8x128xf32>
    %90 = math.tanh %89 : vector<8x128xf32>
    %91 = arith.mulf %86, %90 : vector<8x128xf32>
    %cst_37 = arith.constant dense<0.000000e+00> : vector<8x512xf32>
    %92 = tpu.matmul %91, %12, %cst_37 {dimension_numbers = #tpu.dot_dimension_numbers<[1], [0], [0], [1], [0, 0, 1, 1], [], []>} : vector<8x128xf32>, vector<128x512xf32>, vector<8x512xf32> -> vector<8x512xf32>
    %93 = arith.addf %68, %92 : vector<8x512xf32>
    %94 = vector.extract_strided_slice %93 {offsets = [0, 0], sizes = [8, 384], strides = [1, 1]} : vector<8x512xf32> to vector<8x384xf32>
    %cst_38 = arith.constant 5.000000e-01 : f32
    %95 = vector.broadcast %cst_38 : f32 to vector<8x384xf32>
    %96 = arith.mulf %95, %94 : vector<8x384xf32>
    %97 = math.tanh %96 : vector<8x384xf32>
    %cst_39 = arith.constant 5.000000e-01 : f32
    %98 = vector.broadcast %cst_39 : f32 to vector<8x384xf32>
    %99 = arith.mulf %98, %97 : vector<8x384xf32>
    %cst_40 = arith.constant 5.000000e-01 : f32
    %100 = vector.broadcast %cst_40 : f32 to vector<8x384xf32>
    %101 = arith.addf %99, %100 : vector<8x384xf32>
    %102 = vector.extract_strided_slice %93 {offsets = [0, 384], sizes = [8, 128], strides = [1, 1]} : vector<8x512xf32> to vector<8x128xf32>
    %103 = math.tanh %102 : vector<8x128xf32>
    %104 = vector.extract_strided_slice %101 {offsets = [0, 0], sizes = [8, 128], strides = [1, 1]} : vector<8x384xf32> to vector<8x128xf32>
    %105 = vector.extract_strided_slice %101 {offsets = [0, 128], sizes = [8, 128], strides = [1, 1]} : vector<8x384xf32> to vector<8x128xf32>
    %106 = vector.extract_strided_slice %101 {offsets = [0, 256], sizes = [8, 128], strides = [1, 1]} : vector<8x384xf32> to vector<8x128xf32>
    %107 = arith.mulf %105, %59 : vector<8x128xf32>
    %108 = arith.mulf %104, %103 : vector<8x128xf32>
    %109 = arith.addf %107, %108 : vector<8x128xf32>
    %110 = math.tanh %109 : vector<8x128xf32>
    %111 = arith.mulf %106, %110 : vector<8x128xf32>
    %112 = arith.index_cast %c1_i32 : i32 to index
    %c0_41 = arith.constant 0 : index
    %c0_42 = arith.constant 0 : index
    %113 = vector.load %arg12[%112, %c0_41, %c0_42] : memref<8x8x128xf32, #tpu.memory_space<vmem>>, vector<1x8x128xf32>
    %114 = vector.shape_cast %113 : vector<1x8x128xf32> to vector<8x128xf32>
    %115 = vector.shape_cast %111 : vector<8x128xf32> to vector<1x8x128xf32>
    tpu.vector_store %arg12[%112, %c0_41, %c0_42], %115 {strides = array<i32>} : memref<8x8x128xf32, #tpu.memory_space<vmem>>, vector<1x8x128xf32>,
    %c2_i32 = arith.constant 2 : i32
    %cst_43 = arith.constant dense<0.000000e+00> : vector<8x512xf32>
    %116 = tpu.matmul %111, %13, %cst_43 {dimension_numbers = #tpu.dot_dimension_numbers<[1], [0], [0], [1], [0, 0, 1, 1], [], []>} : vector<8x128xf32>, vector<128x512xf32>, vector<8x512xf32> -> vector<8x512xf32>
    %117 = vector.broadcast %14 : vector<1x512xf32> to vector<8x512xf32>
    %118 = arith.addf %116, %117 : vector<8x512xf32>
    %119 = arith.index_cast %c2_i32 : i32 to index
    %c0_44 = arith.constant 0 : index
    %c0_45 = arith.constant 0 : index
    %120 = vector.load %arg11[%119, %c0_44, %c0_45] : memref<8x8x512xf32, #tpu.memory_space<vmem>>, vector<1x8x512xf32>
    %121 = vector.shape_cast %120 : vector<1x8x512xf32> to vector<8x512xf32>
    %cst_46 = arith.constant dense<0.000000e+00> : vector<8x512xf32>
    %122 = tpu.matmul %91, %11, %cst_46 {dimension_numbers = #tpu.dot_dimension_numbers<[1], [0], [0], [1], [0, 0, 1, 1], [], []>} : vector<8x128xf32>, vector<128x512xf32>, vector<8x512xf32> -> vector<8x512xf32>
    %123 = arith.addf %121, %122 : vector<8x512xf32>
    %124 = vector.extract_strided_slice %123 {offsets = [0, 0], sizes = [8, 384], strides = [1, 1]} : vector<8x512xf32> to vector<8x384xf32>
    %cst_47 = arith.constant 5.000000e-01 : f32
    %125 = vector.broadcast %cst_47 : f32 to vector<8x384xf32>
    %126 = arith.mulf %125, %124 : vector<8x384xf32>
    %127 = math.tanh %126 : vector<8x384xf32>
    %cst_48 = arith.constant 5.000000e-01 : f32
    %128 = vector.broadcast %cst_48 : f32 to vector<8x384xf32>
    %129 = arith.mulf %128, %127 : vector<8x384xf32>
    %cst_49 = arith.constant 5.000000e-01 : f32
    %130 = vector.broadcast %cst_49 : f32 to vector<8x384xf32>
    %131 = arith.addf %129, %130 : vector<8x384xf32>
    %132 = vector.extract_strided_slice %123 {offsets = [0, 384], sizes = [8, 128], strides = [1, 1]} : vector<8x512xf32> to vector<8x128xf32>
    %133 = math.tanh %132 : vector<8x128xf32>
    %134 = vector.extract_strided_slice %131 {offsets = [0, 0], sizes = [8, 128], strides = [1, 1]} : vector<8x384xf32> to vector<8x128xf32>
    %135 = vector.extract_strided_slice %131 {offsets = [0, 128], sizes = [8, 128], strides = [1, 1]} : vector<8x384xf32> to vector<8x128xf32>
    %136 = vector.extract_strided_slice %131 {offsets = [0, 256], sizes = [8, 128], strides = [1, 1]} : vector<8x384xf32> to vector<8x128xf32>
    %137 = arith.mulf %135, %89 : vector<8x128xf32>
    %138 = arith.mulf %134, %133 : vector<8x128xf32>
    %139 = arith.addf %137, %138 : vector<8x128xf32>
    %140 = math.tanh %139 : vector<8x128xf32>
    %141 = arith.mulf %136, %140 : vector<8x128xf32>
    %cst_50 = arith.constant dense<0.000000e+00> : vector<8x512xf32>
    %142 = tpu.matmul %141, %12, %cst_50 {dimension_numbers = #tpu.dot_dimension_numbers<[1], [0], [0], [1], [0, 0, 1, 1], [], []>} : vector<8x128xf32>, vector<128x512xf32>, vector<8x512xf32> -> vector<8x512xf32>
    %143 = arith.addf %118, %142 : vector<8x512xf32>
    %144 = vector.extract_strided_slice %143 {offsets = [0, 0], sizes = [8, 384], strides = [1, 1]} : vector<8x512xf32> to vector<8x384xf32>
    %cst_51 = arith.constant 5.000000e-01 : f32
    %145 = vector.broadcast %cst_51 : f32 to vector<8x384xf32>
    %146 = arith.mulf %145, %144 : vector<8x384xf32>
    %147 = math.tanh %146 : vector<8x384xf32>
    %cst_52 = arith.constant 5.000000e-01 : f32
    %148 = vector.broadcast %cst_52 : f32 to vector<8x384xf32>
    %149 = arith.mulf %148, %147 : vector<8x384xf32>
    %cst_53 = arith.constant 5.000000e-01 : f32
    %150 = vector.broadcast %cst_53 : f32 to vector<8x384xf32>
    %151 = arith.addf %149, %150 : vector<8x384xf32>
    %152 = vector.extract_strided_slice %143 {offsets = [0, 384], sizes = [8, 128], strides = [1, 1]} : vector<8x512xf32> to vector<8x128xf32>
    %153 = math.tanh %152 : vector<8x128xf32>
    %154 = vector.extract_strided_slice %151 {offsets = [0, 0], sizes = [8, 128], strides = [1, 1]} : vector<8x384xf32> to vector<8x128xf32>
    %155 = vector.extract_strided_slice %151 {offsets = [0, 128], sizes = [8, 128], strides = [1, 1]} : vector<8x384xf32> to vector<8x128xf32>
    %156 = vector.extract_strided_slice %151 {offsets = [0, 256], sizes = [8, 128], strides = [1, 1]} : vector<8x384xf32> to vector<8x128xf32>
    %157 = arith.mulf %155, %109 : vector<8x128xf32>
    %158 = arith.mulf %154, %153 : vector<8x128xf32>
    %159 = arith.addf %157, %158 : vector<8x128xf32>
    %160 = math.tanh %159 : vector<8x128xf32>
    %161 = arith.mulf %156, %160 : vector<8x128xf32>
    %162 = arith.index_cast %c2_i32 : i32 to index
    %c0_54 = arith.constant 0 : index
    %c0_55 = arith.constant 0 : index
    %163 = vector.load %arg12[%162, %c0_54, %c0_55] : memref<8x8x128xf32, #tpu.memory_space<vmem>>, vector<1x8x128xf32>
    %164 = vector.shape_cast %163 : vector<1x8x128xf32> to vector<8x128xf32>
    %165 = vector.shape_cast %161 : vector<8x128xf32> to vector<1x8x128xf32>
    tpu.vector_store %arg12[%162, %c0_54, %c0_55], %165 {strides = array<i32>} : memref<8x8x128xf32, #tpu.memory_space<vmem>>, vector<1x8x128xf32>,
    %c3_i32 = arith.constant 3 : i32
    %cst_56 = arith.constant dense<0.000000e+00> : vector<8x512xf32>
    %166 = tpu.matmul %161, %13, %cst_56 {dimension_numbers = #tpu.dot_dimension_numbers<[1], [0], [0], [1], [0, 0, 1, 1], [], []>} : vector<8x128xf32>, vector<128x512xf32>, vector<8x512xf32> -> vector<8x512xf32>
    %167 = vector.broadcast %14 : vector<1x512xf32> to vector<8x512xf32>
    %168 = arith.addf %166, %167 : vector<8x512xf32>
    %169 = arith.index_cast %c3_i32 : i32 to index
    %c0_57 = arith.constant 0 : index
    %c0_58 = arith.constant 0 : index
    %170 = vector.load %arg11[%169, %c0_57, %c0_58] : memref<8x8x512xf32, #tpu.memory_space<vmem>>, vector<1x8x512xf32>
    %171 = vector.shape_cast %170 : vector<1x8x512xf32> to vector<8x512xf32>
    %cst_59 = arith.constant dense<0.000000e+00> : vector<8x512xf32>
    %172 = tpu.matmul %141, %11, %cst_59 {dimension_numbers = #tpu.dot_dimension_numbers<[1], [0], [0], [1], [0, 0, 1, 1], [], []>} : vector<8x128xf32>, vector<128x512xf32>, vector<8x512xf32> -> vector<8x512xf32>
    %173 = arith.addf %171, %172 : vector<8x512xf32>
    %174 = vector.extract_strided_slice %173 {offsets = [0, 0], sizes = [8, 384], strides = [1, 1]} : vector<8x512xf32> to vector<8x384xf32>
    %cst_60 = arith.constant 5.000000e-01 : f32
    %175 = vector.broadcast %cst_60 : f32 to vector<8x384xf32>
    %176 = arith.mulf %175, %174 : vector<8x384xf32>
    %177 = math.tanh %176 : vector<8x384xf32>
    %cst_61 = arith.constant 5.000000e-01 : f32
    %178 = vector.broadcast %cst_61 : f32 to vector<8x384xf32>
    %179 = arith.mulf %178, %177 : vector<8x384xf32>
    %cst_62 = arith.constant 5.000000e-01 : f32
    %180 = vector.broadcast %cst_62 : f32 to vector<8x384xf32>
    %181 = arith.addf %179, %180 : vector<8x384xf32>
    %182 = vector.extract_strided_slice %173 {offsets = [0, 384], sizes = [8, 128], strides = [1, 1]} : vector<8x512xf32> to vector<8x128xf32>
    %183 = math.tanh %182 : vector<8x128xf32>
    %184 = vector.extract_strided_slice %181 {offsets = [0, 0], sizes = [8, 128], strides = [1, 1]} : vector<8x384xf32> to vector<8x128xf32>
    %185 = vector.extract_strided_slice %181 {offsets = [0, 128], sizes = [8, 128], strides = [1, 1]} : vector<8x384xf32> to vector<8x128xf32>
    %186 = vector.extract_strided_slice %181 {offsets = [0, 256], sizes = [8, 128], strides = [1, 1]} : vector<8x384xf32> to vector<8x128xf32>
    %187 = arith.mulf %185, %139 : vector<8x128xf32>
    %188 = arith.mulf %184, %183 : vector<8x128xf32>
    %189 = arith.addf %187, %188 : vector<8x128xf32>
    %190 = math.tanh %189 : vector<8x128xf32>
    %191 = arith.mulf %186, %190 : vector<8x128xf32>
    %cst_63 = arith.constant dense<0.000000e+00> : vector<8x512xf32>
    %192 = tpu.matmul %191, %12, %cst_63 {dimension_numbers = #tpu.dot_dimension_numbers<[1], [0], [0], [1], [0, 0, 1, 1], [], []>} : vector<8x128xf32>, vector<128x512xf32>, vector<8x512xf32> -> vector<8x512xf32>
    %193 = arith.addf %168, %192 : vector<8x512xf32>
    %194 = vector.extract_strided_slice %193 {offsets = [0, 0], sizes = [8, 384], strides = [1, 1]} : vector<8x512xf32> to vector<8x384xf32>
    %cst_64 = arith.constant 5.000000e-01 : f32
    %195 = vector.broadcast %cst_64 : f32 to vector<8x384xf32>
    %196 = arith.mulf %195, %194 : vector<8x384xf32>
    %197 = math.tanh %196 : vector<8x384xf32>
    %cst_65 = arith.constant 5.000000e-01 : f32
    %198 = vector.broadcast %cst_65 : f32 to vector<8x384xf32>
    %199 = arith.mulf %198, %197 : vector<8x384xf32>
    %cst_66 = arith.constant 5.000000e-01 : f32
    %200 = vector.broadcast %cst_66 : f32 to vector<8x384xf32>
    %201 = arith.addf %199, %200 : vector<8x384xf32>
    %202 = vector.extract_strided_slice %193 {offsets = [0, 384], sizes = [8, 128], strides = [1, 1]} : vector<8x512xf32> to vector<8x128xf32>
    %203 = math.tanh %202 : vector<8x128xf32>
    %204 = vector.extract_strided_slice %201 {offsets = [0, 0], sizes = [8, 128], strides = [1, 1]} : vector<8x384xf32> to vector<8x128xf32>
    %205 = vector.extract_strided_slice %201 {offsets = [0, 128], sizes = [8, 128], strides = [1, 1]} : vector<8x384xf32> to vector<8x128xf32>
    %206 = vector.extract_strided_slice %201 {offsets = [0, 256], sizes = [8, 128], strides = [1, 1]} : vector<8x384xf32> to vector<8x128xf32>
    %207 = arith.mulf %205, %159 : vector<8x128xf32>
    %208 = arith.mulf %204, %203 : vector<8x128xf32>
    %209 = arith.addf %207, %208 : vector<8x128xf32>
    %210 = math.tanh %209 : vector<8x128xf32>
    %211 = arith.mulf %206, %210 : vector<8x128xf32>
    %212 = arith.index_cast %c3_i32 : i32 to index
    %c0_67 = arith.constant 0 : index
    %c0_68 = arith.constant 0 : index
    %213 = vector.load %arg12[%212, %c0_67, %c0_68] : memref<8x8x128xf32, #tpu.memory_space<vmem>>, vector<1x8x128xf32>
    %214 = vector.shape_cast %213 : vector<1x8x128xf32> to vector<8x128xf32>
    %215 = vector.shape_cast %211 : vector<8x128xf32> to vector<1x8x128xf32>
    tpu.vector_store %arg12[%212, %c0_67, %c0_68], %215 {strides = array<i32>} : memref<8x8x128xf32, #tpu.memory_space<vmem>>, vector<1x8x128xf32>,
    %c4_i32 = arith.constant 4 : i32
    %cst_69 = arith.constant dense<0.000000e+00> : vector<8x512xf32>
    %216 = tpu.matmul %211, %13, %cst_69 {dimension_numbers = #tpu.dot_dimension_numbers<[1], [0], [0], [1], [0, 0, 1, 1], [], []>} : vector<8x128xf32>, vector<128x512xf32>, vector<8x512xf32> -> vector<8x512xf32>
    %217 = vector.broadcast %14 : vector<1x512xf32> to vector<8x512xf32>
    %218 = arith.addf %216, %217 : vector<8x512xf32>
    %219 = arith.index_cast %c4_i32 : i32 to index
    %c0_70 = arith.constant 0 : index
    %c0_71 = arith.constant 0 : index
    %220 = vector.load %arg11[%219, %c0_70, %c0_71] : memref<8x8x512xf32, #tpu.memory_space<vmem>>, vector<1x8x512xf32>
    %221 = vector.shape_cast %220 : vector<1x8x512xf32> to vector<8x512xf32>
    %cst_72 = arith.constant dense<0.000000e+00> : vector<8x512xf32>
    %222 = tpu.matmul %191, %11, %cst_72 {dimension_numbers = #tpu.dot_dimension_numbers<[1], [0], [0], [1], [0, 0, 1, 1], [], []>} : vector<8x128xf32>, vector<128x512xf32>, vector<8x512xf32> -> vector<8x512xf32>
    %223 = arith.addf %221, %222 : vector<8x512xf32>
    %224 = vector.extract_strided_slice %223 {offsets = [0, 0], sizes = [8, 384], strides = [1, 1]} : vector<8x512xf32> to vector<8x384xf32>
    %cst_73 = arith.constant 5.000000e-01 : f32
    %225 = vector.broadcast %cst_73 : f32 to vector<8x384xf32>
    %226 = arith.mulf %225, %224 : vector<8x384xf32>
    %227 = math.tanh %226 : vector<8x384xf32>
    %cst_74 = arith.constant 5.000000e-01 : f32
    %228 = vector.broadcast %cst_74 : f32 to vector<8x384xf32>
    %229 = arith.mulf %228, %227 : vector<8x384xf32>
    %cst_75 = arith.constant 5.000000e-01 : f32
    %230 = vector.broadcast %cst_75 : f32 to vector<8x384xf32>
    %231 = arith.addf %229, %230 : vector<8x384xf32>
    %232 = vector.extract_strided_slice %223 {offsets = [0, 384], sizes = [8, 128], strides = [1, 1]} : vector<8x512xf32> to vector<8x128xf32>
    %233 = math.tanh %232 : vector<8x128xf32>
    %234 = vector.extract_strided_slice %231 {offsets = [0, 0], sizes = [8, 128], strides = [1, 1]} : vector<8x384xf32> to vector<8x128xf32>
    %235 = vector.extract_strided_slice %231 {offsets = [0, 128], sizes = [8, 128], strides = [1, 1]} : vector<8x384xf32> to vector<8x128xf32>
    %236 = vector.extract_strided_slice %231 {offsets = [0, 256], sizes = [8, 128], strides = [1, 1]} : vector<8x384xf32> to vector<8x128xf32>
    %237 = arith.mulf %235, %189 : vector<8x128xf32>
    %238 = arith.mulf %234, %233 : vector<8x128xf32>
    %239 = arith.addf %237, %238 : vector<8x128xf32>
    %240 = math.tanh %239 : vector<8x128xf32>
    %241 = arith.mulf %236, %240 : vector<8x128xf32>
    %cst_76 = arith.constant dense<0.000000e+00> : vector<8x512xf32>
    %242 = tpu.matmul %241, %12, %cst_76 {dimension_numbers = #tpu.dot_dimension_numbers<[1], [0], [0], [1], [0, 0, 1, 1], [], []>} : vector<8x128xf32>, vector<128x512xf32>, vector<8x512xf32> -> vector<8x512xf32>
    %243 = arith.addf %218, %242 : vector<8x512xf32>
    %244 = vector.extract_strided_slice %243 {offsets = [0, 0], sizes = [8, 384], strides = [1, 1]} : vector<8x512xf32> to vector<8x384xf32>
    %cst_77 = arith.constant 5.000000e-01 : f32
    %245 = vector.broadcast %cst_77 : f32 to vector<8x384xf32>
    %246 = arith.mulf %245, %244 : vector<8x384xf32>
    %247 = math.tanh %246 : vector<8x384xf32>
    %cst_78 = arith.constant 5.000000e-01 : f32
    %248 = vector.broadcast %cst_78 : f32 to vector<8x384xf32>
    %249 = arith.mulf %248, %247 : vector<8x384xf32>
    %cst_79 = arith.constant 5.000000e-01 : f32
    %250 = vector.broadcast %cst_79 : f32 to vector<8x384xf32>
    %251 = arith.addf %249, %250 : vector<8x384xf32>
    %252 = vector.extract_strided_slice %243 {offsets = [0, 384], sizes = [8, 128], strides = [1, 1]} : vector<8x512xf32> to vector<8x128xf32>
    %253 = math.tanh %252 : vector<8x128xf32>
    %254 = vector.extract_strided_slice %251 {offsets = [0, 0], sizes = [8, 128], strides = [1, 1]} : vector<8x384xf32> to vector<8x128xf32>
    %255 = vector.extract_strided_slice %251 {offsets = [0, 128], sizes = [8, 128], strides = [1, 1]} : vector<8x384xf32> to vector<8x128xf32>
    %256 = vector.extract_strided_slice %251 {offsets = [0, 256], sizes = [8, 128], strides = [1, 1]} : vector<8x384xf32> to vector<8x128xf32>
    %257 = arith.mulf %255, %209 : vector<8x128xf32>
    %258 = arith.mulf %254, %253 : vector<8x128xf32>
    %259 = arith.addf %257, %258 : vector<8x128xf32>
    %260 = math.tanh %259 : vector<8x128xf32>
    %261 = arith.mulf %256, %260 : vector<8x128xf32>
    %262 = arith.index_cast %c4_i32 : i32 to index
    %c0_80 = arith.constant 0 : index
    %c0_81 = arith.constant 0 : index
    %263 = vector.load %arg12[%262, %c0_80, %c0_81] : memref<8x8x128xf32, #tpu.memory_space<vmem>>, vector<1x8x128xf32>
    %264 = vector.shape_cast %263 : vector<1x8x128xf32> to vector<8x128xf32>
    %265 = vector.shape_cast %261 : vector<8x128xf32> to vector<1x8x128xf32>
    tpu.vector_store %arg12[%262, %c0_80, %c0_81], %265 {strides = array<i32>} : memref<8x8x128xf32, #tpu.memory_space<vmem>>, vector<1x8x128xf32>,
    %c5_i32 = arith.constant 5 : i32
    %cst_82 = arith.constant dense<0.000000e+00> : vector<8x512xf32>
    %266 = tpu.matmul %261, %13, %cst_82 {dimension_numbers = #tpu.dot_dimension_numbers<[1], [0], [0], [1], [0, 0, 1, 1], [], []>} : vector<8x128xf32>, vector<128x512xf32>, vector<8x512xf32> -> vector<8x512xf32>
    %267 = vector.broadcast %14 : vector<1x512xf32> to vector<8x512xf32>
    %268 = arith.addf %266, %267 : vector<8x512xf32>
    %269 = arith.index_cast %c5_i32 : i32 to index
    %c0_83 = arith.constant 0 : index
    %c0_84 = arith.constant 0 : index
    %270 = vector.load %arg11[%269, %c0_83, %c0_84] : memref<8x8x512xf32, #tpu.memory_space<vmem>>, vector<1x8x512xf32>
    %271 = vector.shape_cast %270 : vector<1x8x512xf32> to vector<8x512xf32>
    %cst_85 = arith.constant dense<0.000000e+00> : vector<8x512xf32>
    %272 = tpu.matmul %241, %11, %cst_85 {dimension_numbers = #tpu.dot_dimension_numbers<[1], [0], [0], [1], [0, 0, 1, 1], [], []>} : vector<8x128xf32>, vector<128x512xf32>, vector<8x512xf32> -> vector<8x512xf32>
    %273 = arith.addf %271, %272 : vector<8x512xf32>
    %274 = vector.extract_strided_slice %273 {offsets = [0, 0], sizes = [8, 384], strides = [1, 1]} : vector<8x512xf32> to vector<8x384xf32>
    %cst_86 = arith.constant 5.000000e-01 : f32
    %275 = vector.broadcast %cst_86 : f32 to vector<8x384xf32>
    %276 = arith.mulf %275, %274 : vector<8x384xf32>
    %277 = math.tanh %276 : vector<8x384xf32>
    %cst_87 = arith.constant 5.000000e-01 : f32
    %278 = vector.broadcast %cst_87 : f32 to vector<8x384xf32>
    %279 = arith.mulf %278, %277 : vector<8x384xf32>
    %cst_88 = arith.constant 5.000000e-01 : f32
    %280 = vector.broadcast %cst_88 : f32 to vector<8x384xf32>
    %281 = arith.addf %279, %280 : vector<8x384xf32>
    %282 = vector.extract_strided_slice %273 {offsets = [0, 384], sizes = [8, 128], strides = [1, 1]} : vector<8x512xf32> to vector<8x128xf32>
    %283 = math.tanh %282 : vector<8x128xf32>
    %284 = vector.extract_strided_slice %281 {offsets = [0, 0], sizes = [8, 128], strides = [1, 1]} : vector<8x384xf32> to vector<8x128xf32>
    %285 = vector.extract_strided_slice %281 {offsets = [0, 128], sizes = [8, 128], strides = [1, 1]} : vector<8x384xf32> to vector<8x128xf32>
    %286 = vector.extract_strided_slice %281 {offsets = [0, 256], sizes = [8, 128], strides = [1, 1]} : vector<8x384xf32> to vector<8x128xf32>
    %287 = arith.mulf %285, %239 : vector<8x128xf32>
    %288 = arith.mulf %284, %283 : vector<8x128xf32>
    %289 = arith.addf %287, %288 : vector<8x128xf32>
    %290 = math.tanh %289 : vector<8x128xf32>
    %291 = arith.mulf %286, %290 : vector<8x128xf32>
    %cst_89 = arith.constant dense<0.000000e+00> : vector<8x512xf32>
    %292 = tpu.matmul %291, %12, %cst_89 {dimension_numbers = #tpu.dot_dimension_numbers<[1], [0], [0], [1], [0, 0, 1, 1], [], []>} : vector<8x128xf32>, vector<128x512xf32>, vector<8x512xf32> -> vector<8x512xf32>
    %293 = arith.addf %268, %292 : vector<8x512xf32>
    %294 = vector.extract_strided_slice %293 {offsets = [0, 0], sizes = [8, 384], strides = [1, 1]} : vector<8x512xf32> to vector<8x384xf32>
    %cst_90 = arith.constant 5.000000e-01 : f32
    %295 = vector.broadcast %cst_90 : f32 to vector<8x384xf32>
    %296 = arith.mulf %295, %294 : vector<8x384xf32>
    %297 = math.tanh %296 : vector<8x384xf32>
    %cst_91 = arith.constant 5.000000e-01 : f32
    %298 = vector.broadcast %cst_91 : f32 to vector<8x384xf32>
    %299 = arith.mulf %298, %297 : vector<8x384xf32>
    %cst_92 = arith.constant 5.000000e-01 : f32
    %300 = vector.broadcast %cst_92 : f32 to vector<8x384xf32>
    %301 = arith.addf %299, %300 : vector<8x384xf32>
    %302 = vector.extract_strided_slice %293 {offsets = [0, 384], sizes = [8, 128], strides = [1, 1]} : vector<8x512xf32> to vector<8x128xf32>
    %303 = math.tanh %302 : vector<8x128xf32>
    %304 = vector.extract_strided_slice %301 {offsets = [0, 0], sizes = [8, 128], strides = [1, 1]} : vector<8x384xf32> to vector<8x128xf32>
    %305 = vector.extract_strided_slice %301 {offsets = [0, 128], sizes = [8, 128], strides = [1, 1]} : vector<8x384xf32> to vector<8x128xf32>
    %306 = vector.extract_strided_slice %301 {offsets = [0, 256], sizes = [8, 128], strides = [1, 1]} : vector<8x384xf32> to vector<8x128xf32>
    %307 = arith.mulf %305, %259 : vector<8x128xf32>
    %308 = arith.mulf %304, %303 : vector<8x128xf32>
    %309 = arith.addf %307, %308 : vector<8x128xf32>
    %310 = math.tanh %309 : vector<8x128xf32>
    %311 = arith.mulf %306, %310 : vector<8x128xf32>
    %312 = arith.index_cast %c5_i32 : i32 to index
    %c0_93 = arith.constant 0 : index
    %c0_94 = arith.constant 0 : index
    %313 = vector.load %arg12[%312, %c0_93, %c0_94] : memref<8x8x128xf32, #tpu.memory_space<vmem>>, vector<1x8x128xf32>
    %314 = vector.shape_cast %313 : vector<1x8x128xf32> to vector<8x128xf32>
    %315 = vector.shape_cast %311 : vector<8x128xf32> to vector<1x8x128xf32>
    tpu.vector_store %arg12[%312, %c0_93, %c0_94], %315 {strides = array<i32>} : memref<8x8x128xf32, #tpu.memory_space<vmem>>, vector<1x8x128xf32>,
    %c6_i32 = arith.constant 6 : i32
    %cst_95 = arith.constant dense<0.000000e+00> : vector<8x512xf32>
    %316 = tpu.matmul %311, %13, %cst_95 {dimension_numbers = #tpu.dot_dimension_numbers<[1], [0], [0], [1], [0, 0, 1, 1], [], []>} : vector<8x128xf32>, vector<128x512xf32>, vector<8x512xf32> -> vector<8x512xf32>
    %317 = vector.broadcast %14 : vector<1x512xf32> to vector<8x512xf32>
    %318 = arith.addf %316, %317 : vector<8x512xf32>
    %319 = arith.index_cast %c6_i32 : i32 to index
    %c0_96 = arith.constant 0 : index
    %c0_97 = arith.constant 0 : index
    %320 = vector.load %arg11[%319, %c0_96, %c0_97] : memref<8x8x512xf32, #tpu.memory_space<vmem>>, vector<1x8x512xf32>
    %321 = vector.shape_cast %320 : vector<1x8x512xf32> to vector<8x512xf32>
    %cst_98 = arith.constant dense<0.000000e+00> : vector<8x512xf32>
    %322 = tpu.matmul %291, %11, %cst_98 {dimension_numbers = #tpu.dot_dimension_numbers<[1], [0], [0], [1], [0, 0, 1, 1], [], []>} : vector<8x128xf32>, vector<128x512xf32>, vector<8x512xf32> -> vector<8x512xf32>
    %323 = arith.addf %321, %322 : vector<8x512xf32>
    %324 = vector.extract_strided_slice %323 {offsets = [0, 0], sizes = [8, 384], strides = [1, 1]} : vector<8x512xf32> to vector<8x384xf32>
    %cst_99 = arith.constant 5.000000e-01 : f32
    %325 = vector.broadcast %cst_99 : f32 to vector<8x384xf32>
    %326 = arith.mulf %325, %324 : vector<8x384xf32>
    %327 = math.tanh %326 : vector<8x384xf32>
    %cst_100 = arith.constant 5.000000e-01 : f32
    %328 = vector.broadcast %cst_100 : f32 to vector<8x384xf32>
    %329 = arith.mulf %328, %327 : vector<8x384xf32>
    %cst_101 = arith.constant 5.000000e-01 : f32
    %330 = vector.broadcast %cst_101 : f32 to vector<8x384xf32>
    %331 = arith.addf %329, %330 : vector<8x384xf32>
    %332 = vector.extract_strided_slice %323 {offsets = [0, 384], sizes = [8, 128], strides = [1, 1]} : vector<8x512xf32> to vector<8x128xf32>
    %333 = math.tanh %332 : vector<8x128xf32>
    %334 = vector.extract_strided_slice %331 {offsets = [0, 0], sizes = [8, 128], strides = [1, 1]} : vector<8x384xf32> to vector<8x128xf32>
    %335 = vector.extract_strided_slice %331 {offsets = [0, 128], sizes = [8, 128], strides = [1, 1]} : vector<8x384xf32> to vector<8x128xf32>
    %336 = vector.extract_strided_slice %331 {offsets = [0, 256], sizes = [8, 128], strides = [1, 1]} : vector<8x384xf32> to vector<8x128xf32>
    %337 = arith.mulf %335, %289 : vector<8x128xf32>
    %338 = arith.mulf %334, %333 : vector<8x128xf32>
    %339 = arith.addf %337, %338 : vector<8x128xf32>
    %340 = math.tanh %339 : vector<8x128xf32>
    %341 = arith.mulf %336, %340 : vector<8x128xf32>
    %cst_102 = arith.constant dense<0.000000e+00> : vector<8x512xf32>
    %342 = tpu.matmul %341, %12, %cst_102 {dimension_numbers = #tpu.dot_dimension_numbers<[1], [0], [0], [1], [0, 0, 1, 1], [], []>} : vector<8x128xf32>, vector<128x512xf32>, vector<8x512xf32> -> vector<8x512xf32>
    %343 = arith.addf %318, %342 : vector<8x512xf32>
    %344 = vector.extract_strided_slice %343 {offsets = [0, 0], sizes = [8, 384], strides = [1, 1]} : vector<8x512xf32> to vector<8x384xf32>
    %cst_103 = arith.constant 5.000000e-01 : f32
    %345 = vector.broadcast %cst_103 : f32 to vector<8x384xf32>
    %346 = arith.mulf %345, %344 : vector<8x384xf32>
    %347 = math.tanh %346 : vector<8x384xf32>
    %cst_104 = arith.constant 5.000000e-01 : f32
    %348 = vector.broadcast %cst_104 : f32 to vector<8x384xf32>
    %349 = arith.mulf %348, %347 : vector<8x384xf32>
    %cst_105 = arith.constant 5.000000e-01 : f32
    %350 = vector.broadcast %cst_105 : f32 to vector<8x384xf32>
    %351 = arith.addf %349, %350 : vector<8x384xf32>
    %352 = vector.extract_strided_slice %343 {offsets = [0, 384], sizes = [8, 128], strides = [1, 1]} : vector<8x512xf32> to vector<8x128xf32>
    %353 = math.tanh %352 : vector<8x128xf32>
    %354 = vector.extract_strided_slice %351 {offsets = [0, 0], sizes = [8, 128], strides = [1, 1]} : vector<8x384xf32> to vector<8x128xf32>
    %355 = vector.extract_strided_slice %351 {offsets = [0, 128], sizes = [8, 128], strides = [1, 1]} : vector<8x384xf32> to vector<8x128xf32>
    %356 = vector.extract_strided_slice %351 {offsets = [0, 256], sizes = [8, 128], strides = [1, 1]} : vector<8x384xf32> to vector<8x128xf32>
    %357 = arith.mulf %355, %309 : vector<8x128xf32>
    %358 = arith.mulf %354, %353 : vector<8x128xf32>
    %359 = arith.addf %357, %358 : vector<8x128xf32>
    %360 = math.tanh %359 : vector<8x128xf32>
    %361 = arith.mulf %356, %360 : vector<8x128xf32>
    %362 = arith.index_cast %c6_i32 : i32 to index
    %c0_106 = arith.constant 0 : index
    %c0_107 = arith.constant 0 : index
    %363 = vector.load %arg12[%362, %c0_106, %c0_107] : memref<8x8x128xf32, #tpu.memory_space<vmem>>, vector<1x8x128xf32>
    %364 = vector.shape_cast %363 : vector<1x8x128xf32> to vector<8x128xf32>
    %365 = vector.shape_cast %361 : vector<8x128xf32> to vector<1x8x128xf32>
    tpu.vector_store %arg12[%362, %c0_106, %c0_107], %365 {strides = array<i32>} : memref<8x8x128xf32, #tpu.memory_space<vmem>>, vector<1x8x128xf32>,
    %c7_i32 = arith.constant 7 : i32
    %cst_108 = arith.constant dense<0.000000e+00> : vector<8x512xf32>
    %366 = tpu.matmul %361, %13, %cst_108 {dimension_numbers = #tpu.dot_dimension_numbers<[1], [0], [0], [1], [0, 0, 1, 1], [], []>} : vector<8x128xf32>, vector<128x512xf32>, vector<8x512xf32> -> vector<8x512xf32>
    %367 = vector.broadcast %14 : vector<1x512xf32> to vector<8x512xf32>
    %368 = arith.addf %366, %367 : vector<8x512xf32>
    %369 = arith.index_cast %c7_i32 : i32 to index
    %c0_109 = arith.constant 0 : index
    %c0_110 = arith.constant 0 : index
    %370 = vector.load %arg11[%369, %c0_109, %c0_110] : memref<8x8x512xf32, #tpu.memory_space<vmem>>, vector<1x8x512xf32>
    %371 = vector.shape_cast %370 : vector<1x8x512xf32> to vector<8x512xf32>
    %cst_111 = arith.constant dense<0.000000e+00> : vector<8x512xf32>
    %372 = tpu.matmul %341, %11, %cst_111 {dimension_numbers = #tpu.dot_dimension_numbers<[1], [0], [0], [1], [0, 0, 1, 1], [], []>} : vector<8x128xf32>, vector<128x512xf32>, vector<8x512xf32> -> vector<8x512xf32>
    %373 = arith.addf %371, %372 : vector<8x512xf32>
    %374 = vector.extract_strided_slice %373 {offsets = [0, 0], sizes = [8, 384], strides = [1, 1]} : vector<8x512xf32> to vector<8x384xf32>
    %cst_112 = arith.constant 5.000000e-01 : f32
    %375 = vector.broadcast %cst_112 : f32 to vector<8x384xf32>
    %376 = arith.mulf %375, %374 : vector<8x384xf32>
    %377 = math.tanh %376 : vector<8x384xf32>
    %cst_113 = arith.constant 5.000000e-01 : f32
    %378 = vector.broadcast %cst_113 : f32 to vector<8x384xf32>
    %379 = arith.mulf %378, %377 : vector<8x384xf32>
    %cst_114 = arith.constant 5.000000e-01 : f32
    %380 = vector.broadcast %cst_114 : f32 to vector<8x384xf32>
    %381 = arith.addf %379, %380 : vector<8x384xf32>
    %382 = vector.extract_strided_slice %373 {offsets = [0, 384], sizes = [8, 128], strides = [1, 1]} : vector<8x512xf32> to vector<8x128xf32>
    %383 = math.tanh %382 : vector<8x128xf32>
    %384 = vector.extract_strided_slice %381 {offsets = [0, 0], sizes = [8, 128], strides = [1, 1]} : vector<8x384xf32> to vector<8x128xf32>
    %385 = vector.extract_strided_slice %381 {offsets = [0, 128], sizes = [8, 128], strides = [1, 1]} : vector<8x384xf32> to vector<8x128xf32>
    %386 = vector.extract_strided_slice %381 {offsets = [0, 256], sizes = [8, 128], strides = [1, 1]} : vector<8x384xf32> to vector<8x128xf32>
    %387 = arith.mulf %385, %339 : vector<8x128xf32>
    %388 = arith.mulf %384, %383 : vector<8x128xf32>
    %389 = arith.addf %387, %388 : vector<8x128xf32>
    %390 = math.tanh %389 : vector<8x128xf32>
    %391 = arith.mulf %386, %390 : vector<8x128xf32>
    %cst_115 = arith.constant dense<0.000000e+00> : vector<8x512xf32>
    %392 = tpu.matmul %391, %12, %cst_115 {dimension_numbers = #tpu.dot_dimension_numbers<[1], [0], [0], [1], [0, 0, 1, 1], [], []>} : vector<8x128xf32>, vector<128x512xf32>, vector<8x512xf32> -> vector<8x512xf32>
    %393 = arith.addf %368, %392 : vector<8x512xf32>
    %394 = vector.extract_strided_slice %393 {offsets = [0, 0], sizes = [8, 384], strides = [1, 1]} : vector<8x512xf32> to vector<8x384xf32>
    %cst_116 = arith.constant 5.000000e-01 : f32
    %395 = vector.broadcast %cst_116 : f32 to vector<8x384xf32>
    %396 = arith.mulf %395, %394 : vector<8x384xf32>
    %397 = math.tanh %396 : vector<8x384xf32>
    %cst_117 = arith.constant 5.000000e-01 : f32
    %398 = vector.broadcast %cst_117 : f32 to vector<8x384xf32>
    %399 = arith.mulf %398, %397 : vector<8x384xf32>
    %cst_118 = arith.constant 5.000000e-01 : f32
    %400 = vector.broadcast %cst_118 : f32 to vector<8x384xf32>
    %401 = arith.addf %399, %400 : vector<8x384xf32>
    %402 = vector.extract_strided_slice %393 {offsets = [0, 384], sizes = [8, 128], strides = [1, 1]} : vector<8x512xf32> to vector<8x128xf32>
    %403 = math.tanh %402 : vector<8x128xf32>
    %404 = vector.extract_strided_slice %401 {offsets = [0, 0], sizes = [8, 128], strides = [1, 1]} : vector<8x384xf32> to vector<8x128xf32>
    %405 = vector.extract_strided_slice %401 {offsets = [0, 128], sizes = [8, 128], strides = [1, 1]} : vector<8x384xf32> to vector<8x128xf32>
    %406 = vector.extract_strided_slice %401 {offsets = [0, 256], sizes = [8, 128], strides = [1, 1]} : vector<8x384xf32> to vector<8x128xf32>
    %407 = arith.mulf %405, %359 : vector<8x128xf32>
    %408 = arith.mulf %404, %403 : vector<8x128xf32>
    %409 = arith.addf %407, %408 : vector<8x128xf32>
    %410 = math.tanh %409 : vector<8x128xf32>
    %411 = arith.mulf %406, %410 : vector<8x128xf32>
    %412 = arith.index_cast %c7_i32 : i32 to index
    %c0_119 = arith.constant 0 : index
    %c0_120 = arith.constant 0 : index
    %413 = vector.load %arg12[%412, %c0_119, %c0_120] : memref<8x8x128xf32, #tpu.memory_space<vmem>>, vector<1x8x128xf32>
    %414 = vector.shape_cast %413 : vector<1x8x128xf32> to vector<8x128xf32>
    %415 = vector.shape_cast %411 : vector<8x128xf32> to vector<1x8x128xf32>
    tpu.vector_store %arg12[%412, %c0_119, %c0_120], %415 {strides = array<i32>} : memref<8x8x128xf32, #tpu.memory_space<vmem>>, vector<1x8x128xf32>,
    %c8_i32 = arith.constant 8 : i32
    %c0_121 = arith.constant 0 : index
    %c0_122 = arith.constant 0 : index
    %c0_123 = arith.constant 0 : index
    %416 = vector.load %arg12[%c0_121, %c0_122, %c0_123] : memref<8x8x128xf32, #tpu.memory_space<vmem>>, vector<8x8x128xf32>
    %c0_124 = arith.constant 0 : index
    %c0_125 = arith.constant 0 : index
    %417 = vector.load %arg8[%c0_124, %c0_125] : memref<1x128xf32, #tpu.memory_space<vmem>>, vector<1x128xf32>
    %418 = vector.shape_cast %417 : vector<1x128xf32> to vector<1x1x128xf32>
    %419 = vector.broadcast %418 : vector<1x1x128xf32> to vector<8x8x128xf32>
    %420 = arith.mulf %416, %419 : vector<8x8x128xf32>
    %cst_126 = arith.constant dense<0.000000e+00> : vector<8x8xf32>
    %421 = vector.multi_reduction <add>, %420, %cst_126 [2] : vector<8x8x128xf32> to vector<8x8xf32>
    %c0_127 = arith.constant 0 : index
    %c0_128 = arith.constant 0 : index
    %422 = vector.load %arg9[%c0_127, %c0_128] : memref<1x1xf32, #tpu.memory_space<vmem>>, vector<1x1xf32>
    %423 = vector.broadcast %422 : vector<1x1xf32> to vector<8x8xf32>
    %424 = arith.addf %421, %423 : vector<8x8xf32>
    %c0_129 = arith.constant 0 : index
    %c0_130 = arith.constant 0 : index
    %425 = vector.load %arg10[%c0_129, %c0_130] : memref<8x8xf32, #tpu.memory_space<vmem>>, vector<8x8xf32>
    tpu.vector_store %arg10[%c0_129, %c0_130], %424 {strides = array<i32>} : memref<8x8xf32, #tpu.memory_space<vmem>>, vector<8x8xf32>,
    return
  }
  func.func @transform_0(%arg0: i32) -> (i32, i32, i32) {
    %c0_i32 = arith.constant 0 : i32
    %c0_i32_0 = arith.constant 0 : i32
    %c0_i32_1 = arith.constant 0 : i32
    return %c0_i32, %arg0, %c0_i32_0 : i32, i32, i32
  }
  func.func @transform_1(%arg0: i32) -> (i32, i32) {
    %c0_i32 = arith.constant 0 : i32
    %c0_i32_0 = arith.constant 0 : i32
    %c0_i32_1 = arith.constant 0 : i32
    return %c0_i32, %c0_i32_0 : i32, i32
  }
  func.func @transform_2(%arg0: i32) -> (i32, i32) {
    %c0_i32 = arith.constant 0 : i32
    %c0_i32_0 = arith.constant 0 : i32
    %c0_i32_1 = arith.constant 0 : i32
    return %c0_i32, %c0_i32_0 : i32, i32
  }
  func.func @transform_3(%arg0: i32) -> (i32, i32) {
    %c0_i32 = arith.constant 0 : i32
    %c0_i32_0 = arith.constant 0 : i32
    %c0_i32_1 = arith.constant 0 : i32
    return %c0_i32, %c0_i32_0 : i32, i32
  }
  func.func @transform_4(%arg0: i32) -> (i32, i32) {
    %c0_i32 = arith.constant 0 : i32
    %c0_i32_0 = arith.constant 0 : i32
    %c0_i32_1 = arith.constant 0 : i32
    return %c0_i32, %c0_i32_0 : i32, i32
  }
  func.func @transform_5(%arg0: i32) -> (i32, i32) {
    %c0_i32 = arith.constant 0 : i32
    %c0_i32_0 = arith.constant 0 : i32
    %c0_i32_1 = arith.constant 0 : i32
    return %c0_i32, %c0_i32_0 : i32, i32
  }
  func.func @transform_6(%arg0: i32) -> (i32, i32) {
    %c0_i32 = arith.constant 0 : i32
    %c0_i32_0 = arith.constant 0 : i32
    %c0_i32_1 = arith.constant 0 : i32
    return %c0_i32, %c0_i32_0 : i32, i32
  }
  func.func @transform_7(%arg0: i32) -> (i32, i32) {
    %c0_i32 = arith.constant 0 : i32
    %c0_i32_0 = arith.constant 0 : i32
    %c0_i32_1 = arith.constant 0 : i32
    return %c0_i32, %c0_i32_0 : i32, i32
  }
  func.func @transform_8(%arg0: i32) -> (i32, i32) {
    %c0_i32 = arith.constant 0 : i32
    %c0_i32_0 = arith.constant 0 : i32
    %c0_i32_1 = arith.constant 0 : i32
    return %c0_i32, %c0_i32_0 : i32, i32
  }
  func.func @transform_9(%arg0: i32) -> (i32, i32) {
    %c0_i32 = arith.constant 0 : i32
    %c0_i32_0 = arith.constant 0 : i32
    return %c0_i32, %arg0 : i32, i32
  }
}

</mosaic_0001>

<llo_original>
// kernel: tpu_custom_call.1
$region0: #{tpu_custom_call.1}
  #allocation0 [shape = 'u32[]', space=smem, size = 0x4, offset = 0x4, fixed_abs, tag = 'smem constant byte address 0x4 - core index']
  #allocation1 [shape = 'u32[144,128]{1,0:T(1,128)}', space=vmem, size = 0x12000, scoped, tag = 'internal scratch']
  #allocation2 [shape = 'f32[8,8,512]{2,1,0:T(8,128)}', space=vmem, size = 0x20000, scoped, tag = 'scratch operand']
  #allocation3 [shape = 'f32[8,8,128]{2,1,0:T(8,128)}', space=vmem, size = 0x8000, scoped, tag = 'scratch operand']
  #allocation4 [shape = 'f32[1,1]{1,0:T(1,128)S(1)}', space=vmem, size = 0x200, scoped, tag = 'scoped memory for tpu_custom_call.1']
  %s0 = inlined_call_operand.vmem [shape: f32[8,8,1], index: 0, kind: input, shape index: {}]
  %s1 = inlined_call_operand.vmem [shape: f32[1,512], index: 1, kind: input, shape index: {}]
  %s2 = inlined_call_operand.hbm [shape: f32[128,512], index: 2, kind: input, shape index: {}]
  %s3 = inlined_call_operand.vmem [shape: f32[1,512], index: 3, kind: input, shape index: {}]
  %s4 = inlined_call_operand.hbm [shape: f32[128,512], index: 4, kind: input, shape index: {}]
  %s5 = inlined_call_operand.hbm [shape: f32[128,512], index: 5, kind: input, shape index: {}]
  %s6 = inlined_call_operand.vmem [shape: f32[1,512], index: 6, kind: input, shape index: {}]
  %s7 = inlined_call_operand.vmem [shape: f32[1,128], index: 7, kind: input, shape index: {}]
  %s8 = inlined_call_operand.<no memory space> [shape: f32[1,1], index: 8, kind: input, shape index: {}]
  %s9 = inlined_call_operand.hbm [shape: f32[8,8], index: 9, kind: output, shape index: {}]
  %s10 = sld [smem:[#allocation0]]
  $region58: #{tpu_custom_call.1} parent=0
    _
  %s12 = ssub.s32 1, %s10
  %s13 = scalar_select 0, %s12, %s10
  %v14 = vstv %s8
  %15 = vst [vmem:[#allocation4] sm:$0x1] %v14
  $region1: #{tpu_custom_call.1} parent=0
    #allocation5 [shape = 'u8[262144]{0}', space=vmem, size = 0x40000, scoped, tag = 'input window, operand 2, single buffered']
    #allocation6 [shape = 's32[1]{0}', space=sflag, size = 0x4, scoped, tag = 'scoped memory for tpu_custom_call.1']
    #allocation7 [shape = 's32[1]{0}', space=sflag, size = 0x4, scoped, tag = 'scoped memory for tpu_custom_call.1']
    #allocation8 [shape = 'u8[262144]{0}', space=vmem, size = 0x40000, scoped, tag = 'input window, operand 4, single buffered']
    #allocation9 [shape = 's32[1]{0}', space=sflag, size = 0x4, scoped, tag = 'scoped memory for tpu_custom_call.1']
    #allocation10 [shape = 'u8[262144]{0}', space=vmem, size = 0x40000, scoped, tag = 'input window, operand 5, single buffered']
    #allocation11 [shape = 'u8[4096]{0}', space=vmem, size = 0x1000, scoped, tag = 'output window, operand 0, single buffered']
    %16 = vsyncpa [#allocation6], 0
    %17 = vsyncpa [#allocation9], 0
    %18 = vsyncpa [#allocation7], 0
    // Predicated region
    $region2: #{tpu_custom_call.1} parent=1 // pred_check
      _
    $region3: #{tpu_custom_call.1} parent=1 // pred_check_branch
      %20 = sbr.rel (0) target = $region5
    $region4: #{tpu_custom_call.1} parent=1 // pred_region
      _
    $region5: #{tpu_custom_call.1} parent=1 // pred_fallthru
      _
    // Predicated region
    $region6: #{tpu_custom_call.1} parent=1 // pred_check
      _
    $region7: #{tpu_custom_call.1} parent=1 // pred_check_branch
      %22 = sbr.rel (0) target = $region9
    $region8: #{tpu_custom_call.1} parent=1 // pred_region
      _
    $region9: #{tpu_custom_call.1} parent=1 // pred_fallthru
      _
    // Predicated region
    $region10: #{tpu_custom_call.1} parent=1 // pred_check
      _
    $region11: #{tpu_custom_call.1} parent=1 // pred_check_branch
      %24 = sbr.rel (0) target = $region13
    $region12: #{tpu_custom_call.1} parent=1 // pred_region
      %s26 = ssub.s32 8192, 8192
      %27 = vsyncadd [#allocation6], %s26
      %s28 = sshll.u32 [#allocation5], 4
      %s29 = int_to_ptr.vmem [resolvable:$true] %s28
      %34 = dma.hbm_to_vmem [thread:$0]  %s2, 8192, %s29, [#allocation6], 512, 512, 32
    $region13: #{tpu_custom_call.1} parent=1 // pred_fallthru
      _
    // Predicated region
    $region14: #{tpu_custom_call.1} parent=1 // pred_check
      _
    $region15: #{tpu_custom_call.1} parent=1 // pred_check_branch
      %36 = sbr.rel (0) target = $region17
    $region16: #{tpu_custom_call.1} parent=1 // pred_region
      _
    $region17: #{tpu_custom_call.1} parent=1 // pred_fallthru
      _
    // Predicated region
    $region18: #{tpu_custom_call.1} parent=1 // pred_check
      _
    $region19: #{tpu_custom_call.1} parent=1 // pred_check_branch
      %38 = sbr.rel (0) target = $region21
    $region20: #{tpu_custom_call.1} parent=1 // pred_region
      %s40 = ssub.s32 8192, 8192
      %41 = vsyncadd [#allocation9], %s40
      %s42 = sshll.u32 [#allocation8], 4
      %s43 = int_to_ptr.vmem [resolvable:$true] %s42
      %48 = dma.hbm_to_vmem [thread:$0]  %s4, 8192, %s43, [#allocation9], 512, 512, 32
    $region21: #{tpu_custom_call.1} parent=1 // pred_fallthru
      _
    // Predicated region
    $region22: #{tpu_custom_call.1} parent=1 // pred_check
      _
    $region23: #{tpu_custom_call.1} parent=1 // pred_check_branch
      %50 = sbr.rel (0) target = $region25
    $region24: #{tpu_custom_call.1} parent=1 // pred_region
      %s52 = ssub.s32 8192, 8192
      %53 = vsyncadd [#allocation9], %s52
      %s54 = sshll.u32 [#allocation10], 4
      %s55 = int_to_ptr.vmem [resolvable:$true] %s54
      %60 = dma.hbm_to_vmem [thread:$0]  %s5, 8192, %s55, [#allocation9], 512, 512, 32
    $region25: #{tpu_custom_call.1} parent=1 // pred_fallthru
      _
    // Predicated region
    $region26: #{tpu_custom_call.1} parent=1 // pred_check
      _
    $region27: #{tpu_custom_call.1} parent=1 // pred_check_branch
      %62 = sbr.rel (0) target = $region29
    $region28: #{tpu_custom_call.1} parent=1 // pred_region
      _
    $region29: #{tpu_custom_call.1} parent=1 // pred_fallthru
      _
    // Predicated region
    $region30: #{tpu_custom_call.1} parent=1 // pred_check
      _
    $region31: #{tpu_custom_call.1} parent=1 // pred_check_branch
      %64 = sbr.rel (0) target = $region33
    $region32: #{tpu_custom_call.1} parent=1 // pred_region
      _
    $region33: #{tpu_custom_call.1} parent=1 // pred_fallthru
      _
    // Predicated region
    $region34: #{tpu_custom_call.1} parent=1 // pred_check
      _
    $region35: #{tpu_custom_call.1} parent=1 // pred_check_branch
      %66 = sbr.rel (0) target = $region37
    $region36: #{tpu_custom_call.1} parent=1 // pred_region
      _
    $region37: #{tpu_custom_call.1} parent=1 // pred_fallthru
      _
    // Predicated region
    $region38: #{tpu_custom_call.1} parent=1 // pred_check
      _
    $region39: #{tpu_custom_call.1} parent=1 // pred_check_branch
      %68 = sbr.rel (0) target = $region41
    $region40: #{tpu_custom_call.1} parent=1 // pred_region
      %69 = dma.done [#allocation6], 8192
    $region41: #{tpu_custom_call.1} parent=1 // pred_fallthru
      _
    // Predicated region
    $region42: #{tpu_custom_call.1} parent=1 // pred_check
      _
    $region43: #{tpu_custom_call.1} parent=1 // pred_check_branch
      %71 = sbr.rel (0) target = $region45
    $region44: #{tpu_custom_call.1} parent=1 // pred_region
      %72 = dma.done [#allocation9], 8192
    $region45: #{tpu_custom_call.1} parent=1 // pred_fallthru
      _
    // Predicated region
    $region46: #{tpu_custom_call.1} parent=1 // pred_check
      _
    $region47: #{tpu_custom_call.1} parent=1 // pred_check_branch
      %74 = sbr.rel (0) target = $region49
    $region48: #{tpu_custom_call.1} parent=1 // pred_region
      %75 = dma.done [#allocation9], 8192
    $region49: #{tpu_custom_call.1} parent=1 // pred_fallthru
      _
    %v76 = vld [vmem:[%s0] sm:$0xff]
    %v77 = vld [vmem:[%s0 + $0x8] sm:$0xff]
    %v78 = vld [vmem:[%s0 + $0x10] sm:$0xff]
    %v79 = vld [vmem:[%s0 + $0x18] sm:$0xff]
    %v80 = vld [vmem:[%s0 + $0x20] sm:$0xff]
    %v81 = vld [vmem:[%s0 + $0x28] sm:$0xff]
    %v82 = vld [vmem:[%s0 + $0x30] sm:$0xff]
    %v83 = vld [vmem:[%s0 + $0x38] sm:$0xff]
    %v84 = vld [vmem:[%s1] sm:$0xf]
    %86 = vset.pattern.permute.xlu0 0
    %87 = vperm.xlu0 %86, %v76
    %v88 = vpop.permute.xlu0 %87
    %91 = vset.pattern.permute.xlu0 0
    %92 = vperm.xlu0 %91, %v77
    %v93 = vpop.permute.xlu0 %92
    %96 = vset.pattern.permute.xlu0 0
    %97 = vperm.xlu0 %96, %v78
    %v98 = vpop.permute.xlu0 %97
    %101 = vset.pattern.permute.xlu0 0
    %102 = vperm.xlu0 %101, %v79
    %v103 = vpop.permute.xlu0 %102
    %106 = vset.pattern.permute.xlu0 0
    %107 = vperm.xlu0 %106, %v80
    %v108 = vpop.permute.xlu0 %107
    %111 = vset.pattern.permute.xlu0 0
    %112 = vperm.xlu0 %111, %v81
    %v113 = vpop.permute.xlu0 %112
    %116 = vset.pattern.permute.xlu0 0
    %117 = vperm.xlu0 %116, %v82
    %v118 = vpop.permute.xlu0 %117
    %121 = vset.pattern.permute.xlu0 0
    %122 = vperm.xlu0 %121, %v83
    %v123 = vpop.permute.xlu0 %122
    %v126 = vlaneseq
    %v127 = vshrl.u32 %v126, 7
    %v128 = vsub.s32 0, %v127
    %v129 = vrot.slane %v84, %v128
    %v130 = vlaneseq
    %v131 = vshrl.u32 %v130, 7
    %v132 = vsub.s32 1, %v131
    %v133 = vrot.slane %v84, %v132
    %v134 = vlaneseq
    %v135 = vshrl.u32 %v134, 7
    %v136 = vsub.s32 2, %v135
    %v137 = vrot.slane %v84, %v136
    %v138 = vlaneseq
    %v139 = vshrl.u32 %v138, 7
    %v140 = vsub.s32 3, %v139
    %v141 = vrot.slane %v84, %v140
    %v146 = vmul.f32 %v88, %v129
    %v147 = vmul.f32 %v88, %v133
    %v148 = vmul.f32 %v88, %v137
    %v149 = vmul.f32 %v88, %v141
    %v150 = vmul.f32 %v93, %v129
    %v151 = vmul.f32 %v93, %v133
    %v152 = vmul.f32 %v93, %v137
    %v153 = vmul.f32 %v93, %v141
    %v154 = vmul.f32 %v98, %v129
    %v155 = vmul.f32 %v98, %v133
    %v156 = vmul.f32 %v98, %v137
    %v157 = vmul.f32 %v98, %v141
    %v158 = vmul.f32 %v103, %v129
    %v159 = vmul.f32 %v103, %v133
    %v160 = vmul.f32 %v103, %v137
    %v161 = vmul.f32 %v103, %v141
    %v162 = vmul.f32 %v108, %v129
    %v163 = vmul.f32 %v108, %v133
    %v164 = vmul.f32 %v108, %v137
    %v165 = vmul.f32 %v108, %v141
    %v166 = vmul.f32 %v113, %v129
    %v167 = vmul.f32 %v113, %v133
    %v168 = vmul.f32 %v113, %v137
    %v169 = vmul.f32 %v113, %v141
    %v170 = vmul.f32 %v118, %v129
    %v171 = vmul.f32 %v118, %v133
    %v172 = vmul.f32 %v118, %v137
    %v173 = vmul.f32 %v118, %v141
    %v174 = vmul.f32 %v123, %v129
    %v175 = vmul.f32 %v123, %v133
    %v176 = vmul.f32 %v123, %v137
    %v177 = vmul.f32 %v123, %v141
    %v178 = vld [vmem:[%s3] sm:$0xf]
    %v180 = vlaneseq
    %v181 = vshrl.u32 %v180, 7
    %v182 = vsub.s32 0, %v181
    %v183 = vrot.slane %v178, %v182
    %v184 = vlaneseq
    %v185 = vshrl.u32 %v184, 7
    %v186 = vsub.s32 1, %v185
    %v187 = vrot.slane %v178, %v186
    %v188 = vlaneseq
    %v189 = vshrl.u32 %v188, 7
    %v190 = vsub.s32 2, %v189
    %v191 = vrot.slane %v178, %v190
    %v192 = vlaneseq
    %v193 = vshrl.u32 %v192, 7
    %v194 = vsub.s32 3, %v193
    %v195 = vrot.slane %v178, %v194
    %v200 = vadd.f32 %v146, %v183
    %v201 = vadd.f32 %v147, %v187
    %v202 = vadd.f32 %v148, %v191
    %v203 = vadd.f32 %v149, %v195
    %v204 = vadd.f32 %v150, %v183
    %v205 = vadd.f32 %v151, %v187
    %v206 = vadd.f32 %v152, %v191
    %v207 = vadd.f32 %v153, %v195
    %v208 = vadd.f32 %v154, %v183
    %v209 = vadd.f32 %v155, %v187
    %v210 = vadd.f32 %v156, %v191
    %v211 = vadd.f32 %v157, %v195
    %v212 = vadd.f32 %v158, %v183
    %v213 = vadd.f32 %v159, %v187
    %v214 = vadd.f32 %v160, %v191
    %v215 = vadd.f32 %v161, %v195
    %v216 = vadd.f32 %v162, %v183
    %v217 = vadd.f32 %v163, %v187
    %v218 = vadd.f32 %v164, %v191
    %v219 = vadd.f32 %v165, %v195
    %v220 = vadd.f32 %v166, %v183
    %v221 = vadd.f32 %v167, %v187
    %v222 = vadd.f32 %v168, %v191
    %v223 = vadd.f32 %v169, %v195
    %v224 = vadd.f32 %v170, %v183
    %v225 = vadd.f32 %v171, %v187
    %v226 = vadd.f32 %v172, %v191
    %v227 = vadd.f32 %v173, %v195
    %v228 = vadd.f32 %v174, %v183
    %v229 = vadd.f32 %v175, %v187
    %v230 = vadd.f32 %v176, %v191
    %v231 = vadd.f32 %v177, %v195
    %232 = vst [vmem:[#allocation2] sm:$0xff] %v200
    %233 = vst [vmem:[#allocation2 + $0x8] sm:$0xff] %v201
    %234 = vst [vmem:[#allocation2 + $0x10] sm:$0xff] %v202
    %235 = vst [vmem:[#allocation2 + $0x18] sm:$0xff] %v203
    %236 = vst [vmem:[#allocation2 + $0x20] sm:$0xff] %v204
    %237 = vst [vmem:[#allocation2 + $0x28] sm:$0xff] %v205
    %238 = vst [vmem:[#allocation2 + $0x30] sm:$0xff] %v206
    %239 = vst [vmem:[#allocation2 + $0x38] sm:$0xff] %v207
    %240 = vst [vmem:[#allocation2 + $0x40] sm:$0xff] %v208
    %241 = vst [vmem:[#allocation2 + $0x48] sm:$0xff] %v209
    %242 = vst [vmem:[#allocation2 + $0x50] sm:$0xff] %v210
    %243 = vst [vmem:[#allocation2 + $0x58] sm:$0xff] %v211
    %244 = vst [vmem:[#allocation2 + $0x60] sm:$0xff] %v212
    %245 = vst [vmem:[#allocation2 + $0x68] sm:$0xff] %v213
    %246 = vst [vmem:[#allocation2 + $0x70] sm:$0xff] %v214
    %247 = vst [vmem:[#allocation2 + $0x78] sm:$0xff] %v215
    %248 = vst [vmem:[#allocation2 + $0x80] sm:$0xff] %v216
    %249 = vst [vmem:[#allocation2 + $0x88] sm:$0xff] %v217
    %250 = vst [vmem:[#allocation2 + $0x90] sm:$0xff] %v218
    %251 = vst [vmem:[#allocation2 + $0x98] sm:$0xff] %v219
    %252 = vst [vmem:[#allocation2 + $0xa0] sm:$0xff] %v220
    %253 = vst [vmem:[#allocation2 + $0xa8] sm:$0xff] %v221
    %254 = vst [vmem:[#allocation2 + $0xb0] sm:$0xff] %v222
    %255 = vst [vmem:[#allocation2 + $0xb8] sm:$0xff] %v223
    %256 = vst [vmem:[#allocation2 + $0xc0] sm:$0xff] %v224
    %257 = vst [vmem:[#allocation2 + $0xc8] sm:$0xff] %v225
    %258 = vst [vmem:[#allocation2 + $0xd0] sm:$0xff] %v226
    %259 = vst [vmem:[#allocation2 + $0xd8] sm:$0xff] %v227
    %260 = vst [vmem:[#allocation2 + $0xe0] sm:$0xff] %v228
    %261 = vst [vmem:[#allocation2 + $0xe8] sm:$0xff] %v229
    %262 = vst [vmem:[#allocation2 + $0xf0] sm:$0xff] %v230
    %263 = vst [vmem:[#allocation2 + $0xf8] sm:$0xff] %v231
    %v264 = vld [vmem:[#allocation5] sm:$0xff]
    %v265 = vld [vmem:[#allocation5 + $0x8] sm:$0xff]
    %v266 = vld [vmem:[#allocation5 + $0x10] sm:$0xff]
    %v267 = vld [vmem:[#allocation5 + $0x18] sm:$0xff]
    %v268 = vld [vmem:[#allocation5 + $0x20] sm:$0xff]
    %v269 = vld [vmem:[#allocation5 + $0x28] sm:$0xff]
    %v270 = vld [vmem:[#allocation5 + $0x30] sm:$0xff]
    %v271 = vld [vmem:[#allocation5 + $0x38] sm:$0xff]
    %v272 = vld [vmem:[#allocation5 + $0x40] sm:$0xff]
    %v273 = vld [vmem:[#allocation5 + $0x48] sm:$0xff]
    %v274 = vld [vmem:[#allocation5 + $0x50] sm:$0xff]
    %v275 = vld [vmem:[#allocation5 + $0x58] sm:$0xff]
    %v276 = vld [vmem:[#allocation5 + $0x60] sm:$0xff]
    %v277 = vld [vmem:[#allocation5 + $0x68] sm:$0xff]
    %v278 = vld [vmem:[#allocation5 + $0x70] sm:$0xff]
    %v279 = vld [vmem:[#allocation5 + $0x78] sm:$0xff]
    %v280 = vld [vmem:[#allocation5 + $0x80] sm:$0xff]
    %v281 = vld [vmem:[#allocation5 + $0x88] sm:$0xff]
    %v282 = vld [vmem:[#allocation5 + $0x90] sm:$0xff]
    %v283 = vld [vmem:[#allocation5 + $0x98] sm:$0xff]
    %v284 = vld [vmem:[#allocation5 + $0xa0] sm:$0xff]
    %v285 = vld [vmem:[#allocation5 + $0xa8] sm:$0xff]
    %v286 = vld [vmem:[#allocation5 + $0xb0] sm:$0xff]
    %v287 = vld [vmem:[#allocation5 + $0xb8] sm:$0xff]
    %v288 = vld [vmem:[#allocation5 + $0xc0] sm:$0xff]
    %v289 = vld [vmem:[#allocation5 + $0xc8] sm:$0xff]
    %v290 = vld [vmem:[#allocation5 + $0xd0] sm:$0xff]
    %v291 = vld [vmem:[#allocation5 + $0xd8] sm:$0xff]
    %v292 = vld [vmem:[#allocation5 + $0xe0] sm:$0xff]
    %v293 = vld [vmem:[#allocation5 + $0xe8] sm:$0xff]
    %v294 = vld [vmem:[#allocation5 + $0xf0] sm:$0xff]
    %v295 = vld [vmem:[#allocation5 + $0xf8] sm:$0xff]
    %v296 = vld [vmem:[#allocation5 + $0x100] sm:$0xff]
    %v297 = vld [vmem:[#allocation5 + $0x108] sm:$0xff]
    %v298 = vld [vmem:[#allocation5 + $0x110] sm:$0xff]
    %v299 = vld [vmem:[#allocation5 + $0x118] sm:$0xff]
    %v300 = vld [vmem:[#allocation5 + $0x120] sm:$0xff]
    %v301 = vld [vmem:[#allocation5 + $0x128] sm:$0xff]
    %v302 = vld [vmem:[#allocation5 + $0x130] sm:$0xff]
    %v303 = vld [vmem:[#allocation5 + $0x138] sm:$0xff]
    %v304 = vld [vmem:[#allocation5 + $0x140] sm:$0xff]
    %v305 = vld [vmem:[#allocation5 + $0x148] sm:$0xff]
    %v306 = vld [vmem:[#allocation5 + $0x150] sm:$0xff]
    %v307 = vld [vmem:[#allocation5 + $0x158] sm:$0xff]
    %v308 = vld [vmem:[#allocation5 + $0x160] sm:$0xff]
    %v309 = vld [vmem:[#allocation5 + $0x168] sm:$0xff]
    %v310 = vld [vmem:[#allocation5 + $0x170] sm:$0xff]
    %v311 = vld [vmem:[#allocation5 + $0x178] sm:$0xff]
    %v312 = vld [vmem:[#allocation5 + $0x180] sm:$0xff]
    %v313 = vld [vmem:[#allocation5 + $0x188] sm:$0xff]
    %v314 = vld [vmem:[#allocation5 + $0x190] sm:$0xff]
    %v315 = vld [vmem:[#allocation5 + $0x198] sm:$0xff]
    %v316 = vld [vmem:[#allocation5 + $0x1a0] sm:$0xff]
    %v317 = vld [vmem:[#allocation5 + $0x1a8] sm:$0xff]
    %v318 = vld [vmem:[#allocation5 + $0x1b0] sm:$0xff]
    %v319 = vld [vmem:[#allocation5 + $0x1b8] sm:$0xff]
    %v320 = vld [vmem:[#allocation5 + $0x1c0] sm:$0xff]
    %v321 = vld [vmem:[#allocation5 + $0x1c8] sm:$0xff]
    %v322 = vld [vmem:[#allocation5 + $0x1d0] sm:$0xff]
    %v323 = vld [vmem:[#allocation5 + $0x1d8] sm:$0xff]
    %v324 = vld [vmem:[#allocation5 + $0x1e0] sm:$0xff]
    %v325 = vld [vmem:[#allocation5 + $0x1e8] sm:$0xff]
    %v326 = vld [vmem:[#allocation5 + $0x1f0] sm:$0xff]
    %v327 = vld [vmem:[#allocation5 + $0x1f8] sm:$0xff]
    %v328 = vld [vmem:[#allocation8] sm:$0xff]
    %v329 = vld [vmem:[#allocation8 + $0x8] sm:$0xff]
    %v330 = vld [vmem:[#allocation8 + $0x10] sm:$0xff]
    %v331 = vld [vmem:[#allocation8 + $0x18] sm:$0xff]
    %v332 = vld [vmem:[#allocation8 + $0x20] sm:$0xff]
    %v333 = vld [vmem:[#allocation8 + $0x28] sm:$0xff]
    %v334 = vld [vmem:[#allocation8 + $0x30] sm:$0xff]
    %v335 = vld [vmem:[#allocation8 + $0x38] sm:$0xff]
    %v336 = vld [vmem:[#allocation8 + $0x40] sm:$0xff]
    %v337 = vld [vmem:[#allocation8 + $0x48] sm:$0xff]
    %v338 = vld [vmem:[#allocation8 + $0x50] sm:$0xff]
    %v339 = vld [vmem:[#allocation8 + $0x58] sm:$0xff]
    %v340 = vld [vmem:[#allocation8 + $0x60] sm:$0xff]
    %v341 = vld [vmem:[#allocation8 + $0x68] sm:$0xff]
    %v342 = vld [vmem:[#allocation8 + $0x70] sm:$0xff]
    %v343 = vld [vmem:[#allocation8 + $0x78] sm:$0xff]
    %v344 = vld [vmem:[#allocation8 + $0x80] sm:$0xff]
    %v345 = vld [vmem:[#allocation8 + $0x88] sm:$0xff]
    %v346 = vld [vmem:[#allocation8 + $0x90] sm:$0xff]
    %v347 = vld [vmem:[#allocation8 + $0x98] sm:$0xff]
    %v348 = vld [vmem:[#allocation8 + $0xa0] sm:$0xff]
    %v349 = vld [vmem:[#allocation8 + $0xa8] sm:$0xff]
    %v350 = vld [vmem:[#allocation8 + $0xb0] sm:$0xff]
    %v351 = vld [vmem:[#allocation8 + $0xb8] sm:$0xff]
    %v352 = vld [vmem:[#allocation8 + $0xc0] sm:$0xff]
    %v353 = vld [vmem:[#allocation8 + $0xc8] sm:$0xff]
    %v354 = vld [vmem:[#allocation8 + $0xd0] sm:$0xff]
    %v355 = vld [vmem:[#allocation8 + $0xd8] sm:$0xff]
    %v356 = vld [vmem:[#allocation8 + $0xe0] sm:$0xff]
    %v357 = vld [vmem:[#allocation8 + $0xe8] sm:$0xff]
    %v358 = vld [vmem:[#allocation8 + $0xf0] sm:$0xff]
    %v359 = vld [vmem:[#allocation8 + $0xf8] sm:$0xff]
    %v360 = vld [vmem:[#allocation8 + $0x100] sm:$0xff]
    %v361 = vld [vmem:[#allocation8 + $0x108] sm:$0xff]
    %v362 = vld [vmem:[#allocation8 + $0x110] sm:$0xff]
    %v363 = vld [vmem:[#allocation8 + $0x118] sm:$0xff]
    %v364 = vld [vmem:[#allocation8 + $0x120] sm:$0xff]
    %v365 = vld [vmem:[#allocation8 + $0x128] sm:$0xff]
    %v366 = vld [vmem:[#allocation8 + $0x130] sm:$0xff]
    %v367 = vld [vmem:[#allocation8 + $0x138] sm:$0xff]
    %v368 = vld [vmem:[#allocation8 + $0x140] sm:$0xff]
    %v369 = vld [vmem:[#allocation8 + $0x148] sm:$0xff]
    %v370 = vld [vmem:[#allocation8 + $0x150] sm:$0xff]
    %v371 = vld [vmem:[#allocation8 + $0x158] sm:$0xff]
    %v372 = vld [vmem:[#allocation8 + $0x160] sm:$0xff]
    %v373 = vld [vmem:[#allocation8 + $0x168] sm:$0xff]
    %v374 = vld [vmem:[#allocation8 + $0x170] sm:$0xff]
    %v375 = vld [vmem:[#allocation8 + $0x178] sm:$0xff]
    %v376 = vld [vmem:[#allocation8 + $0x180] sm:$0xff]
    %v377 = vld [vmem:[#allocation8 + $0x188] sm:$0xff]
    %v378 = vld [vmem:[#allocation8 + $0x190] sm:$0xff]
    %v379 = vld [vmem:[#allocation8 + $0x198] sm:$0xff]
    %v380 = vld [vmem:[#allocation8 + $0x1a0] sm:$0xff]
    %v381 = vld [vmem:[#allocation8 + $0x1a8] sm:$0xff]
    %v382 = vld [vmem:[#allocation8 + $0x1b0] sm:$0xff]
    %v383 = vld [vmem:[#allocation8 + $0x1b8] sm:$0xff]
    %v384 = vld [vmem:[#allocation8 + $0x1c0] sm:$0xff]
    %v385 = vld [vmem:[#allocation8 + $0x1c8] sm:$0xff]
    %v386 = vld [vmem:[#allocation8 + $0x1d0] sm:$0xff]
    %v387 = vld [vmem:[#allocation8 + $0x1d8] sm:$0xff]
    %v388 = vld [vmem:[#allocation8 + $0x1e0] sm:$0xff]
    %v389 = vld [vmem:[#allocation8 + $0x1e8] sm:$0xff]
    %v390 = vld [vmem:[#allocation8 + $0x1f0] sm:$0xff]
    %v391 = vld [vmem:[#allocation8 + $0x1f8] sm:$0xff]
    %v392 = vld [vmem:[#allocation10] sm:$0xff]
    %v393 = vld [vmem:[#allocation10 + $0x8] sm:$0xff]
    %v394 = vld [vmem:[#allocation10 + $0x10] sm:$0xff]
    %v395 = vld [vmem:[#allocation10 + $0x18] sm:$0xff]
    %v396 = vld [vmem:[#allocation10 + $0x20] sm:$0xff]
    %v397 = vld [vmem:[#allocation10 + $0x28] sm:$0xff]
    %v398 = vld [vmem:[#allocation10 + $0x30] sm:$0xff]
    %v399 = vld [vmem:[#allocation10 + $0x38] sm:$0xff]
    %v400 = vld [vmem:[#allocation10 + $0x40] sm:$0xff]
    %v401 = vld [vmem:[#allocation10 + $0x48] sm:$0xff]
    %v402 = vld [vmem:[#allocation10 + $0x50] sm:$0xff]
    %v403 = vld [vmem:[#allocation10 + $0x58] sm:$0xff]
    %v404 = vld [vmem:[#allocation10 + $0x60] sm:$0xff]
    %v405 = vld [vmem:[#allocation10 + $0x68] sm:$0xff]
    %v406 = vld [vmem:[#allocation10 + $0x70] sm:$0xff]
    %v407 = vld [vmem:[#allocation10 + $0x78] sm:$0xff]
    %v408 = vld [vmem:[#allocation10 + $0x80] sm:$0xff]
    %v409 = vld [vmem:[#allocation10 + $0x88] sm:$0xff]
    %v410 = vld [vmem:[#allocation10 + $0x90] sm:$0xff]
    %v411 = vld [vmem:[#allocation10 + $0x98] sm:$0xff]
    %v412 = vld [vmem:[#allocation10 + $0xa0] sm:$0xff]
    %v413 = vld [vmem:[#allocation10 + $0xa8] sm:$0xff]
    %v414 = vld [vmem:[#allocation10 + $0xb0] sm:$0xff]
    %v415 = vld [vmem:[#allocation10 + $0xb8] sm:$0xff]
    %v416 = vld [vmem:[#allocation10 + $0xc0] sm:$0xff]
    %v417 = vld [vmem:[#allocation10 + $0xc8] sm:$0xff]
    %v418 = vld [vmem:[#allocation10 + $0xd0] sm:$0xff]
    %v419 = vld [vmem:[#allocation10 + $0xd8] sm:$0xff]
    %v420 = vld [vmem:[#allocation10 + $0xe0] sm:$0xff]
    %v421 = vld [vmem:[#allocation10 + $0xe8] sm:$0xff]
    %v422 = vld [vmem:[#allocation10 + $0xf0] sm:$0xff]
    %v423 = vld [vmem:[#allocation10 + $0xf8] sm:$0xff]
    %v424 = vld [vmem:[#allocation10 + $0x100] sm:$0xff]
    %v425 = vld [vmem:[#allocation10 + $0x108] sm:$0xff]
    %v426 = vld [vmem:[#allocation10 + $0x110] sm:$0xff]
    %v427 = vld [vmem:[#allocation10 + $0x118] sm:$0xff]
    %v428 = vld [vmem:[#allocation10 + $0x120] sm:$0xff]
    %v429 = vld [vmem:[#allocation10 + $0x128] sm:$0xff]
    %v430 = vld [vmem:[#allocation10 + $0x130] sm:$0xff]
    %v431 = vld [vmem:[#allocation10 + $0x138] sm:$0xff]
    %v432 = vld [vmem:[#allocation10 + $0x140] sm:$0xff]
    %v433 = vld [vmem:[#allocation10 + $0x148] sm:$0xff]
    %v434 = vld [vmem:[#allocation10 + $0x150] sm:$0xff]
    %v435 = vld [vmem:[#allocation10 + $0x158] sm:$0xff]
    %v436 = vld [vmem:[#allocation10 + $0x160] sm:$0xff]
    %v437 = vld [vmem:[#allocation10 + $0x168] sm:$0xff]
    %v438 = vld [vmem:[#allocation10 + $0x170] sm:$0xff]
    %v439 = vld [vmem:[#allocation10 + $0x178] sm:$0xff]
    %v440 = vld [vmem:[#allocation10 + $0x180] sm:$0xff]
    %v441 = vld [vmem:[#allocation10 + $0x188] sm:$0xff]
    %v442 = vld [vmem:[#allocation10 + $0x190] sm:$0xff]
    %v443 = vld [vmem:[#allocation10 + $0x198] sm:$0xff]
    %v444 = vld [vmem:[#allocation10 + $0x1a0] sm:$0xff]
    %v445 = vld [vmem:[#allocation10 + $0x1a8] sm:$0xff]
    %v446 = vld [vmem:[#allocation10 + $0x1b0] sm:$0xff]
    %v447 = vld [vmem:[#allocation10 + $0x1b8] sm:$0xff]
    %v448 = vld [vmem:[#allocation10 + $0x1c0] sm:$0xff]
    %v449 = vld [vmem:[#allocation10 + $0x1c8] sm:$0xff]
    %v450 = vld [vmem:[#allocation10 + $0x1d0] sm:$0xff]
    %v451 = vld [vmem:[#allocation10 + $0x1d8] sm:$0xff]
    %v452 = vld [vmem:[#allocation10 + $0x1e0] sm:$0xff]
    %v453 = vld [vmem:[#allocation10 + $0x1e8] sm:$0xff]
    %v454 = vld [vmem:[#allocation10 + $0x1f0] sm:$0xff]
    %v455 = vld [vmem:[#allocation10 + $0x1f8] sm:$0xff]
    %v456 = vld [vmem:[%s6] sm:$0xf]
    %v458 = vlaneseq
    %v459 = vshrl.u32 %v458, 7
    %v460 = vsub.s32 0, %v459
    %v461 = vrot.slane %v456, %v460
    %v462 = vlaneseq
    %v463 = vshrl.u32 %v462, 7
    %v464 = vsub.s32 1, %v463
    %v465 = vrot.slane %v456, %v464
    %v466 = vlaneseq
    %v467 = vshrl.u32 %v466, 7
    %v468 = vsub.s32 2, %v467
    %v469 = vrot.slane %v456, %v468
    %v470 = vlaneseq
    %v471 = vshrl.u32 %v470, 7
    %v472 = vsub.s32 3, %v471
    %v473 = vrot.slane %v456, %v472
    %478 = vmatprep.subr.mxu0 %v453
    %479 = vmatpush1.msra.mxu0 %v452
    %480 = vmatprep.subr.mxu0 %v449
    %481 = vmatpush1.msra.mxu0 %v448
    %482 = vmatprep.subr.mxu0 %v445
    %483 = vmatpush1.msra.mxu0 %v444
    %484 = vmatprep.subr.mxu0 %v441
    %485 = vmatpush1.msra.mxu0 %v440
    %486 = vmatprep.subr.mxu0 %v437
    %487 = vmatpush1.msra.mxu0 %v436
    %488 = vmatprep.subr.mxu0 %v433
    %489 = vmatpush1.msra.mxu0 %v432
    %490 = vmatprep.subr.mxu0 %v429
    %491 = vmatpush1.msra.mxu0 %v428
    %492 = vmatprep.subr.mxu0 %v425
    %493 = vmatpush1.msra.mxu0 %v424
    %494 = vmatprep.subr.mxu0 %v421
    %495 = vmatpush1.msra.mxu0 %v420
    %496 = vmatprep.subr.mxu0 %v417
    %497 = vmatpush1.msra.mxu0 %v416
    %498 = vmatprep.subr.mxu0 %v413
    %499 = vmatpush1.msra.mxu0 %v412
    %500 = vmatprep.subr.mxu0 %v409
    %501 = vmatpush1.msra.mxu0 %v408
    %502 = vmatprep.subr.mxu0 %v405
    %503 = vmatpush1.msra.mxu0 %v404
    %504 = vmatprep.subr.mxu0 %v401
    %505 = vmatpush1.msra.mxu0 %v400
    %506 = vmatprep.subr.mxu0 %v397
    %507 = vmatpush1.msra.mxu0 %v396
    %508 = vmatprep.subr.mxu0 %v393
    %509 = vmatpush1.msra.mxu0 %v392
    %510 = vmatprep.subr.mxu0 0.0
    %511 = vmatpush2.msra.mxu0 0.0
    %512 = vmatprep.subr.mxu0 0.0
    %513 = vmatpush2.msra.mxu0 0.0
    %514 = vmatprep.subr.mxu0 0.0
    %515 = vmatpush2.msra.mxu0 0.0
    %516 = vmatprep.subr.mxu0 0.0
    %517 = vmatpush2.msra.mxu0 0.0
    %518 = vmatprep.subr.mxu0 0.0
    %519 = vmatpush2.msra.mxu0 0.0
    %520 = vmatprep.subr.mxu0 0.0
    %521 = vmatpush2.msra.mxu0 0.0
    %522 = vmatprep.subr.mxu0 0.0
    %523 = vmatpush2.msra.mxu0 0.0
    %524 = vmatprep.subr.mxu0 0.0
    %525 = vmatpush2.msra.mxu0 0.0
    %526 = vmatprep.subr.mxu0 0.0
    %527 = vmatpush2.msra.mxu0 0.0
    %528 = vmatprep.subr.mxu0 0.0
    %529 = vmatpush2.msra.mxu0 0.0
    %530 = vmatprep.subr.mxu0 0.0
    %531 = vmatpush2.msra.mxu0 0.0
    %532 = vmatprep.subr.mxu0 0.0
    %533 = vmatpush2.msra.mxu0 0.0
    %534 = vmatprep.subr.mxu0 0.0
    %535 = vmatpush2.msra.mxu0 0.0
    %536 = vmatprep.subr.mxu0 0.0
    %537 = vmatpush2.msra.mxu0 0.0
    %538 = vmatprep.subr.mxu0 0.0
    %539 = vmatpush2.msra.mxu0 0.0
    %540 = vmatprep.subr.mxu0 0.0
    %541 = vmatpush2.msra.mxu0 0.0
    %542 = vmatprep.mubr.f32.mxu0 0.0
    %543 = vmatmul.mubr.f32.gmra.mxu0 0.0
    %v544 = vpop.f32.mrf.mxu0
    %v545 = vadd.f32 %v461, %v544
    %v546 = vpop.f32.mrf.mxu0
    %v547 = vadd.f32 %v465, %v546
    %548 = vdwg.mxu0
    %549 = vmatprep.subr.mxu0 %v455
    %550 = vmatpush1.msra.mxu0 %v454
    %551 = vmatprep.subr.mxu0 %v451
    %552 = vmatpush1.msra.mxu0 %v450
    %553 = vmatprep.subr.mxu0 %v447
    %554 = vmatpush1.msra.mxu0 %v446
    %555 = vmatprep.subr.mxu0 %v443
    %556 = vmatpush1.msra.mxu0 %v442
    %557 = vmatprep.subr.mxu0 %v439
    %558 = vmatpush1.msra.mxu0 %v438
    %559 = vmatprep.subr.mxu0 %v435
    %560 = vmatpush1.msra.mxu0 %v434
    %561 = vmatprep.subr.mxu0 %v431
    %562 = vmatpush1.msra.mxu0 %v430
    %563 = vmatprep.subr.mxu0 %v427
    %564 = vmatpush1.msra.mxu0 %v426
    %565 = vmatprep.subr.mxu0 %v423
    %566 = vmatpush1.msra.mxu0 %v422
    %567 = vmatprep.subr.mxu0 %v419
    %568 = vmatpush1.msra.mxu0 %v418
    %569 = vmatprep.subr.mxu0 %v415
    %570 = vmatpush1.msra.mxu0 %v414
    %571 = vmatprep.subr.mxu0 %v411
    %572 = vmatpush1.msra.mxu0 %v410
    %573 = vmatprep.subr.mxu0 %v407
    %574 = vmatpush1.msra.mxu0 %v406
    %575 = vmatprep.subr.mxu0 %v403
    %576 = vmatpush1.msra.mxu0 %v402
    %577 = vmatprep.subr.mxu0 %v399
    %578 = vmatpush1.msra.mxu0 %v398
    %579 = vmatprep.subr.mxu0 %v395
    %580 = vmatpush1.msra.mxu0 %v394
    %581 = vmatprep.subr.mxu0 0.0
    %582 = vmatpush2.msra.mxu0 0.0
    %583 = vmatprep.subr.mxu0 0.0
    %584 = vmatpush2.msra.mxu0 0.0
    %585 = vmatprep.subr.mxu0 0.0
    %586 = vmatpush2.msra.mxu0 0.0
    %587 = vmatprep.subr.mxu0 0.0
    %588 = vmatpush2.msra.mxu0 0.0
    %589 = vmatprep.subr.mxu0 0.0
    %590 = vmatpush2.msra.mxu0 0.0
    %591 = vmatprep.subr.mxu0 0.0
    %592 = vmatpush2.msra.mxu0 0.0
    %593 = vmatprep.subr.mxu0 0.0
    %594 = vmatpush2.msra.mxu0 0.0
    %595 = vmatprep.subr.mxu0 0.0
    %596 = vmatpush2.msra.mxu0 0.0
    %597 = vmatprep.subr.mxu0 0.0
    %598 = vmatpush2.msra.mxu0 0.0
    %599 = vmatprep.subr.mxu0 0.0
    %600 = vmatpush2.msra.mxu0 0.0
    %601 = vmatprep.subr.mxu0 0.0
    %602 = vmatpush2.msra.mxu0 0.0
    %603 = vmatprep.subr.mxu0 0.0
    %604 = vmatpush2.msra.mxu0 0.0
    %605 = vmatprep.subr.mxu0 0.0
    %606 = vmatpush2.msra.mxu0 0.0
    %607 = vmatprep.subr.mxu0 0.0
    %608 = vmatpush2.msra.mxu0 0.0
    %609 = vmatprep.subr.mxu0 0.0
    %610 = vmatpush2.msra.mxu0 0.0
    %611 = vmatprep.subr.mxu0 0.0
    %612 = vmatpush2.msra.mxu0 0.0
    %613 = vmatprep.mubr.f32.mxu0 0.0
    %614 = vmatmul.mubr.f32.gmra.mxu0 0.0
    %v615 = vpop.f32.mrf.mxu0
    %v616 = vadd.f32 %v469, %v615
    %v617 = vpop.f32.mrf.mxu0
    %v618 = vadd.f32 %v473, %v617
    %619 = vdwg.mxu0
    %v620 = vld [vmem:[#allocation2] sm:$0xff]
    %v621 = vld [vmem:[#allocation2 + $0x8] sm:$0xff]
    %v622 = vld [vmem:[#allocation2 + $0x10] sm:$0xff]
    %v623 = vld [vmem:[#allocation2 + $0x18] sm:$0xff]
    %624 = vmatprep.subr.mxu0 %v325
    %625 = vmatpush1.msra.mxu0 %v324
    %626 = vmatprep.subr.mxu0 %v321
    %627 = vmatpush1.msra.mxu0 %v320
    %628 = vmatprep.subr.mxu0 %v317
    %629 = vmatpush1.msra.mxu0 %v316
    %630 = vmatprep.subr.mxu0 %v313
    %631 = vmatpush1.msra.mxu0 %v312
    %632 = vmatprep.subr.mxu0 %v309
    %633 = vmatpush1.msra.mxu0 %v308
    %634 = vmatprep.subr.mxu0 %v305
    %635 = vmatpush1.msra.mxu0 %v304
    %636 = vmatprep.subr.mxu0 %v301
    %637 = vmatpush1.msra.mxu0 %v300
    %638 = vmatprep.subr.mxu0 %v297
    %639 = vmatpush1.msra.mxu0 %v296
    %640 = vmatprep.subr.mxu0 %v293
    %641 = vmatpush1.msra.mxu0 %v292
    %642 = vmatprep.subr.mxu0 %v289
    %643 = vmatpush1.msra.mxu0 %v288
    %644 = vmatprep.subr.mxu0 %v285
    %645 = vmatpush1.msra.mxu0 %v284
    %646 = vmatprep.subr.mxu0 %v281
    %647 = vmatpush1.msra.mxu0 %v280
    %648 = vmatprep.subr.mxu0 %v277
    %649 = vmatpush1.msra.mxu0 %v276
    %650 = vmatprep.subr.mxu0 %v273
    %651 = vmatpush1.msra.mxu0 %v272
    %652 = vmatprep.subr.mxu0 %v269
    %653 = vmatpush1.msra.mxu0 %v268
    %654 = vmatprep.subr.mxu0 %v265
    %655 = vmatpush1.msra.mxu0 %v264
    %656 = vmatprep.subr.mxu0 0.0
    %657 = vmatpush2.msra.mxu0 0.0
    %658 = vmatprep.subr.mxu0 0.0
    %659 = vmatpush2.msra.mxu0 0.0
    %660 = vmatprep.subr.mxu0 0.0
    %661 = vmatpush2.msra.mxu0 0.0
    %662 = vmatprep.subr.mxu0 0.0
    %663 = vmatpush2.msra.mxu0 0.0
    %664 = vmatprep.subr.mxu0 0.0
    %665 = vmatpush2.msra.mxu0 0.0
    %666 = vmatprep.subr.mxu0 0.0
    %667 = vmatpush2.msra.mxu0 0.0
    %668 = vmatprep.subr.mxu0 0.0
    %669 = vmatpush2.msra.mxu0 0.0
    %670 = vmatprep.subr.mxu0 0.0
    %671 = vmatpush2.msra.mxu0 0.0
    %672 = vmatprep.subr.mxu0 0.0
    %673 = vmatpush2.msra.mxu0 0.0
    %674 = vmatprep.subr.mxu0 0.0
    %675 = vmatpush2.msra.mxu0 0.0
    %676 = vmatprep.subr.mxu0 0.0
    %677 = vmatpush2.msra.mxu0 0.0
    %678 = vmatprep.subr.mxu0 0.0
    %679 = vmatpush2.msra.mxu0 0.0
    %680 = vmatprep.subr.mxu0 0.0
    %681 = vmatpush2.msra.mxu0 0.0
    %682 = vmatprep.subr.mxu0 0.0
    %683 = vmatpush2.msra.mxu0 0.0
    %684 = vmatprep.subr.mxu0 0.0
    %685 = vmatpush2.msra.mxu0 0.0
    %686 = vmatprep.subr.mxu0 0.0
    %687 = vmatpush2.msra.mxu0 0.0
    %688 = vmatprep.mubr.f32.mxu0 0.0
    %689 = vmatmul.mubr.f32.gmra.mxu0 0.0
    %v690 = vpop.f32.mrf.mxu0
    %v691 = vadd.f32 0.0, %v690
    %v692 = vpop.f32.mrf.mxu0
    %v693 = vadd.f32 0.0, %v692
    %694 = vdwg.mxu0
    %695 = vmatprep.subr.mxu0 %v327
    %696 = vmatpush1.msra.mxu0 %v326
    %697 = vmatprep.subr.mxu0 %v323
    %698 = vmatpush1.msra.mxu0 %v322
    %699 = vmatprep.subr.mxu0 %v319
    %700 = vmatpush1.msra.mxu0 %v318
    %701 = vmatprep.subr.mxu0 %v315
    %702 = vmatpush1.msra.mxu0 %v314
    %703 = vmatprep.subr.mxu0 %v311
    %704 = vmatpush1.msra.mxu0 %v310
    %705 = vmatprep.subr.mxu0 %v307
    %706 = vmatpush1.msra.mxu0 %v306
    %707 = vmatprep.subr.mxu0 %v303
    %708 = vmatpush1.msra.mxu0 %v302
    %709 = vmatprep.subr.mxu0 %v299
    %710 = vmatpush1.msra.mxu0 %v298
    %711 = vmatprep.subr.mxu0 %v295
    %712 = vmatpush1.msra.mxu0 %v294
    %713 = vmatprep.subr.mxu0 %v291
    %714 = vmatpush1.msra.mxu0 %v290
    %715 = vmatprep.subr.mxu0 %v287
    %716 = vmatpush1.msra.mxu0 %v286
    %717 = vmatprep.subr.mxu0 %v283
    %718 = vmatpush1.msra.mxu0 %v282
    %719 = vmatprep.subr.mxu0 %v279
    %720 = vmatpush1.msra.mxu0 %v278
    %721 = vmatprep.subr.mxu0 %v275
    %722 = vmatpush1.msra.mxu0 %v274
    %723 = vmatprep.subr.mxu0 %v271
    %724 = vmatpush1.msra.mxu0 %v270
    %725 = vmatprep.subr.mxu0 %v267
    %726 = vmatpush1.msra.mxu0 %v266
    %727 = vmatprep.subr.mxu0 0.0
    %728 = vmatpush2.msra.mxu0 0.0
    %729 = vmatprep.subr.mxu0 0.0
    %730 = vmatpush2.msra.mxu0 0.0
    %731 = vmatprep.subr.mxu0 0.0
    %732 = vmatpush2.msra.mxu0 0.0
    %733 = vmatprep.subr.mxu0 0.0
    %734 = vmatpush2.msra.mxu0 0.0
    %735 = vmatprep.subr.mxu0 0.0
    %736 = vmatpush2.msra.mxu0 0.0
    %737 = vmatprep.subr.mxu0 0.0
    %738 = vmatpush2.msra.mxu0 0.0
    %739 = vmatprep.subr.mxu0 0.0
    %740 = vmatpush2.msra.mxu0 0.0
    %741 = vmatprep.subr.mxu0 0.0
    %742 = vmatpush2.msra.mxu0 0.0
    %743 = vmatprep.subr.mxu0 0.0
    %744 = vmatpush2.msra.mxu0 0.0
    %745 = vmatprep.subr.mxu0 0.0
    %746 = vmatpush2.msra.mxu0 0.0
    %747 = vmatprep.subr.mxu0 0.0
    %748 = vmatpush2.msra.mxu0 0.0
    %749 = vmatprep.subr.mxu0 0.0
    %750 = vmatpush2.msra.mxu0 0.0
    %751 = vmatprep.subr.mxu0 0.0
    %752 = vmatpush2.msra.mxu0 0.0
    %753 = vmatprep.subr.mxu0 0.0
    %754 = vmatpush2.msra.mxu0 0.0
    %755 = vmatprep.subr.mxu0 0.0
    %756 = vmatpush2.msra.mxu0 0.0
    %757 = vmatprep.subr.mxu0 0.0
    %758 = vmatpush2.msra.mxu0 0.0
    %759 = vmatprep.mubr.f32.mxu0 0.0
    %760 = vmatmul.mubr.f32.gmra.mxu0 0.0
    %v761 = vpop.f32.mrf.mxu0
    %v762 = vadd.f32 0.0, %v761
    %v763 = vpop.f32.mrf.mxu0
    %v764 = vadd.f32 0.0, %v763
    %765 = vdwg.mxu0
    %v766 = vadd.f32 %v620, %v691
    %v767 = vadd.f32 %v621, %v693
    %v768 = vadd.f32 %v622, %v762
    %v769 = vadd.f32 %v623, %v764
    %v770 = vmul.f32 %v766, 0.5
    %v771 = vmul.f32 %v767, 0.5
    %v772 = vmul.f32 %v768, 0.5
    %v773 = vtanh.pop %v770
    %v774 = vtanh.pop %v771
    %v775 = vtanh.pop %v772
    %v776 = vmul.f32 %v773, 0.5
    %v777 = vmul.f32 %v774, 0.5
    %v778 = vmul.f32 %v775, 0.5
    %v779 = vadd.f32 %v776, 0.5
    %v780 = vadd.f32 %v777, 0.5
    %v781 = vadd.f32 %v778, 0.5
    %v782 = vtanh.pop %v769
    %v783 = vmul.f32 %v780, 0.0
    %v784 = vmul.f32 %v779, %v782
    %v785 = vadd.f32 %v783, %v784
    %v786 = vtanh.pop %v785
    %v787 = vmul.f32 %v781, %v786
    %788 = vmatprep.subr.mxu0 %v389
    %789 = vmatpush1.msra.mxu0 %v388
    %790 = vmatprep.subr.mxu0 %v385
    %791 = vmatpush1.msra.mxu0 %v384
    %792 = vmatprep.subr.mxu0 %v381
    %793 = vmatpush1.msra.mxu0 %v380
    %794 = vmatprep.subr.mxu0 %v377
    %795 = vmatpush1.msra.mxu0 %v376
    %796 = vmatprep.subr.mxu0 %v373
    %797 = vmatpush1.msra.mxu0 %v372
    %798 = vmatprep.subr.mxu0 %v369
    %799 = vmatpush1.msra.mxu0 %v368
    %800 = vmatprep.subr.mxu0 %v365
    %801 = vmatpush1.msra.mxu0 %v364
    %802 = vmatprep.subr.mxu0 %v361
    %803 = vmatpush1.msra.mxu0 %v360
    %804 = vmatprep.subr.mxu0 %v357
    %805 = vmatpush1.msra.mxu0 %v356
    %806 = vmatprep.subr.mxu0 %v353
    %807 = vmatpush1.msra.mxu0 %v352
    %808 = vmatprep.subr.mxu0 %v349
    %809 = vmatpush1.msra.mxu0 %v348
    %810 = vmatprep.subr.mxu0 %v345
    %811 = vmatpush1.msra.mxu0 %v344
    %812 = vmatprep.subr.mxu0 %v341
    %813 = vmatpush1.msra.mxu0 %v340
    %814 = vmatprep.subr.mxu0 %v337
    %815 = vmatpush1.msra.mxu0 %v336
    %816 = vmatprep.subr.mxu0 %v333
    %817 = vmatpush1.msra.mxu0 %v332
    %818 = vmatprep.subr.mxu0 %v329
    %819 = vmatpush1.msra.mxu0 %v328
    %820 = vmatprep.subr.mxu0 0.0
    %821 = vmatpush2.msra.mxu0 0.0
    %822 = vmatprep.subr.mxu0 0.0
    %823 = vmatpush2.msra.mxu0 0.0
    %824 = vmatprep.subr.mxu0 0.0
    %825 = vmatpush2.msra.mxu0 0.0
    %826 = vmatprep.subr.mxu0 0.0
    %827 = vmatpush2.msra.mxu0 0.0
    %828 = vmatprep.subr.mxu0 0.0
    %829 = vmatpush2.msra.mxu0 0.0
    %830 = vmatprep.subr.mxu0 0.0
    %831 = vmatpush2.msra.mxu0 0.0
    %832 = vmatprep.subr.mxu0 0.0
    %833 = vmatpush2.msra.mxu0 0.0
    %834 = vmatprep.subr.mxu0 0.0
    %835 = vmatpush2.msra.mxu0 0.0
    %836 = vmatprep.subr.mxu0 0.0
    %837 = vmatpush2.msra.mxu0 0.0
    %838 = vmatprep.subr.mxu0 0.0
    %839 = vmatpush2.msra.mxu0 0.0
    %840 = vmatprep.subr.mxu0 0.0
    %841 = vmatpush2.msra.mxu0 0.0
    %842 = vmatprep.subr.mxu0 0.0
    %843 = vmatpush2.msra.mxu0 0.0
    %844 = vmatprep.subr.mxu0 0.0
    %845 = vmatpush2.msra.mxu0 0.0
    %846 = vmatprep.subr.mxu0 0.0
    %847 = vmatpush2.msra.mxu0 0.0
    %848 = vmatprep.subr.mxu0 0.0
    %849 = vmatpush2.msra.mxu0 0.0
    %850 = vmatprep.subr.mxu0 0.0
    %851 = vmatpush2.msra.mxu0 0.0
    %852 = vmatprep.mubr.f32.mxu0 0.0
    %853 = vmatmul.mubr.f32.gmra.mxu0 %v787
    %v854 = vpop.f32.mrf.mxu0
    %v855 = vadd.f32 0.0, %v854
    %v856 = vpop.f32.mrf.mxu0
    %v857 = vadd.f32 0.0, %v856
    %858 = vdwg.mxu0
    %859 = vmatprep.subr.mxu0 %v391
    %860 = vmatpush1.msra.mxu0 %v390
    %861 = vmatprep.subr.mxu0 %v387
    %862 = vmatpush1.msra.mxu0 %v386
    %863 = vmatprep.subr.mxu0 %v383
    %864 = vmatpush1.msra.mxu0 %v382
    %865 = vmatprep.subr.mxu0 %v379
    %866 = vmatpush1.msra.mxu0 %v378
    %867 = vmatprep.subr.mxu0 %v375
    %868 = vmatpush1.msra.mxu0 %v374
    %869 = vmatprep.subr.mxu0 %v371
    %870 = vmatpush1.msra.mxu0 %v370
    %871 = vmatprep.subr.mxu0 %v367
    %872 = vmatpush1.msra.mxu0 %v366
    %873 = vmatprep.subr.mxu0 %v363
    %874 = vmatpush1.msra.mxu0 %v362
    %875 = vmatprep.subr.mxu0 %v359
    %876 = vmatpush1.msra.mxu0 %v358
    %877 = vmatprep.subr.mxu0 %v355
    %878 = vmatpush1.msra.mxu0 %v354
    %879 = vmatprep.subr.mxu0 %v351
    %880 = vmatpush1.msra.mxu0 %v350
    %881 = vmatprep.subr.mxu0 %v347
    %882 = vmatpush1.msra.mxu0 %v346
    %883 = vmatprep.subr.mxu0 %v343
    %884 = vmatpush1.msra.mxu0 %v342
    %885 = vmatprep.subr.mxu0 %v339
    %886 = vmatpush1.msra.mxu0 %v338
    %887 = vmatprep.subr.mxu0 %v335
    %888 = vmatpush1.msra.mxu0 %v334
    %889 = vmatprep.subr.mxu0 %v331
    %890 = vmatpush1.msra.mxu0 %v330
    %891 = vmatprep.subr.mxu0 0.0
    %892 = vmatpush2.msra.mxu0 0.0
    %893 = vmatprep.subr.mxu0 0.0
    %894 = vmatpush2.msra.mxu0 0.0
    %895 = vmatprep.subr.mxu0 0.0
    %896 = vmatpush2.msra.mxu0 0.0
    %897 = vmatprep.subr.mxu0 0.0
    %898 = vmatpush2.msra.mxu0 0.0
    %899 = vmatprep.subr.mxu0 0.0
    %900 = vmatpush2.msra.mxu0 0.0
    %901 = vmatprep.subr.mxu0 0.0
    %902 = vmatpush2.msra.mxu0 0.0
    %903 = vmatprep.subr.mxu0 0.0
    %904 = vmatpush2.msra.mxu0 0.0
    %905 = vmatprep.subr.mxu0 0.0
    %906 = vmatpush2.msra.mxu0 0.0
    %907 = vmatprep.subr.mxu0 0.0
    %908 = vmatpush2.msra.mxu0 0.0
    %909 = vmatprep.subr.mxu0 0.0
    %910 = vmatpush2.msra.mxu0 0.0
    %911 = vmatprep.subr.mxu0 0.0
    %912 = vmatpush2.msra.mxu0 0.0
    %913 = vmatprep.subr.mxu0 0.0
    %914 = vmatpush2.msra.mxu0 0.0
    %915 = vmatprep.subr.mxu0 0.0
    %916 = vmatpush2.msra.mxu0 0.0
    %917 = vmatprep.subr.mxu0 0.0
    %918 = vmatpush2.msra.mxu0 0.0
    %919 = vmatprep.subr.mxu0 0.0
    %920 = vmatpush2.msra.mxu0 0.0
    %921 = vmatprep.subr.mxu0 0.0
    %922 = vmatpush2.msra.mxu0 0.0
    %923 = vmatprep.mubr.f32.mxu0 0.0
    %924 = vmatmul.mubr.f32.gmra.mxu0 %v787
    %v925 = vpop.f32.mrf.mxu0
    %v926 = vadd.f32 0.0, %v925
    %v927 = vpop.f32.mrf.mxu0
    %v928 = vadd.f32 0.0, %v927
    %929 = vdwg.mxu0
    %v930 = vadd.f32 %v545, %v855
    %v931 = vadd.f32 %v547, %v857
    %v932 = vadd.f32 %v616, %v926
    %v933 = vadd.f32 %v618, %v928
    %v934 = vmul.f32 %v930, 0.5
    %v935 = vmul.f32 %v931, 0.5
    %v936 = vmul.f32 %v932, 0.5
    %v937 = vtanh.pop %v934
    %v938 = vtanh.pop %v935
    %v939 = vtanh.pop %v936
    %v940 = vmul.f32 %v937, 0.5
    %v941 = vmul.f32 %v938, 0.5
    %v942 = vmul.f32 %v939, 0.5
    %v943 = vadd.f32 %v940, 0.5
    %v944 = vadd.f32 %v941, 0.5
    %v945 = vadd.f32 %v942, 0.5
    %v946 = vtanh.pop %v933
    %v947 = vmul.f32 %v944, 0.0
    %v948 = vmul.f32 %v943, %v946
    %v949 = vadd.f32 %v947, %v948
    %v950 = vtanh.pop %v949
    %v951 = vmul.f32 %v945, %v950
    %952 = vst [vmem:[#allocation3] sm:$0xff] %v951
    %953 = vmatprep.subr.mxu0 %v453
    %954 = vmatpush1.msra.mxu0 %v452
    %955 = vmatprep.subr.mxu0 %v449
    %956 = vmatpush1.msra.mxu0 %v448
    %957 = vmatprep.subr.mxu0 %v445
    %958 = vmatpush1.msra.mxu0 %v444
    %959 = vmatprep.subr.mxu0 %v441
    %960 = vmatpush1.msra.mxu0 %v440
    %961 = vmatprep.subr.mxu0 %v437
    %962 = vmatpush1.msra.mxu0 %v436
    %963 = vmatprep.subr.mxu0 %v433
    %964 = vmatpush1.msra.mxu0 %v432
    %965 = vmatprep.subr.mxu0 %v429
    %966 = vmatpush1.msra.mxu0 %v428
    %967 = vmatprep.subr.mxu0 %v425
    %968 = vmatpush1.msra.mxu0 %v424
    %969 = vmatprep.subr.mxu0 %v421
    %970 = vmatpush1.msra.mxu0 %v420
    %971 = vmatprep.subr.mxu0 %v417
    %972 = vmatpush1.msra.mxu0 %v416
    %973 = vmatprep.subr.mxu0 %v413
    %974 = vmatpush1.msra.mxu0 %v412
    %975 = vmatprep.subr.mxu0 %v409
    %976 = vmatpush1.msra.mxu0 %v408
    %977 = vmatprep.subr.mxu0 %v405
    %978 = vmatpush1.msra.mxu0 %v404
    %979 = vmatprep.subr.mxu0 %v401
    %980 = vmatpush1.msra.mxu0 %v400
    %981 = vmatprep.subr.mxu0 %v397
    %982 = vmatpush1.msra.mxu0 %v396
    %983 = vmatprep.subr.mxu0 %v393
    %984 = vmatpush1.msra.mxu0 %v392
    %985 = vmatprep.subr.mxu0 0.0
    %986 = vmatpush2.msra.mxu0 0.0
    %987 = vmatprep.subr.mxu0 0.0
    %988 = vmatpush2.msra.mxu0 0.0
    %989 = vmatprep.subr.mxu0 0.0
    %990 = vmatpush2.msra.mxu0 0.0
    %991 = vmatprep.subr.mxu0 0.0
    %992 = vmatpush2.msra.mxu0 0.0
    %993 = vmatprep.subr.mxu0 0.0
    %994 = vmatpush2.msra.mxu0 0.0
    %995 = vmatprep.subr.mxu0 0.0
    %996 = vmatpush2.msra.mxu0 0.0
    %997 = vmatprep.subr.mxu0 0.0
    %998 = vmatpush2.msra.mxu0 0.0
    %999 = vmatprep.subr.mxu0 0.0
    %1000 = vmatpush2.msra.mxu0 0.0
    %1001 = vmatprep.subr.mxu0 0.0
    %1002 = vmatpush2.msra.mxu0 0.0
    %1003 = vmatprep.subr.mxu0 0.0
    %1004 = vmatpush2.msra.mxu0 0.0
    %1005 = vmatprep.subr.mxu0 0.0
    %1006 = vmatpush2.msra.mxu0 0.0
    %1007 = vmatprep.subr.mxu0 0.0
    %1008 = vmatpush2.msra.mxu0 0.0
    %1009 = vmatprep.subr.mxu0 0.0
    %1010 = vmatpush2.msra.mxu0 0.0
    %1011 = vmatprep.subr.mxu0 0.0
    %1012 = vmatpush2.msra.mxu0 0.0
    %1013 = vmatprep.subr.mxu0 0.0
    %1014 = vmatpush2.msra.mxu0 0.0
    %1015 = vmatprep.subr.mxu0 0.0
    %1016 = vmatpush2.msra.mxu0 0.0
    %1017 = vmatprep.mubr.f32.mxu0 0.0
    %1018 = vmatmul.mubr.f32.gmra.mxu0 %v951
    %v1019 = vpop.f32.mrf.mxu0
    %v1020 = vadd.f32 %v461, %v1019
    %v1021 = vpop.f32.mrf.mxu0
    %v1022 = vadd.f32 %v465, %v1021
    %1023 = vdwg.mxu0
    %1024 = vmatprep.subr.mxu0 %v455
    %1025 = vmatpush1.msra.mxu0 %v454
    %1026 = vmatprep.subr.mxu0 %v451
    %1027 = vmatpush1.msra.mxu0 %v450
    %1028 = vmatprep.subr.mxu0 %v447
    %1029 = vmatpush1.msra.mxu0 %v446
    %1030 = vmatprep.subr.mxu0 %v443
    %1031 = vmatpush1.msra.mxu0 %v442
    %1032 = vmatprep.subr.mxu0 %v439
    %1033 = vmatpush1.msra.mxu0 %v438
    %1034 = vmatprep.subr.mxu0 %v435
    %1035 = vmatpush1.msra.mxu0 %v434
    %1036 = vmatprep.subr.mxu0 %v431
    %1037 = vmatpush1.msra.mxu0 %v430
    %1038 = vmatprep.subr.mxu0 %v427
    %1039 = vmatpush1.msra.mxu0 %v426
    %1040 = vmatprep.subr.mxu0 %v423
    %1041 = vmatpush1.msra.mxu0 %v422
    %1042 = vmatprep.subr.mxu0 %v419
    %1043 = vmatpush1.msra.mxu0 %v418
    %1044 = vmatprep.subr.mxu0 %v415
    %1045 = vmatpush1.msra.mxu0 %v414
    %1046 = vmatprep.subr.mxu0 %v411
    %1047 = vmatpush1.msra.mxu0 %v410
    %1048 = vmatprep.subr.mxu0 %v407
    %1049 = vmatpush1.msra.mxu0 %v406
    %1050 = vmatprep.subr.mxu0 %v403
    %1051 = vmatpush1.msra.mxu0 %v402
    %1052 = vmatprep.subr.mxu0 %v399
    %1053 = vmatpush1.msra.mxu0 %v398
    %1054 = vmatprep.subr.mxu0 %v395
    %1055 = vmatpush1.msra.mxu0 %v394
    %1056 = vmatprep.subr.mxu0 0.0
    %1057 = vmatpush2.msra.mxu0 0.0
    %1058 = vmatprep.subr.mxu0 0.0
    %1059 = vmatpush2.msra.mxu0 0.0
    %1060 = vmatprep.subr.mxu0 0.0
    %1061 = vmatpush2.msra.mxu0 0.0
    %1062 = vmatprep.subr.mxu0 0.0
    %1063 = vmatpush2.msra.mxu0 0.0
    %1064 = vmatprep.subr.mxu0 0.0
    %1065 = vmatpush2.msra.mxu0 0.0
    %1066 = vmatprep.subr.mxu0 0.0
    %1067 = vmatpush2.msra.mxu0 0.0
    %1068 = vmatprep.subr.mxu0 0.0
    %1069 = vmatpush2.msra.mxu0 0.0
    %1070 = vmatprep.subr.mxu0 0.0
    %1071 = vmatpush2.msra.mxu0 0.0
    %1072 = vmatprep.subr.mxu0 0.0
    %1073 = vmatpush2.msra.mxu0 0.0
    %1074 = vmatprep.subr.mxu0 0.0
    %1075 = vmatpush2.msra.mxu0 0.0
    %1076 = vmatprep.subr.mxu0 0.0
    %1077 = vmatpush2.msra.mxu0 0.0
    %1078 = vmatprep.subr.mxu0 0.0
    %1079 = vmatpush2.msra.mxu0 0.0
    %1080 = vmatprep.subr.mxu0 0.0
    %1081 = vmatpush2.msra.mxu0 0.0
    %1082 = vmatprep.subr.mxu0 0.0
    %1083 = vmatpush2.msra.mxu0 0.0
    %1084 = vmatprep.subr.mxu0 0.0
    %1085 = vmatpush2.msra.mxu0 0.0
    %1086 = vmatprep.subr.mxu0 0.0
    %1087 = vmatpush2.msra.mxu0 0.0
    %1088 = vmatprep.mubr.f32.mxu0 0.0
    %1089 = vmatmul.mubr.f32.gmra.mxu0 %v951
    %v1090 = vpop.f32.mrf.mxu0
    %v1091 = vadd.f32 %v469, %v1090
    %v1092 = vpop.f32.mrf.mxu0
    %v1093 = vadd.f32 %v473, %v1092
    %1094 = vdwg.mxu0
    %s1095 = scalar_lea.vmem [#allocation2], 32
    %v1096 = vld [vmem:[%s1095] sm:$0xff]
    %v1097 = vld [vmem:[%s1095 + $0x8] sm:$0xff]
    %v1098 = vld [vmem:[%s1095 + $0x10] sm:$0xff]
    %v1099 = vld [vmem:[%s1095 + $0x18] sm:$0xff]
    %1100 = vmatprep.subr.mxu0 %v325
    %1101 = vmatpush1.msra.mxu0 %v324
    %1102 = vmatprep.subr.mxu0 %v321
    %1103 = vmatpush1.msra.mxu0 %v320
    %1104 = vmatprep.subr.mxu0 %v317
    %1105 = vmatpush1.msra.mxu0 %v316
    %1106 = vmatprep.subr.mxu0 %v313
    %1107 = vmatpush1.msra.mxu0 %v312
    %1108 = vmatprep.subr.mxu0 %v309
    %1109 = vmatpush1.msra.mxu0 %v308
    %1110 = vmatprep.subr.mxu0 %v305
    %1111 = vmatpush1.msra.mxu0 %v304
    %1112 = vmatprep.subr.mxu0 %v301
    %1113 = vmatpush1.msra.mxu0 %v300
    %1114 = vmatprep.subr.mxu0 %v297
    %1115 = vmatpush1.msra.mxu0 %v296
    %1116 = vmatprep.subr.mxu0 %v293
    %1117 = vmatpush1.msra.mxu0 %v292
    %1118 = vmatprep.subr.mxu0 %v289
    %1119 = vmatpush1.msra.mxu0 %v288
    %1120 = vmatprep.subr.mxu0 %v285
    %1121 = vmatpush1.msra.mxu0 %v284
    %1122 = vmatprep.subr.mxu0 %v281
    %1123 = vmatpush1.msra.mxu0 %v280
    %1124 = vmatprep.subr.mxu0 %v277
    %1125 = vmatpush1.msra.mxu0 %v276
    %1126 = vmatprep.subr.mxu0 %v273
    %1127 = vmatpush1.msra.mxu0 %v272
    %1128 = vmatprep.subr.mxu0 %v269
    %1129 = vmatpush1.msra.mxu0 %v268
    %1130 = vmatprep.subr.mxu0 %v265
    %1131 = vmatpush1.msra.mxu0 %v264
    %1132 = vmatprep.subr.mxu0 0.0
    %1133 = vmatpush2.msra.mxu0 0.0
    %1134 = vmatprep.subr.mxu0 0.0
    %1135 = vmatpush2.msra.mxu0 0.0
    %1136 = vmatprep.subr.mxu0 0.0
    %1137 = vmatpush2.msra.mxu0 0.0
    %1138 = vmatprep.subr.mxu0 0.0
    %1139 = vmatpush2.msra.mxu0 0.0
    %1140 = vmatprep.subr.mxu0 0.0
    %1141 = vmatpush2.msra.mxu0 0.0
    %1142 = vmatprep.subr.mxu0 0.0
    %1143 = vmatpush2.msra.mxu0 0.0
    %1144 = vmatprep.subr.mxu0 0.0
    %1145 = vmatpush2.msra.mxu0 0.0
    %1146 = vmatprep.subr.mxu0 0.0
    %1147 = vmatpush2.msra.mxu0 0.0
    %1148 = vmatprep.subr.mxu0 0.0
    %1149 = vmatpush2.msra.mxu0 0.0
    %1150 = vmatprep.subr.mxu0 0.0
    %1151 = vmatpush2.msra.mxu0 0.0
    %1152 = vmatprep.subr.mxu0 0.0
    %1153 = vmatpush2.msra.mxu0 0.0
    %1154 = vmatprep.subr.mxu0 0.0
    %1155 = vmatpush2.msra.mxu0 0.0
    %1156 = vmatprep.subr.mxu0 0.0
    %1157 = vmatpush2.msra.mxu0 0.0
    %1158 = vmatprep.subr.mxu0 0.0
    %1159 = vmatpush2.msra.mxu0 0.0
    %1160 = vmatprep.subr.mxu0 0.0
    %1161 = vmatpush2.msra.mxu0 0.0
    %1162 = vmatprep.subr.mxu0 0.0
    %1163 = vmatpush2.msra.mxu0 0.0
    %1164 = vmatprep.mubr.f32.mxu0 0.0
    %1165 = vmatmul.mubr.f32.gmra.mxu0 %v787
    %v1166 = vpop.f32.mrf.mxu0
    %v1167 = vadd.f32 0.0, %v1166
    %v1168 = vpop.f32.mrf.mxu0
    %v1169 = vadd.f32 0.0, %v1168
    %1170 = vdwg.mxu0
    %1171 = vmatprep.subr.mxu0 %v327
    %1172 = vmatpush1.msra.mxu0 %v326
    %1173 = vmatprep.subr.mxu0 %v323
    %1174 = vmatpush1.msra.mxu0 %v322
    %1175 = vmatprep.subr.mxu0 %v319
    %1176 = vmatpush1.msra.mxu0 %v318
    %1177 = vmatprep.subr.mxu0 %v315
    %1178 = vmatpush1.msra.mxu0 %v314
    %1179 = vmatprep.subr.mxu0 %v311
    %1180 = vmatpush1.msra.mxu0 %v310
    %1181 = vmatprep.subr.mxu0 %v307
    %1182 = vmatpush1.msra.mxu0 %v306
    %1183 = vmatprep.subr.mxu0 %v303
    %1184 = vmatpush1.msra.mxu0 %v302
    %1185 = vmatprep.subr.mxu0 %v299
    %1186 = vmatpush1.msra.mxu0 %v298
    %1187 = vmatprep.subr.mxu0 %v295
    %1188 = vmatpush1.msra.mxu0 %v294
    %1189 = vmatprep.subr.mxu0 %v291
    %1190 = vmatpush1.msra.mxu0 %v290
    %1191 = vmatprep.subr.mxu0 %v287
    %1192 = vmatpush1.msra.mxu0 %v286
    %1193 = vmatprep.subr.mxu0 %v283
    %1194 = vmatpush1.msra.mxu0 %v282
    %1195 = vmatprep.subr.mxu0 %v279
    %1196 = vmatpush1.msra.mxu0 %v278
    %1197 = vmatprep.subr.mxu0 %v275
    %1198 = vmatpush1.msra.mxu0 %v274
    %1199 = vmatprep.subr.mxu0 %v271
    %1200 = vmatpush1.msra.mxu0 %v270
    %1201 = vmatprep.subr.mxu0 %v267
    %1202 = vmatpush1.msra.mxu0 %v266
    %1203 = vmatprep.subr.mxu0 0.0
    %1204 = vmatpush2.msra.mxu0 0.0
    %1205 = vmatprep.subr.mxu0 0.0
    %1206 = vmatpush2.msra.mxu0 0.0
    %1207 = vmatprep.subr.mxu0 0.0
    %1208 = vmatpush2.msra.mxu0 0.0
    %1209 = vmatprep.subr.mxu0 0.0
    %1210 = vmatpush2.msra.mxu0 0.0
    %1211 = vmatprep.subr.mxu0 0.0
    %1212 = vmatpush2.msra.mxu0 0.0
    %1213 = vmatprep.subr.mxu0 0.0
    %1214 = vmatpush2.msra.mxu0 0.0
    %1215 = vmatprep.subr.mxu0 0.0
    %1216 = vmatpush2.msra.mxu0 0.0
    %1217 = vmatprep.subr.mxu0 0.0
    %1218 = vmatpush2.msra.mxu0 0.0
    %1219 = vmatprep.subr.mxu0 0.0
    %1220 = vmatpush2.msra.mxu0 0.0
    %1221 = vmatprep.subr.mxu0 0.0
    %1222 = vmatpush2.msra.mxu0 0.0
    %1223 = vmatprep.subr.mxu0 0.0
    %1224 = vmatpush2.msra.mxu0 0.0
    %1225 = vmatprep.subr.mxu0 0.0
    %1226 = vmatpush2.msra.mxu0 0.0
    %1227 = vmatprep.subr.mxu0 0.0
    %1228 = vmatpush2.msra.mxu0 0.0
    %1229 = vmatprep.subr.mxu0 0.0
    %1230 = vmatpush2.msra.mxu0 0.0
    %1231 = vmatprep.subr.mxu0 0.0
    %1232 = vmatpush2.msra.mxu0 0.0
    %1233 = vmatprep.subr.mxu0 0.0
    %1234 = vmatpush2.msra.mxu0 0.0
    %1235 = vmatprep.mubr.f32.mxu0 0.0
    %1236 = vmatmul.mubr.f32.gmra.mxu0 %v787
    %v1237 = vpop.f32.mrf.mxu0
    %v1238 = vadd.f32 0.0, %v1237
    %v1239 = vpop.f32.mrf.mxu0
    %v1240 = vadd.f32 0.0, %v1239
    %1241 = vdwg.mxu0
    %v1242 = vadd.f32 %v1096, %v1167
    %v1243 = vadd.f32 %v1097, %v1169
    %v1244 = vadd.f32 %v1098, %v1238
    %v1245 = vadd.f32 %v1099, %v1240
    %v1246 = vmul.f32 %v1242, 0.5
    %v1247 = vmul.f32 %v1243, 0.5
    %v1248 = vmul.f32 %v1244, 0.5
    %v1249 = vtanh.pop %v1246
    %v1250 = vtanh.pop %v1247
    %v1251 = vtanh.pop %v1248
    %v1252 = vmul.f32 %v1249, 0.5
    %v1253 = vmul.f32 %v1250, 0.5
    %v1254 = vmul.f32 %v1251, 0.5
    %v1255 = vadd.f32 %v1252, 0.5
    %v1256 = vadd.f32 %v1253, 0.5
    %v1257 = vadd.f32 %v1254, 0.5
    %v1258 = vtanh.pop %v1245
    %v1259 = vmul.f32 %v1256, %v785
    %v1260 = vmul.f32 %v1255, %v1258
    %v1261 = vadd.f32 %v1259, %v1260
    %v1262 = vtanh.pop %v1261
    %v1263 = vmul.f32 %v1257, %v1262
    %1264 = vmatprep.subr.mxu0 %v389
    %1265 = vmatpush1.msra.mxu0 %v388
    %1266 = vmatprep.subr.mxu0 %v385
    %1267 = vmatpush1.msra.mxu0 %v384
    %1268 = vmatprep.subr.mxu0 %v381
    %1269 = vmatpush1.msra.mxu0 %v380
    %1270 = vmatprep.subr.mxu0 %v377
    %1271 = vmatpush1.msra.mxu0 %v376
    %1272 = vmatprep.subr.mxu0 %v373
    %1273 = vmatpush1.msra.mxu0 %v372
    %1274 = vmatprep.subr.mxu0 %v369
    %1275 = vmatpush1.msra.mxu0 %v368
    %1276 = vmatprep.subr.mxu0 %v365
    %1277 = vmatpush1.msra.mxu0 %v364
    %1278 = vmatprep.subr.mxu0 %v361
    %1279 = vmatpush1.msra.mxu0 %v360
    %1280 = vmatprep.subr.mxu0 %v357
    %1281 = vmatpush1.msra.mxu0 %v356
    %1282 = vmatprep.subr.mxu0 %v353
    %1283 = vmatpush1.msra.mxu0 %v352
    %1284 = vmatprep.subr.mxu0 %v349
    %1285 = vmatpush1.msra.mxu0 %v348
    %1286 = vmatprep.subr.mxu0 %v345
    %1287 = vmatpush1.msra.mxu0 %v344
    %1288 = vmatprep.subr.mxu0 %v341
    %1289 = vmatpush1.msra.mxu0 %v340
    %1290 = vmatprep.subr.mxu0 %v337
    %1291 = vmatpush1.msra.mxu0 %v336
    %1292 = vmatprep.subr.mxu0 %v333
    %1293 = vmatpush1.msra.mxu0 %v332
    %1294 = vmatprep.subr.mxu0 %v329
    %1295 = vmatpush1.msra.mxu0 %v328
    %1296 = vmatprep.subr.mxu0 0.0
    %1297 = vmatpush2.msra.mxu0 0.0
    %1298 = vmatprep.subr.mxu0 0.0
    %1299 = vmatpush2.msra.mxu0 0.0
    %1300 = vmatprep.subr.mxu0 0.0
    %1301 = vmatpush2.msra.mxu0 0.0
    %1302 = vmatprep.subr.mxu0 0.0
    %1303 = vmatpush2.msra.mxu0 0.0
    %1304 = vmatprep.subr.mxu0 0.0
    %1305 = vmatpush2.msra.mxu0 0.0
    %1306 = vmatprep.subr.mxu0 0.0
    %1307 = vmatpush2.msra.mxu0 0.0
    %1308 = vmatprep.subr.mxu0 0.0
    %1309 = vmatpush2.msra.mxu0 0.0
    %1310 = vmatprep.subr.mxu0 0.0
    %1311 = vmatpush2.msra.mxu0 0.0
    %1312 = vmatprep.subr.mxu0 0.0
    %1313 = vmatpush2.msra.mxu0 0.0
    %1314 = vmatprep.subr.mxu0 0.0
    %1315 = vmatpush2.msra.mxu0 0.0
    %1316 = vmatprep.subr.mxu0 0.0
    %1317 = vmatpush2.msra.mxu0 0.0
    %1318 = vmatprep.subr.mxu0 0.0
    %1319 = vmatpush2.msra.mxu0 0.0
    %1320 = vmatprep.subr.mxu0 0.0
    %1321 = vmatpush2.msra.mxu0 0.0
    %1322 = vmatprep.subr.mxu0 0.0
    %1323 = vmatpush2.msra.mxu0 0.0
    %1324 = vmatprep.subr.mxu0 0.0
    %1325 = vmatpush2.msra.mxu0 0.0
    %1326 = vmatprep.subr.mxu0 0.0
    %1327 = vmatpush2.msra.mxu0 0.0
    %1328 = vmatprep.mubr.f32.mxu0 0.0
    %1329 = vmatmul.mubr.f32.gmra.mxu0 %v1263
    %v1330 = vpop.f32.mrf.mxu0
    %v1331 = vadd.f32 0.0, %v1330
    %v1332 = vpop.f32.mrf.mxu0
    %v1333 = vadd.f32 0.0, %v1332
    %1334 = vdwg.mxu0
    %1335 = vmatprep.subr.mxu0 %v391
    %1336 = vmatpush1.msra.mxu0 %v390
    %1337 = vmatprep.subr.mxu0 %v387
    %1338 = vmatpush1.msra.mxu0 %v386
    %1339 = vmatprep.subr.mxu0 %v383
    %1340 = vmatpush1.msra.mxu0 %v382
    %1341 = vmatprep.subr.mxu0 %v379
    %1342 = vmatpush1.msra.mxu0 %v378
    %1343 = vmatprep.subr.mxu0 %v375
    %1344 = vmatpush1.msra.mxu0 %v374
    %1345 = vmatprep.subr.mxu0 %v371
    %1346 = vmatpush1.msra.mxu0 %v370
    %1347 = vmatprep.subr.mxu0 %v367
    %1348 = vmatpush1.msra.mxu0 %v366
    %1349 = vmatprep.subr.mxu0 %v363
    %1350 = vmatpush1.msra.mxu0 %v362
    %1351 = vmatprep.subr.mxu0 %v359
    %1352 = vmatpush1.msra.mxu0 %v358
    %1353 = vmatprep.subr.mxu0 %v355
    %1354 = vmatpush1.msra.mxu0 %v354
    %1355 = vmatprep.subr.mxu0 %v351
    %1356 = vmatpush1.msra.mxu0 %v350
    %1357 = vmatprep.subr.mxu0 %v347
    %1358 = vmatpush1.msra.mxu0 %v346
    %1359 = vmatprep.subr.mxu0 %v343
    %1360 = vmatpush1.msra.mxu0 %v342
    %1361 = vmatprep.subr.mxu0 %v339
    %1362 = vmatpush1.msra.mxu0 %v338
    %1363 = vmatprep.subr.mxu0 %v335
    %1364 = vmatpush1.msra.mxu0 %v334
    %1365 = vmatprep.subr.mxu0 %v331
    %1366 = vmatpush1.msra.mxu0 %v330
    %1367 = vmatprep.subr.mxu0 0.0
    %1368 = vmatpush2.msra.mxu0 0.0
    %1369 = vmatprep.subr.mxu0 0.0
    %1370 = vmatpush2.msra.mxu0 0.0
    %1371 = vmatprep.subr.mxu0 0.0
    %1372 = vmatpush2.msra.mxu0 0.0
    %1373 = vmatprep.subr.mxu0 0.0
    %1374 = vmatpush2.msra.mxu0 0.0
    %1375 = vmatprep.subr.mxu0 0.0
    %1376 = vmatpush2.msra.mxu0 0.0
    %1377 = vmatprep.subr.mxu0 0.0
    %1378 = vmatpush2.msra.mxu0 0.0
    %1379 = vmatprep.subr.mxu0 0.0
    %1380 = vmatpush2.msra.mxu0 0.0
    %1381 = vmatprep.subr.mxu0 0.0
    %1382 = vmatpush2.msra.mxu0 0.0
    %1383 = vmatprep.subr.mxu0 0.0
    %1384 = vmatpush2.msra.mxu0 0.0
    %1385 = vmatprep.subr.mxu0 0.0
    %1386 = vmatpush2.msra.mxu0 0.0
    %1387 = vmatprep.subr.mxu0 0.0
    %1388 = vmatpush2.msra.mxu0 0.0
    %1389 = vmatprep.subr.mxu0 0.0
    %1390 = vmatpush2.msra.mxu0 0.0
    %1391 = vmatprep.subr.mxu0 0.0
    %1392 = vmatpush2.msra.mxu0 0.0
    %1393 = vmatprep.subr.mxu0 0.0
    %1394 = vmatpush2.msra.mxu0 0.0
    %1395 = vmatprep.subr.mxu0 0.0
    %1396 = vmatpush2.msra.mxu0 0.0
    %1397 = vmatprep.subr.mxu0 0.0
    %1398 = vmatpush2.msra.mxu0 0.0
    %1399 = vmatprep.mubr.f32.mxu0 0.0
    %1400 = vmatmul.mubr.f32.gmra.mxu0 %v1263
    %v1401 = vpop.f32.mrf.mxu0
    %v1402 = vadd.f32 0.0, %v1401
    %v1403 = vpop.f32.mrf.mxu0
    %v1404 = vadd.f32 0.0, %v1403
    %1405 = vdwg.mxu0
    %v1406 = vadd.f32 %v1020, %v1331
    %v1407 = vadd.f32 %v1022, %v1333
    %v1408 = vadd.f32 %v1091, %v1402
    %v1409 = vadd.f32 %v1093, %v1404
    %v1410 = vmul.f32 %v1406, 0.5
    %v1411 = vmul.f32 %v1407, 0.5
    %v1412 = vmul.f32 %v1408, 0.5
    %v1413 = vtanh.pop %v1410
    %v1414 = vtanh.pop %v1411
    %v1415 = vtanh.pop %v1412
    %v1416 = vmul.f32 %v1413, 0.5
    %v1417 = vmul.f32 %v1414, 0.5
    %v1418 = vmul.f32 %v1415, 0.5
    %v1419 = vadd.f32 %v1416, 0.5
    %v1420 = vadd.f32 %v1417, 0.5
    %v1421 = vadd.f32 %v1418, 0.5
    %v1422 = vtanh.pop %v1409
    %v1423 = vmul.f32 %v1420, %v949
    %v1424 = vmul.f32 %v1419, %v1422
    %v1425 = vadd.f32 %v1423, %v1424
    %v1426 = vtanh.pop %v1425
    %v1427 = vmul.f32 %v1421, %v1426
    %s1428 = scalar_lea.vmem [#allocation3], 8
    %1429 = vst [vmem:[%s1428] sm:$0xff] %v1427
    %1430 = vmatprep.subr.mxu0 %v453
    %1431 = vmatpush1.msra.mxu0 %v452
    %1432 = vmatprep.subr.mxu0 %v449
    %1433 = vmatpush1.msra.mxu0 %v448
    %1434 = vmatprep.subr.mxu0 %v445
    %1435 = vmatpush1.msra.mxu0 %v444
    %1436 = vmatprep.subr.mxu0 %v441
    %1437 = vmatpush1.msra.mxu0 %v440
    %1438 = vmatprep.subr.mxu0 %v437
    %1439 = vmatpush1.msra.mxu0 %v436
    %1440 = vmatprep.subr.mxu0 %v433
    %1441 = vmatpush1.msra.mxu0 %v432
    %1442 = vmatprep.subr.mxu0 %v429
    %1443 = vmatpush1.msra.mxu0 %v428
    %1444 = vmatprep.subr.mxu0 %v425
    %1445 = vmatpush1.msra.mxu0 %v424
    %1446 = vmatprep.subr.mxu0 %v421
    %1447 = vmatpush1.msra.mxu0 %v420
    %1448 = vmatprep.subr.mxu0 %v417
    %1449 = vmatpush1.msra.mxu0 %v416
    %1450 = vmatprep.subr.mxu0 %v413
    %1451 = vmatpush1.msra.mxu0 %v412
    %1452 = vmatprep.subr.mxu0 %v409
    %1453 = vmatpush1.msra.mxu0 %v408
    %1454 = vmatprep.subr.mxu0 %v405
    %1455 = vmatpush1.msra.mxu0 %v404
    %1456 = vmatprep.subr.mxu0 %v401
    %1457 = vmatpush1.msra.mxu0 %v400
    %1458 = vmatprep.subr.mxu0 %v397
    %1459 = vmatpush1.msra.mxu0 %v396
    %1460 = vmatprep.subr.mxu0 %v393
    %1461 = vmatpush1.msra.mxu0 %v392
    %1462 = vmatprep.subr.mxu0 0.0
    %1463 = vmatpush2.msra.mxu0 0.0
    %1464 = vmatprep.subr.mxu0 0.0
    %1465 = vmatpush2.msra.mxu0 0.0
    %1466 = vmatprep.subr.mxu0 0.0
    %1467 = vmatpush2.msra.mxu0 0.0
    %1468 = vmatprep.subr.mxu0 0.0
    %1469 = vmatpush2.msra.mxu0 0.0
    %1470 = vmatprep.subr.mxu0 0.0
    %1471 = vmatpush2.msra.mxu0 0.0
    %1472 = vmatprep.subr.mxu0 0.0
    %1473 = vmatpush2.msra.mxu0 0.0
    %1474 = vmatprep.subr.mxu0 0.0
    %1475 = vmatpush2.msra.mxu0 0.0
    %1476 = vmatprep.subr.mxu0 0.0
    %1477 = vmatpush2.msra.mxu0 0.0
    %1478 = vmatprep.subr.mxu0 0.0
    %1479 = vmatpush2.msra.mxu0 0.0
    %1480 = vmatprep.subr.mxu0 0.0
    %1481 = vmatpush2.msra.mxu0 0.0
    %1482 = vmatprep.subr.mxu0 0.0
    %1483 = vmatpush2.msra.mxu0 0.0
    %1484 = vmatprep.subr.mxu0 0.0
    %1485 = vmatpush2.msra.mxu0 0.0
    %1486 = vmatprep.subr.mxu0 0.0
    %1487 = vmatpush2.msra.mxu0 0.0
    %1488 = vmatprep.subr.mxu0 0.0
    %1489 = vmatpush2.msra.mxu0 0.0
    %1490 = vmatprep.subr.mxu0 0.0
    %1491 = vmatpush2.msra.mxu0 0.0
    %1492 = vmatprep.subr.mxu0 0.0
    %1493 = vmatpush2.msra.mxu0 0.0
    %1494 = vmatprep.mubr.f32.mxu0 0.0
    %1495 = vmatmul.mubr.f32.gmra.mxu0 %v1427
    %v1496 = vpop.f32.mrf.mxu0
    %v1497 = vadd.f32 %v461, %v1496
    %v1498 = vpop.f32.mrf.mxu0
    %v1499 = vadd.f32 %v465, %v1498
    %1500 = vdwg.mxu0
    %1501 = vmatprep.subr.mxu0 %v455
    %1502 = vmatpush1.msra.mxu0 %v454
    %1503 = vmatprep.subr.mxu0 %v451
    %1504 = vmatpush1.msra.mxu0 %v450
    %1505 = vmatprep.subr.mxu0 %v447
    %1506 = vmatpush1.msra.mxu0 %v446
    %1507 = vmatprep.subr.mxu0 %v443
    %1508 = vmatpush1.msra.mxu0 %v442
    %1509 = vmatprep.subr.mxu0 %v439
    %1510 = vmatpush1.msra.mxu0 %v438
    %1511 = vmatprep.subr.mxu0 %v435
    %1512 = vmatpush1.msra.mxu0 %v434
    %1513 = vmatprep.subr.mxu0 %v431
    %1514 = vmatpush1.msra.mxu0 %v430
    %1515 = vmatprep.subr.mxu0 %v427
    %1516 = vmatpush1.msra.mxu0 %v426
    %1517 = vmatprep.subr.mxu0 %v423
    %1518 = vmatpush1.msra.mxu0 %v422
    %1519 = vmatprep.subr.mxu0 %v419
    %1520 = vmatpush1.msra.mxu0 %v418
    %1521 = vmatprep.subr.mxu0 %v415
    %1522 = vmatpush1.msra.mxu0 %v414
    %1523 = vmatprep.subr.mxu0 %v411
    %1524 = vmatpush1.msra.mxu0 %v410
    %1525 = vmatprep.subr.mxu0 %v407
    %1526 = vmatpush1.msra.mxu0 %v406
    %1527 = vmatprep.subr.mxu0 %v403
    %1528 = vmatpush1.msra.mxu0 %v402
    %1529 = vmatprep.subr.mxu0 %v399
    %1530 = vmatpush1.msra.mxu0 %v398
    %1531 = vmatprep.subr.mxu0 %v395
    %1532 = vmatpush1.msra.mxu0 %v394
    %1533 = vmatprep.subr.mxu0 0.0
    %1534 = vmatpush2.msra.mxu0 0.0
    %1535 = vmatprep.subr.mxu0 0.0
    %1536 = vmatpush2.msra.mxu0 0.0
    %1537 = vmatprep.subr.mxu0 0.0
    %1538 = vmatpush2.msra.mxu0 0.0
    %1539 = vmatprep.subr.mxu0 0.0
    %1540 = vmatpush2.msra.mxu0 0.0
    %1541 = vmatprep.subr.mxu0 0.0
    %1542 = vmatpush2.msra.mxu0 0.0
    %1543 = vmatprep.subr.mxu0 0.0
    %1544 = vmatpush2.msra.mxu0 0.0
    %1545 = vmatprep.subr.mxu0 0.0
    %1546 = vmatpush2.msra.mxu0 0.0
    %1547 = vmatprep.subr.mxu0 0.0
    %1548 = vmatpush2.msra.mxu0 0.0
    %1549 = vmatprep.subr.mxu0 0.0
    %1550 = vmatpush2.msra.mxu0 0.0
    %1551 = vmatprep.subr.mxu0 0.0
    %1552 = vmatpush2.msra.mxu0 0.0
    %1553 = vmatprep.subr.mxu0 0.0
    %1554 = vmatpush2.msra.mxu0 0.0
    %1555 = vmatprep.subr.mxu0 0.0
    %1556 = vmatpush2.msra.mxu0 0.0
    %1557 = vmatprep.subr.mxu0 0.0
    %1558 = vmatpush2.msra.mxu0 0.0
    %1559 = vmatprep.subr.mxu0 0.0
    %1560 = vmatpush2.msra.mxu0 0.0
    %1561 = vmatprep.subr.mxu0 0.0
    %1562 = vmatpush2.msra.mxu0 0.0
    %1563 = vmatprep.subr.mxu0 0.0
    %1564 = vmatpush2.msra.mxu0 0.0
    %1565 = vmatprep.mubr.f32.mxu0 0.0
    %1566 = vmatmul.mubr.f32.gmra.mxu0 %v1427
    %v1567 = vpop.f32.mrf.mxu0
    %v1568 = vadd.f32 %v469, %v1567
    %v1569 = vpop.f32.mrf.mxu0
    %v1570 = vadd.f32 %v473, %v1569
    %1571 = vdwg.mxu0
    %s1572 = scalar_lea.vmem [#allocation2], 64
    %v1573 = vld [vmem:[%s1572] sm:$0xff]
    %v1574 = vld [vmem:[%s1572 + $0x8] sm:$0xff]
    %v1575 = vld [vmem:[%s1572 + $0x10] sm:$0xff]
    %v1576 = vld [vmem:[%s1572 + $0x18] sm:$0xff]
    %1577 = vmatprep.subr.mxu0 %v325
    %1578 = vmatpush1.msra.mxu0 %v324
    %1579 = vmatprep.subr.mxu0 %v321
    %1580 = vmatpush1.msra.mxu0 %v320
    %1581 = vmatprep.subr.mxu0 %v317
    %1582 = vmatpush1.msra.mxu0 %v316
    %1583 = vmatprep.subr.mxu0 %v313
    %1584 = vmatpush1.msra.mxu0 %v312
    %1585 = vmatprep.subr.mxu0 %v309
    %1586 = vmatpush1.msra.mxu0 %v308
    %1587 = vmatprep.subr.mxu0 %v305
    %1588 = vmatpush1.msra.mxu0 %v304
    %1589 = vmatprep.subr.mxu0 %v301
    %1590 = vmatpush1.msra.mxu0 %v300
    %1591 = vmatprep.subr.mxu0 %v297
    %1592 = vmatpush1.msra.mxu0 %v296
    %1593 = vmatprep.subr.mxu0 %v293
    %1594 = vmatpush1.msra.mxu0 %v292
    %1595 = vmatprep.subr.mxu0 %v289
    %1596 = vmatpush1.msra.mxu0 %v288
    %1597 = vmatprep.subr.mxu0 %v285
    %1598 = vmatpush1.msra.mxu0 %v284
    %1599 = vmatprep.subr.mxu0 %v281
    %1600 = vmatpush1.msra.mxu0 %v280
    %1601 = vmatprep.subr.mxu0 %v277
    %1602 = vmatpush1.msra.mxu0 %v276
    %1603 = vmatprep.subr.mxu0 %v273
    %1604 = vmatpush1.msra.mxu0 %v272
    %1605 = vmatprep.subr.mxu0 %v269
    %1606 = vmatpush1.msra.mxu0 %v268
    %1607 = vmatprep.subr.mxu0 %v265
    %1608 = vmatpush1.msra.mxu0 %v264
    %1609 = vmatprep.subr.mxu0 0.0
    %1610 = vmatpush2.msra.mxu0 0.0
    %1611 = vmatprep.subr.mxu0 0.0
    %1612 = vmatpush2.msra.mxu0 0.0
    %1613 = vmatprep.subr.mxu0 0.0
    %1614 = vmatpush2.msra.mxu0 0.0
    %1615 = vmatprep.subr.mxu0 0.0
    %1616 = vmatpush2.msra.mxu0 0.0
    %1617 = vmatprep.subr.mxu0 0.0
    %1618 = vmatpush2.msra.mxu0 0.0
    %1619 = vmatprep.subr.mxu0 0.0
    %1620 = vmatpush2.msra.mxu0 0.0
    %1621 = vmatprep.subr.mxu0 0.0
    %1622 = vmatpush2.msra.mxu0 0.0
    %1623 = vmatprep.subr.mxu0 0.0
    %1624 = vmatpush2.msra.mxu0 0.0
    %1625 = vmatprep.subr.mxu0 0.0
    %1626 = vmatpush2.msra.mxu0 0.0
    %1627 = vmatprep.subr.mxu0 0.0
    %1628 = vmatpush2.msra.mxu0 0.0
    %1629 = vmatprep.subr.mxu0 0.0
    %1630 = vmatpush2.msra.mxu0 0.0
    %1631 = vmatprep.subr.mxu0 0.0
    %1632 = vmatpush2.msra.mxu0 0.0
    %1633 = vmatprep.subr.mxu0 0.0
    %1634 = vmatpush2.msra.mxu0 0.0
    %1635 = vmatprep.subr.mxu0 0.0
    %1636 = vmatpush2.msra.mxu0 0.0
    %1637 = vmatprep.subr.mxu0 0.0
    %1638 = vmatpush2.msra.mxu0 0.0
    %1639 = vmatprep.subr.mxu0 0.0
    %1640 = vmatpush2.msra.mxu0 0.0
    %1641 = vmatprep.mubr.f32.mxu0 0.0
    %1642 = vmatmul.mubr.f32.gmra.mxu0 %v1263
    %v1643 = vpop.f32.mrf.mxu0
    %v1644 = vadd.f32 0.0, %v1643
    %v1645 = vpop.f32.mrf.mxu0
    %v1646 = vadd.f32 0.0, %v1645
    %1647 = vdwg.mxu0
    %1648 = vmatprep.subr.mxu0 %v327
    %1649 = vmatpush1.msra.mxu0 %v326
    %1650 = vmatprep.subr.mxu0 %v323
    %1651 = vmatpush1.msra.mxu0 %v322
    %1652 = vmatprep.subr.mxu0 %v319
    %1653 = vmatpush1.msra.mxu0 %v318
    %1654 = vmatprep.subr.mxu0 %v315
    %1655 = vmatpush1.msra.mxu0 %v314
    %1656 = vmatprep.subr.mxu0 %v311
    %1657 = vmatpush1.msra.mxu0 %v310
    %1658 = vmatprep.subr.mxu0 %v307
    %1659 = vmatpush1.msra.mxu0 %v306
    %1660 = vmatprep.subr.mxu0 %v303
    %1661 = vmatpush1.msra.mxu0 %v302
    %1662 = vmatprep.subr.mxu0 %v299
    %1663 = vmatpush1.msra.mxu0 %v298
    %1664 = vmatprep.subr.mxu0 %v295
    %1665 = vmatpush1.msra.mxu0 %v294
    %1666 = vmatprep.subr.mxu0 %v291
    %1667 = vmatpush1.msra.mxu0 %v290
    %1668 = vmatprep.subr.mxu0 %v287
    %1669 = vmatpush1.msra.mxu0 %v286
    %1670 = vmatprep.subr.mxu0 %v283
    %1671 = vmatpush1.msra.mxu0 %v282
    %1672 = vmatprep.subr.mxu0 %v279
    %1673 = vmatpush1.msra.mxu0 %v278
    %1674 = vmatprep.subr.mxu0 %v275
    %1675 = vmatpush1.msra.mxu0 %v274
    %1676 = vmatprep.subr.mxu0 %v271
    %1677 = vmatpush1.msra.mxu0 %v270
    %1678 = vmatprep.subr.mxu0 %v267
    %1679 = vmatpush1.msra.mxu0 %v266
    %1680 = vmatprep.subr.mxu0 0.0
    %1681 = vmatpush2.msra.mxu0 0.0
    %1682 = vmatprep.subr.mxu0 0.0
    %1683 = vmatpush2.msra.mxu0 0.0
    %1684 = vmatprep.subr.mxu0 0.0
    %1685 = vmatpush2.msra.mxu0 0.0
    %1686 = vmatprep.subr.mxu0 0.0
    %1687 = vmatpush2.msra.mxu0 0.0
    %1688 = vmatprep.subr.mxu0 0.0
    %1689 = vmatpush2.msra.mxu0 0.0
    %1690 = vmatprep.subr.mxu0 0.0
    %1691 = vmatpush2.msra.mxu0 0.0
    %1692 = vmatprep.subr.mxu0 0.0
    %1693 = vmatpush2.msra.mxu0 0.0
    %1694 = vmatprep.subr.mxu0 0.0
    %1695 = vmatpush2.msra.mxu0 0.0
    %1696 = vmatprep.subr.mxu0 0.0
    %1697 = vmatpush2.msra.mxu0 0.0
    %1698 = vmatprep.subr.mxu0 0.0
    %1699 = vmatpush2.msra.mxu0 0.0
    %1700 = vmatprep.subr.mxu0 0.0
    %1701 = vmatpush2.msra.mxu0 0.0
    %1702 = vmatprep.subr.mxu0 0.0
    %1703 = vmatpush2.msra.mxu0 0.0
    %1704 = vmatprep.subr.mxu0 0.0
    %1705 = vmatpush2.msra.mxu0 0.0
    %1706 = vmatprep.subr.mxu0 0.0
    %1707 = vmatpush2.msra.mxu0 0.0
    %1708 = vmatprep.subr.mxu0 0.0
    %1709 = vmatpush2.msra.mxu0 0.0
    %1710 = vmatprep.subr.mxu0 0.0
    %1711 = vmatpush2.msra.mxu0 0.0
    %1712 = vmatprep.mubr.f32.mxu0 0.0
    %1713 = vmatmul.mubr.f32.gmra.mxu0 %v1263
    %v1714 = vpop.f32.mrf.mxu0
    %v1715 = vadd.f32 0.0, %v1714
    %v1716 = vpop.f32.mrf.mxu0
    %v1717 = vadd.f32 0.0, %v1716
    %1718 = vdwg.mxu0
    %v1719 = vadd.f32 %v1573, %v1644
    %v1720 = vadd.f32 %v1574, %v1646
    %v1721 = vadd.f32 %v1575, %v1715
    %v1722 = vadd.f32 %v1576, %v1717
    %v1723 = vmul.f32 %v1719, 0.5
    %v1724 = vmul.f32 %v1720, 0.5
    %v1725 = vmul.f32 %v1721, 0.5
    %v1726 = vtanh.pop %v1723
    %v1727 = vtanh.pop %v1724
    %v1728 = vtanh.pop %v1725
    %v1729 = vmul.f32 %v1726, 0.5
    %v1730 = vmul.f32 %v1727, 0.5
    %v1731 = vmul.f32 %v1728, 0.5
    %v1732 = vadd.f32 %v1729, 0.5
    %v1733 = vadd.f32 %v1730, 0.5
    %v1734 = vadd.f32 %v1731, 0.5
    %v1735 = vtanh.pop %v1722
    %v1736 = vmul.f32 %v1733, %v1261
    %v1737 = vmul.f32 %v1732, %v1735
    %v1738 = vadd.f32 %v1736, %v1737
    %v1739 = vtanh.pop %v1738
    %v1740 = vmul.f32 %v1734, %v1739
    %1741 = vmatprep.subr.mxu0 %v389
    %1742 = vmatpush1.msra.mxu0 %v388
    %1743 = vmatprep.subr.mxu0 %v385
    %1744 = vmatpush1.msra.mxu0 %v384
    %1745 = vmatprep.subr.mxu0 %v381
    %1746 = vmatpush1.msra.mxu0 %v380
    %1747 = vmatprep.subr.mxu0 %v377
    %1748 = vmatpush1.msra.mxu0 %v376
    %1749 = vmatprep.subr.mxu0 %v373
    %1750 = vmatpush1.msra.mxu0 %v372
    %1751 = vmatprep.subr.mxu0 %v369
    %1752 = vmatpush1.msra.mxu0 %v368
    %1753 = vmatprep.subr.mxu0 %v365
    %1754 = vmatpush1.msra.mxu0 %v364
    %1755 = vmatprep.subr.mxu0 %v361
    %1756 = vmatpush1.msra.mxu0 %v360
    %1757 = vmatprep.subr.mxu0 %v357
    %1758 = vmatpush1.msra.mxu0 %v356
    %1759 = vmatprep.subr.mxu0 %v353
    %1760 = vmatpush1.msra.mxu0 %v352
    %1761 = vmatprep.subr.mxu0 %v349
    %1762 = vmatpush1.msra.mxu0 %v348
    %1763 = vmatprep.subr.mxu0 %v345
    %1764 = vmatpush1.msra.mxu0 %v344
    %1765 = vmatprep.subr.mxu0 %v341
    %1766 = vmatpush1.msra.mxu0 %v340
    %1767 = vmatprep.subr.mxu0 %v337
    %1768 = vmatpush1.msra.mxu0 %v336
    %1769 = vmatprep.subr.mxu0 %v333
    %1770 = vmatpush1.msra.mxu0 %v332
    %1771 = vmatprep.subr.mxu0 %v329
    %1772 = vmatpush1.msra.mxu0 %v328
    %1773 = vmatprep.subr.mxu0 0.0
    %1774 = vmatpush2.msra.mxu0 0.0
    %1775 = vmatprep.subr.mxu0 0.0
    %1776 = vmatpush2.msra.mxu0 0.0
    %1777 = vmatprep.subr.mxu0 0.0
    %1778 = vmatpush2.msra.mxu0 0.0
    %1779 = vmatprep.subr.mxu0 0.0
    %1780 = vmatpush2.msra.mxu0 0.0
    %1781 = vmatprep.subr.mxu0 0.0
    %1782 = vmatpush2.msra.mxu0 0.0
    %1783 = vmatprep.subr.mxu0 0.0
    %1784 = vmatpush2.msra.mxu0 0.0
    %1785 = vmatprep.subr.mxu0 0.0
    %1786 = vmatpush2.msra.mxu0 0.0
    %1787 = vmatprep.subr.mxu0 0.0
    %1788 = vmatpush2.msra.mxu0 0.0
    %1789 = vmatprep.subr.mxu0 0.0
    %1790 = vmatpush2.msra.mxu0 0.0
    %1791 = vmatprep.subr.mxu0 0.0
    %1792 = vmatpush2.msra.mxu0 0.0
    %1793 = vmatprep.subr.mxu0 0.0
    %1794 = vmatpush2.msra.mxu0 0.0
    %1795 = vmatprep.subr.mxu0 0.0
    %1796 = vmatpush2.msra.mxu0 0.0
    %1797 = vmatprep.subr.mxu0 0.0
    %1798 = vmatpush2.msra.mxu0 0.0
    %1799 = vmatprep.subr.mxu0 0.0
    %1800 = vmatpush2.msra.mxu0 0.0
    %1801 = vmatprep.subr.mxu0 0.0
    %1802 = vmatpush2.msra.mxu0 0.0
    %1803 = vmatprep.subr.mxu0 0.0
    %1804 = vmatpush2.msra.mxu0 0.0
    %1805 = vmatprep.mubr.f32.mxu0 0.0
    %1806 = vmatmul.mubr.f32.gmra.mxu0 %v1740
    %v1807 = vpop.f32.mrf.mxu0
    %v1808 = vadd.f32 0.0, %v1807
    %v1809 = vpop.f32.mrf.mxu0
    %v1810 = vadd.f32 0.0, %v1809
    %1811 = vdwg.mxu0
    %1812 = vmatprep.subr.mxu0 %v391
    %1813 = vmatpush1.msra.mxu0 %v390
    %1814 = vmatprep.subr.mxu0 %v387
    %1815 = vmatpush1.msra.mxu0 %v386
    %1816 = vmatprep.subr.mxu0 %v383
    %1817 = vmatpush1.msra.mxu0 %v382
    %1818 = vmatprep.subr.mxu0 %v379
    %1819 = vmatpush1.msra.mxu0 %v378
    %1820 = vmatprep.subr.mxu0 %v375
    %1821 = vmatpush1.msra.mxu0 %v374
    %1822 = vmatprep.subr.mxu0 %v371
    %1823 = vmatpush1.msra.mxu0 %v370
    %1824 = vmatprep.subr.mxu0 %v367
    %1825 = vmatpush1.msra.mxu0 %v366
    %1826 = vmatprep.subr.mxu0 %v363
    %1827 = vmatpush1.msra.mxu0 %v362
    %1828 = vmatprep.subr.mxu0 %v359
    %1829 = vmatpush1.msra.mxu0 %v358
    %1830 = vmatprep.subr.mxu0 %v355
    %1831 = vmatpush1.msra.mxu0 %v354
    %1832 = vmatprep.subr.mxu0 %v351
    %1833 = vmatpush1.msra.mxu0 %v350
    %1834 = vmatprep.subr.mxu0 %v347
    %1835 = vmatpush1.msra.mxu0 %v346
    %1836 = vmatprep.subr.mxu0 %v343
    %1837 = vmatpush1.msra.mxu0 %v342
    %1838 = vmatprep.subr.mxu0 %v339
    %1839 = vmatpush1.msra.mxu0 %v338
    %1840 = vmatprep.subr.mxu0 %v335
    %1841 = vmatpush1.msra.mxu0 %v334
    %1842 = vmatprep.subr.mxu0 %v331
    %1843 = vmatpush1.msra.mxu0 %v330
    %1844 = vmatprep.subr.mxu0 0.0
    %1845 = vmatpush2.msra.mxu0 0.0
    %1846 = vmatprep.subr.mxu0 0.0
    %1847 = vmatpush2.msra.mxu0 0.0
    %1848 = vmatprep.subr.mxu0 0.0
    %1849 = vmatpush2.msra.mxu0 0.0
    %1850 = vmatprep.subr.mxu0 0.0
    %1851 = vmatpush2.msra.mxu0 0.0
    %1852 = vmatprep.subr.mxu0 0.0
    %1853 = vmatpush2.msra.mxu0 0.0
    %1854 = vmatprep.subr.mxu0 0.0
    %1855 = vmatpush2.msra.mxu0 0.0
    %1856 = vmatprep.subr.mxu0 0.0
    %1857 = vmatpush2.msra.mxu0 0.0
    %1858 = vmatprep.subr.mxu0 0.0
    %1859 = vmatpush2.msra.mxu0 0.0
    %1860 = vmatprep.subr.mxu0 0.0
    %1861 = vmatpush2.msra.mxu0 0.0
    %1862 = vmatprep.subr.mxu0 0.0
    %1863 = vmatpush2.msra.mxu0 0.0
    %1864 = vmatprep.subr.mxu0 0.0
    %1865 = vmatpush2.msra.mxu0 0.0
    %1866 = vmatprep.subr.mxu0 0.0
    %1867 = vmatpush2.msra.mxu0 0.0
    %1868 = vmatprep.subr.mxu0 0.0
    %1869 = vmatpush2.msra.mxu0 0.0
    %1870 = vmatprep.subr.mxu0 0.0
    %1871 = vmatpush2.msra.mxu0 0.0
    %1872 = vmatprep.subr.mxu0 0.0
    %1873 = vmatpush2.msra.mxu0 0.0
    %1874 = vmatprep.subr.mxu0 0.0
    %1875 = vmatpush2.msra.mxu0 0.0
    %1876 = vmatprep.mubr.f32.mxu0 0.0
    %1877 = vmatmul.mubr.f32.gmra.mxu0 %v1740
    %v1878 = vpop.f32.mrf.mxu0
    %v1879 = vadd.f32 0.0, %v1878
    %v1880 = vpop.f32.mrf.mxu0
    %v1881 = vadd.f32 0.0, %v1880
    %1882 = vdwg.mxu0
    %v1883 = vadd.f32 %v1497, %v1808
    %v1884 = vadd.f32 %v1499, %v1810
    %v1885 = vadd.f32 %v1568, %v1879
    %v1886 = vadd.f32 %v1570, %v1881
    %v1887 = vmul.f32 %v1883, 0.5
    %v1888 = vmul.f32 %v1884, 0.5
    %v1889 = vmul.f32 %v1885, 0.5
    %v1890 = vtanh.pop %v1887
    %v1891 = vtanh.pop %v1888
    %v1892 = vtanh.pop %v1889
    %v1893 = vmul.f32 %v1890, 0.5
    %v1894 = vmul.f32 %v1891, 0.5
    %v1895 = vmul.f32 %v1892, 0.5
    %v1896 = vadd.f32 %v1893, 0.5
    %v1897 = vadd.f32 %v1894, 0.5
    %v1898 = vadd.f32 %v1895, 0.5
    %v1899 = vtanh.pop %v1886
    %v1900 = vmul.f32 %v1897, %v1425
    %v1901 = vmul.f32 %v1896, %v1899
    %v1902 = vadd.f32 %v1900, %v1901
    %v1903 = vtanh.pop %v1902
    %v1904 = vmul.f32 %v1898, %v1903
    %s1905 = scalar_lea.vmem [#allocation3], 16
    %1906 = vst [vmem:[%s1905] sm:$0xff] %v1904
    %1907 = vmatprep.subr.mxu0 %v453
    %1908 = vmatpush1.msra.mxu0 %v452
    %1909 = vmatprep.subr.mxu0 %v449
    %1910 = vmatpush1.msra.mxu0 %v448
    %1911 = vmatprep.subr.mxu0 %v445
    %1912 = vmatpush1.msra.mxu0 %v444
    %1913 = vmatprep.subr.mxu0 %v441
    %1914 = vmatpush1.msra.mxu0 %v440
    %1915 = vmatprep.subr.mxu0 %v437
    %1916 = vmatpush1.msra.mxu0 %v436
    %1917 = vmatprep.subr.mxu0 %v433
    %1918 = vmatpush1.msra.mxu0 %v432
    %1919 = vmatprep.subr.mxu0 %v429
    %1920 = vmatpush1.msra.mxu0 %v428
    %1921 = vmatprep.subr.mxu0 %v425
    %1922 = vmatpush1.msra.mxu0 %v424
    %1923 = vmatprep.subr.mxu0 %v421
    %1924 = vmatpush1.msra.mxu0 %v420
    %1925 = vmatprep.subr.mxu0 %v417
    %1926 = vmatpush1.msra.mxu0 %v416
    %1927 = vmatprep.subr.mxu0 %v413
    %1928 = vmatpush1.msra.mxu0 %v412
    %1929 = vmatprep.subr.mxu0 %v409
    %1930 = vmatpush1.msra.mxu0 %v408
    %1931 = vmatprep.subr.mxu0 %v405
    %1932 = vmatpush1.msra.mxu0 %v404
    %1933 = vmatprep.subr.mxu0 %v401
    %1934 = vmatpush1.msra.mxu0 %v400
    %1935 = vmatprep.subr.mxu0 %v397
    %1936 = vmatpush1.msra.mxu0 %v396
    %1937 = vmatprep.subr.mxu0 %v393
    %1938 = vmatpush1.msra.mxu0 %v392
    %1939 = vmatprep.subr.mxu0 0.0
    %1940 = vmatpush2.msra.mxu0 0.0
    %1941 = vmatprep.subr.mxu0 0.0
    %1942 = vmatpush2.msra.mxu0 0.0
    %1943 = vmatprep.subr.mxu0 0.0
    %1944 = vmatpush2.msra.mxu0 0.0
    %1945 = vmatprep.subr.mxu0 0.0
    %1946 = vmatpush2.msra.mxu0 0.0
    %1947 = vmatprep.subr.mxu0 0.0
    %1948 = vmatpush2.msra.mxu0 0.0
    %1949 = vmatprep.subr.mxu0 0.0
    %1950 = vmatpush2.msra.mxu0 0.0
    %1951 = vmatprep.subr.mxu0 0.0
    %1952 = vmatpush2.msra.mxu0 0.0
    %1953 = vmatprep.subr.mxu0 0.0
    %1954 = vmatpush2.msra.mxu0 0.0
    %1955 = vmatprep.subr.mxu0 0.0
    %1956 = vmatpush2.msra.mxu0 0.0
    %1957 = vmatprep.subr.mxu0 0.0
    %1958 = vmatpush2.msra.mxu0 0.0
    %1959 = vmatprep.subr.mxu0 0.0
    %1960 = vmatpush2.msra.mxu0 0.0
    %1961 = vmatprep.subr.mxu0 0.0
    %1962 = vmatpush2.msra.mxu0 0.0
    %1963 = vmatprep.subr.mxu0 0.0
    %1964 = vmatpush2.msra.mxu0 0.0
    %1965 = vmatprep.subr.mxu0 0.0
    %1966 = vmatpush2.msra.mxu0 0.0
    %1967 = vmatprep.subr.mxu0 0.0
    %1968 = vmatpush2.msra.mxu0 0.0
    %1969 = vmatprep.subr.mxu0 0.0
    %1970 = vmatpush2.msra.mxu0 0.0
    %1971 = vmatprep.mubr.f32.mxu0 0.0
    %1972 = vmatmul.mubr.f32.gmra.mxu0 %v1904
    %v1973 = vpop.f32.mrf.mxu0
    %v1974 = vadd.f32 %v461, %v1973
    %v1975 = vpop.f32.mrf.mxu0
    %v1976 = vadd.f32 %v465, %v1975
    %1977 = vdwg.mxu0
    %1978 = vmatprep.subr.mxu0 %v455
    %1979 = vmatpush1.msra.mxu0 %v454
    %1980 = vmatprep.subr.mxu0 %v451
    %1981 = vmatpush1.msra.mxu0 %v450
    %1982 = vmatprep.subr.mxu0 %v447
    %1983 = vmatpush1.msra.mxu0 %v446
    %1984 = vmatprep.subr.mxu0 %v443
    %1985 = vmatpush1.msra.mxu0 %v442
    %1986 = vmatprep.subr.mxu0 %v439
    %1987 = vmatpush1.msra.mxu0 %v438
    %1988 = vmatprep.subr.mxu0 %v435
    %1989 = vmatpush1.msra.mxu0 %v434
    %1990 = vmatprep.subr.mxu0 %v431
    %1991 = vmatpush1.msra.mxu0 %v430
    %1992 = vmatprep.subr.mxu0 %v427
    %1993 = vmatpush1.msra.mxu0 %v426
    %1994 = vmatprep.subr.mxu0 %v423
    %1995 = vmatpush1.msra.mxu0 %v422
    %1996 = vmatprep.subr.mxu0 %v419
    %1997 = vmatpush1.msra.mxu0 %v418
    %1998 = vmatprep.subr.mxu0 %v415
    %1999 = vmatpush1.msra.mxu0 %v414
    %2000 = vmatprep.subr.mxu0 %v411
    %2001 = vmatpush1.msra.mxu0 %v410
    %2002 = vmatprep.subr.mxu0 %v407
    %2003 = vmatpush1.msra.mxu0 %v406
    %2004 = vmatprep.subr.mxu0 %v403
    %2005 = vmatpush1.msra.mxu0 %v402
    %2006 = vmatprep.subr.mxu0 %v399
    %2007 = vmatpush1.msra.mxu0 %v398
    %2008 = vmatprep.subr.mxu0 %v395
    %2009 = vmatpush1.msra.mxu0 %v394
    %2010 = vmatprep.subr.mxu0 0.0
    %2011 = vmatpush2.msra.mxu0 0.0
    %2012 = vmatprep.subr.mxu0 0.0
    %2013 = vmatpush2.msra.mxu0 0.0
    %2014 = vmatprep.subr.mxu0 0.0
    %2015 = vmatpush2.msra.mxu0 0.0
    %2016 = vmatprep.subr.mxu0 0.0
    %2017 = vmatpush2.msra.mxu0 0.0
    %2018 = vmatprep.subr.mxu0 0.0
    %2019 = vmatpush2.msra.mxu0 0.0
    %2020 = vmatprep.subr.mxu0 0.0
    %2021 = vmatpush2.msra.mxu0 0.0
    %2022 = vmatprep.subr.mxu0 0.0
    %2023 = vmatpush2.msra.mxu0 0.0
    %2024 = vmatprep.subr.mxu0 0.0
    %2025 = vmatpush2.msra.mxu0 0.0
    %2026 = vmatprep.subr.mxu0 0.0
    %2027 = vmatpush2.msra.mxu0 0.0
    %2028 = vmatprep.subr.mxu0 0.0
    %2029 = vmatpush2.msra.mxu0 0.0
    %2030 = vmatprep.subr.mxu0 0.0
    %2031 = vmatpush2.msra.mxu0 0.0
    %2032 = vmatprep.subr.mxu0 0.0
    %2033 = vmatpush2.msra.mxu0 0.0
    %2034 = vmatprep.subr.mxu0 0.0
    %2035 = vmatpush2.msra.mxu0 0.0
    %2036 = vmatprep.subr.mxu0 0.0
    %2037 = vmatpush2.msra.mxu0 0.0
    %2038 = vmatprep.subr.mxu0 0.0
    %2039 = vmatpush2.msra.mxu0 0.0
    %2040 = vmatprep.subr.mxu0 0.0
    %2041 = vmatpush2.msra.mxu0 0.0
    %2042 = vmatprep.mubr.f32.mxu0 0.0
    %2043 = vmatmul.mubr.f32.gmra.mxu0 %v1904
    %v2044 = vpop.f32.mrf.mxu0
    %v2045 = vadd.f32 %v469, %v2044
    %v2046 = vpop.f32.mrf.mxu0
    %v2047 = vadd.f32 %v473, %v2046
    %2048 = vdwg.mxu0
    %s2049 = scalar_lea.vmem [#allocation2], 96
    %v2050 = vld [vmem:[%s2049] sm:$0xff]
    %v2051 = vld [vmem:[%s2049 + $0x8] sm:$0xff]
    %v2052 = vld [vmem:[%s2049 + $0x10] sm:$0xff]
    %v2053 = vld [vmem:[%s2049 + $0x18] sm:$0xff]
    %2054 = vmatprep.subr.mxu0 %v325
    %2055 = vmatpush1.msra.mxu0 %v324
    %2056 = vmatprep.subr.mxu0 %v321
    %2057 = vmatpush1.msra.mxu0 %v320
    %2058 = vmatprep.subr.mxu0 %v317
    %2059 = vmatpush1.msra.mxu0 %v316
    %2060 = vmatprep.subr.mxu0 %v313
    %2061 = vmatpush1.msra.mxu0 %v312
    %2062 = vmatprep.subr.mxu0 %v309
    %2063 = vmatpush1.msra.mxu0 %v308
    %2064 = vmatprep.subr.mxu0 %v305
    %2065 = vmatpush1.msra.mxu0 %v304
    %2066 = vmatprep.subr.mxu0 %v301
    %2067 = vmatpush1.msra.mxu0 %v300
    %2068 = vmatprep.subr.mxu0 %v297
    %2069 = vmatpush1.msra.mxu0 %v296
    %2070 = vmatprep.subr.mxu0 %v293
    %2071 = vmatpush1.msra.mxu0 %v292
    %2072 = vmatprep.subr.mxu0 %v289
    %2073 = vmatpush1.msra.mxu0 %v288
    %2074 = vmatprep.subr.mxu0 %v285
    %2075 = vmatpush1.msra.mxu0 %v284
    %2076 = vmatprep.subr.mxu0 %v281
    %2077 = vmatpush1.msra.mxu0 %v280
    %2078 = vmatprep.subr.mxu0 %v277
    %2079 = vmatpush1.msra.mxu0 %v276
    %2080 = vmatprep.subr.mxu0 %v273
    %2081 = vmatpush1.msra.mxu0 %v272
    %2082 = vmatprep.subr.mxu0 %v269
    %2083 = vmatpush1.msra.mxu0 %v268
    %2084 = vmatprep.subr.mxu0 %v265
    %2085 = vmatpush1.msra.mxu0 %v264
    %2086 = vmatprep.subr.mxu0 0.0
    %2087 = vmatpush2.msra.mxu0 0.0
    %2088 = vmatprep.subr.mxu0 0.0
    %2089 = vmatpush2.msra.mxu0 0.0
    %2090 = vmatprep.subr.mxu0 0.0
    %2091 = vmatpush2.msra.mxu0 0.0
    %2092 = vmatprep.subr.mxu0 0.0
    %2093 = vmatpush2.msra.mxu0 0.0
    %2094 = vmatprep.subr.mxu0 0.0
    %2095 = vmatpush2.msra.mxu0 0.0
    %2096 = vmatprep.subr.mxu0 0.0
    %2097 = vmatpush2.msra.mxu0 0.0
    %2098 = vmatprep.subr.mxu0 0.0
    %2099 = vmatpush2.msra.mxu0 0.0
    %2100 = vmatprep.subr.mxu0 0.0
    %2101 = vmatpush2.msra.mxu0 0.0
    %2102 = vmatprep.subr.mxu0 0.0
    %2103 = vmatpush2.msra.mxu0 0.0
    %2104 = vmatprep.subr.mxu0 0.0
    %2105 = vmatpush2.msra.mxu0 0.0
    %2106 = vmatprep.subr.mxu0 0.0
    %2107 = vmatpush2.msra.mxu0 0.0
    %2108 = vmatprep.subr.mxu0 0.0
    %2109 = vmatpush2.msra.mxu0 0.0
    %2110 = vmatprep.subr.mxu0 0.0
    %2111 = vmatpush2.msra.mxu0 0.0
    %2112 = vmatprep.subr.mxu0 0.0
    %2113 = vmatpush2.msra.mxu0 0.0
    %2114 = vmatprep.subr.mxu0 0.0
    %2115 = vmatpush2.msra.mxu0 0.0
    %2116 = vmatprep.subr.mxu0 0.0
    %2117 = vmatpush2.msra.mxu0 0.0
    %2118 = vmatprep.mubr.f32.mxu0 0.0
    %2119 = vmatmul.mubr.f32.gmra.mxu0 %v1740
    %v2120 = vpop.f32.mrf.mxu0
    %v2121 = vadd.f32 0.0, %v2120
    %v2122 = vpop.f32.mrf.mxu0
    %v2123 = vadd.f32 0.0, %v2122
    %2124 = vdwg.mxu0
    %2125 = vmatprep.subr.mxu0 %v327
    %2126 = vmatpush1.msra.mxu0 %v326
    %2127 = vmatprep.subr.mxu0 %v323
    %2128 = vmatpush1.msra.mxu0 %v322
    %2129 = vmatprep.subr.mxu0 %v319
    %2130 = vmatpush1.msra.mxu0 %v318
    %2131 = vmatprep.subr.mxu0 %v315
    %2132 = vmatpush1.msra.mxu0 %v314
    %2133 = vmatprep.subr.mxu0 %v311
    %2134 = vmatpush1.msra.mxu0 %v310
    %2135 = vmatprep.subr.mxu0 %v307
    %2136 = vmatpush1.msra.mxu0 %v306
    %2137 = vmatprep.subr.mxu0 %v303
    %2138 = vmatpush1.msra.mxu0 %v302
    %2139 = vmatprep.subr.mxu0 %v299
    %2140 = vmatpush1.msra.mxu0 %v298
    %2141 = vmatprep.subr.mxu0 %v295
    %2142 = vmatpush1.msra.mxu0 %v294
    %2143 = vmatprep.subr.mxu0 %v291
    %2144 = vmatpush1.msra.mxu0 %v290
    %2145 = vmatprep.subr.mxu0 %v287
    %2146 = vmatpush1.msra.mxu0 %v286
    %2147 = vmatprep.subr.mxu0 %v283
    %2148 = vmatpush1.msra.mxu0 %v282
    %2149 = vmatprep.subr.mxu0 %v279
    %2150 = vmatpush1.msra.mxu0 %v278
    %2151 = vmatprep.subr.mxu0 %v275
    %2152 = vmatpush1.msra.mxu0 %v274
    %2153 = vmatprep.subr.mxu0 %v271
    %2154 = vmatpush1.msra.mxu0 %v270
    %2155 = vmatprep.subr.mxu0 %v267
    %2156 = vmatpush1.msra.mxu0 %v266
    %2157 = vmatprep.subr.mxu0 0.0
    %2158 = vmatpush2.msra.mxu0 0.0
    %2159 = vmatprep.subr.mxu0 0.0
    %2160 = vmatpush2.msra.mxu0 0.0
    %2161 = vmatprep.subr.mxu0 0.0
    %2162 = vmatpush2.msra.mxu0 0.0
    %2163 = vmatprep.subr.mxu0 0.0
    %2164 = vmatpush2.msra.mxu0 0.0
    %2165 = vmatprep.subr.mxu0 0.0
    %2166 = vmatpush2.msra.mxu0 0.0
    %2167 = vmatprep.subr.mxu0 0.0
    %2168 = vmatpush2.msra.mxu0 0.0
    %2169 = vmatprep.subr.mxu0 0.0
    %2170 = vmatpush2.msra.mxu0 0.0
    %2171 = vmatprep.subr.mxu0 0.0
    %2172 = vmatpush2.msra.mxu0 0.0
    %2173 = vmatprep.subr.mxu0 0.0
    %2174 = vmatpush2.msra.mxu0 0.0
    %2175 = vmatprep.subr.mxu0 0.0
    %2176 = vmatpush2.msra.mxu0 0.0
    %2177 = vmatprep.subr.mxu0 0.0
    %2178 = vmatpush2.msra.mxu0 0.0
    %2179 = vmatprep.subr.mxu0 0.0
    %2180 = vmatpush2.msra.mxu0 0.0
    %2181 = vmatprep.subr.mxu0 0.0
    %2182 = vmatpush2.msra.mxu0 0.0
    %2183 = vmatprep.subr.mxu0 0.0
    %2184 = vmatpush2.msra.mxu0 0.0
    %2185 = vmatprep.subr.mxu0 0.0
    %2186 = vmatpush2.msra.mxu0 0.0
    %2187 = vmatprep.subr.mxu0 0.0
    %2188 = vmatpush2.msra.mxu0 0.0
    %2189 = vmatprep.mubr.f32.mxu0 0.0
    %2190 = vmatmul.mubr.f32.gmra.mxu0 %v1740
    %v2191 = vpop.f32.mrf.mxu0
    %v2192 = vadd.f32 0.0, %v2191
    %v2193 = vpop.f32.mrf.mxu0
    %v2194 = vadd.f32 0.0, %v2193
    %2195 = vdwg.mxu0
    %v2196 = vadd.f32 %v2050, %v2121
    %v2197 = vadd.f32 %v2051, %v2123
    %v2198 = vadd.f32 %v2052, %v2192
    %v2199 = vadd.f32 %v2053, %v2194
    %v2200 = vmul.f32 %v2196, 0.5
    %v2201 = vmul.f32 %v2197, 0.5
    %v2202 = vmul.f32 %v2198, 0.5
    %v2203 = vtanh.pop %v2200
    %v2204 = vtanh.pop %v2201
    %v2205 = vtanh.pop %v2202
    %v2206 = vmul.f32 %v2203, 0.5
    %v2207 = vmul.f32 %v2204, 0.5
    %v2208 = vmul.f32 %v2205, 0.5
    %v2209 = vadd.f32 %v2206, 0.5
    %v2210 = vadd.f32 %v2207, 0.5
    %v2211 = vadd.f32 %v2208, 0.5
    %v2212 = vtanh.pop %v2199
    %v2213 = vmul.f32 %v2210, %v1738
    %v2214 = vmul.f32 %v2209, %v2212
    %v2215 = vadd.f32 %v2213, %v2214
    %v2216 = vtanh.pop %v2215
    %v2217 = vmul.f32 %v2211, %v2216
    %2218 = vmatprep.subr.mxu0 %v389
    %2219 = vmatpush1.msra.mxu0 %v388
    %2220 = vmatprep.subr.mxu0 %v385
    %2221 = vmatpush1.msra.mxu0 %v384
    %2222 = vmatprep.subr.mxu0 %v381
    %2223 = vmatpush1.msra.mxu0 %v380
    %2224 = vmatprep.subr.mxu0 %v377
    %2225 = vmatpush1.msra.mxu0 %v376
    %2226 = vmatprep.subr.mxu0 %v373
    %2227 = vmatpush1.msra.mxu0 %v372
    %2228 = vmatprep.subr.mxu0 %v369
    %2229 = vmatpush1.msra.mxu0 %v368
    %2230 = vmatprep.subr.mxu0 %v365
    %2231 = vmatpush1.msra.mxu0 %v364
    %2232 = vmatprep.subr.mxu0 %v361
    %2233 = vmatpush1.msra.mxu0 %v360
    %2234 = vmatprep.subr.mxu0 %v357
    %2235 = vmatpush1.msra.mxu0 %v356
    %2236 = vmatprep.subr.mxu0 %v353
    %2237 = vmatpush1.msra.mxu0 %v352
    %2238 = vmatprep.subr.mxu0 %v349
    %2239 = vmatpush1.msra.mxu0 %v348
    %2240 = vmatprep.subr.mxu0 %v345
    %2241 = vmatpush1.msra.mxu0 %v344
    %2242 = vmatprep.subr.mxu0 %v341
    %2243 = vmatpush1.msra.mxu0 %v340
    %2244 = vmatprep.subr.mxu0 %v337
    %2245 = vmatpush1.msra.mxu0 %v336
    %2246 = vmatprep.subr.mxu0 %v333
    %2247 = vmatpush1.msra.mxu0 %v332
    %2248 = vmatprep.subr.mxu0 %v329
    %2249 = vmatpush1.msra.mxu0 %v328
    %2250 = vmatprep.subr.mxu0 0.0
    %2251 = vmatpush2.msra.mxu0 0.0
    %2252 = vmatprep.subr.mxu0 0.0
    %2253 = vmatpush2.msra.mxu0 0.0
    %2254 = vmatprep.subr.mxu0 0.0
    %2255 = vmatpush2.msra.mxu0 0.0
    %2256 = vmatprep.subr.mxu0 0.0
    %2257 = vmatpush2.msra.mxu0 0.0
    %2258 = vmatprep.subr.mxu0 0.0
    %2259 = vmatpush2.msra.mxu0 0.0
    %2260 = vmatprep.subr.mxu0 0.0
    %2261 = vmatpush2.msra.mxu0 0.0
    %2262 = vmatprep.subr.mxu0 0.0
    %2263 = vmatpush2.msra.mxu0 0.0
    %2264 = vmatprep.subr.mxu0 0.0
    %2265 = vmatpush2.msra.mxu0 0.0
    %2266 = vmatprep.subr.mxu0 0.0
    %2267 = vmatpush2.msra.mxu0 0.0
    %2268 = vmatprep.subr.mxu0 0.0
    %2269 = vmatpush2.msra.mxu0 0.0
    %2270 = vmatprep.subr.mxu0 0.0
    %2271 = vmatpush2.msra.mxu0 0.0
    %2272 = vmatprep.subr.mxu0 0.0
    %2273 = vmatpush2.msra.mxu0 0.0
    %2274 = vmatprep.subr.mxu0 0.0
    %2275 = vmatpush2.msra.mxu0 0.0
    %2276 = vmatprep.subr.mxu0 0.0
    %2277 = vmatpush2.msra.mxu0 0.0
    %2278 = vmatprep.subr.mxu0 0.0
    %2279 = vmatpush2.msra.mxu0 0.0
    %2280 = vmatprep.subr.mxu0 0.0
    %2281 = vmatpush2.msra.mxu0 0.0
    %2282 = vmatprep.mubr.f32.mxu0 0.0
    %2283 = vmatmul.mubr.f32.gmra.mxu0 %v2217
    %v2284 = vpop.f32.mrf.mxu0
    %v2285 = vadd.f32 0.0, %v2284
    %v2286 = vpop.f32.mrf.mxu0
    %v2287 = vadd.f32 0.0, %v2286
    %2288 = vdwg.mxu0
    %2289 = vmatprep.subr.mxu0 %v391
    %2290 = vmatpush1.msra.mxu0 %v390
    %2291 = vmatprep.subr.mxu0 %v387
    %2292 = vmatpush1.msra.mxu0 %v386
    %2293 = vmatprep.subr.mxu0 %v383
    %2294 = vmatpush1.msra.mxu0 %v382
    %2295 = vmatprep.subr.mxu0 %v379
    %2296 = vmatpush1.msra.mxu0 %v378
    %2297 = vmatprep.subr.mxu0 %v375
    %2298 = vmatpush1.msra.mxu0 %v374
    %2299 = vmatprep.subr.mxu0 %v371
    %2300 = vmatpush1.msra.mxu0 %v370
    %2301 = vmatprep.subr.mxu0 %v367
    %2302 = vmatpush1.msra.mxu0 %v366
    %2303 = vmatprep.subr.mxu0 %v363
    %2304 = vmatpush1.msra.mxu0 %v362
    %2305 = vmatprep.subr.mxu0 %v359
    %2306 = vmatpush1.msra.mxu0 %v358
    %2307 = vmatprep.subr.mxu0 %v355
    %2308 = vmatpush1.msra.mxu0 %v354
    %2309 = vmatprep.subr.mxu0 %v351
    %2310 = vmatpush1.msra.mxu0 %v350
    %2311 = vmatprep.subr.mxu0 %v347
    %2312 = vmatpush1.msra.mxu0 %v346
    %2313 = vmatprep.subr.mxu0 %v343
    %2314 = vmatpush1.msra.mxu0 %v342
    %2315 = vmatprep.subr.mxu0 %v339
    %2316 = vmatpush1.msra.mxu0 %v338
    %2317 = vmatprep.subr.mxu0 %v335
    %2318 = vmatpush1.msra.mxu0 %v334
    %2319 = vmatprep.subr.mxu0 %v331
    %2320 = vmatpush1.msra.mxu0 %v330
    %2321 = vmatprep.subr.mxu0 0.0
    %2322 = vmatpush2.msra.mxu0 0.0
    %2323 = vmatprep.subr.mxu0 0.0
    %2324 = vmatpush2.msra.mxu0 0.0
    %2325 = vmatprep.subr.mxu0 0.0
    %2326 = vmatpush2.msra.mxu0 0.0
    %2327 = vmatprep.subr.mxu0 0.0
    %2328 = vmatpush2.msra.mxu0 0.0
    %2329 = vmatprep.subr.mxu0 0.0
    %2330 = vmatpush2.msra.mxu0 0.0
    %2331 = vmatprep.subr.mxu0 0.0
    %2332 = vmatpush2.msra.mxu0 0.0
    %2333 = vmatprep.subr.mxu0 0.0
    %2334 = vmatpush2.msra.mxu0 0.0
    %2335 = vmatprep.subr.mxu0 0.0
    %2336 = vmatpush2.msra.mxu0 0.0
    %2337 = vmatprep.subr.mxu0 0.0
    %2338 = vmatpush2.msra.mxu0 0.0
    %2339 = vmatprep.subr.mxu0 0.0
    %2340 = vmatpush2.msra.mxu0 0.0
    %2341 = vmatprep.subr.mxu0 0.0
    %2342 = vmatpush2.msra.mxu0 0.0
    %2343 = vmatprep.subr.mxu0 0.0
    %2344 = vmatpush2.msra.mxu0 0.0
    %2345 = vmatprep.subr.mxu0 0.0
    %2346 = vmatpush2.msra.mxu0 0.0
    %2347 = vmatprep.subr.mxu0 0.0
    %2348 = vmatpush2.msra.mxu0 0.0
    %2349 = vmatprep.subr.mxu0 0.0
    %2350 = vmatpush2.msra.mxu0 0.0
    %2351 = vmatprep.subr.mxu0 0.0
    %2352 = vmatpush2.msra.mxu0 0.0
    %2353 = vmatprep.mubr.f32.mxu0 0.0
    %2354 = vmatmul.mubr.f32.gmra.mxu0 %v2217
    %v2355 = vpop.f32.mrf.mxu0
    %v2356 = vadd.f32 0.0, %v2355
    %v2357 = vpop.f32.mrf.mxu0
    %v2358 = vadd.f32 0.0, %v2357
    %2359 = vdwg.mxu0
    %v2360 = vadd.f32 %v1974, %v2285
    %v2361 = vadd.f32 %v1976, %v2287
    %v2362 = vadd.f32 %v2045, %v2356
    %v2363 = vadd.f32 %v2047, %v2358
    %v2364 = vmul.f32 %v2360, 0.5
    %v2365 = vmul.f32 %v2361, 0.5
    %v2366 = vmul.f32 %v2362, 0.5
    %v2367 = vtanh.pop %v2364
    %v2368 = vtanh.pop %v2365
    %v2369 = vtanh.pop %v2366
    %v2370 = vmul.f32 %v2367, 0.5
    %v2371 = vmul.f32 %v2368, 0.5
    %v2372 = vmul.f32 %v2369, 0.5
    %v2373 = vadd.f32 %v2370, 0.5
    %v2374 = vadd.f32 %v2371, 0.5
    %v2375 = vadd.f32 %v2372, 0.5
    %v2376 = vtanh.pop %v2363
    %v2377 = vmul.f32 %v2374, %v1902
    %v2378 = vmul.f32 %v2373, %v2376
    %v2379 = vadd.f32 %v2377, %v2378
    %v2380 = vtanh.pop %v2379
    %v2381 = vmul.f32 %v2375, %v2380
    %s2382 = scalar_lea.vmem [#allocation3], 24
    %2383 = vst [vmem:[%s2382] sm:$0xff] %v2381
    %2384 = vmatprep.subr.mxu0 %v453
    %2385 = vmatpush1.msra.mxu0 %v452
    %2386 = vmatprep.subr.mxu0 %v449
    %2387 = vmatpush1.msra.mxu0 %v448
    %2388 = vmatprep.subr.mxu0 %v445
    %2389 = vmatpush1.msra.mxu0 %v444
    %2390 = vmatprep.subr.mxu0 %v441
    %2391 = vmatpush1.msra.mxu0 %v440
    %2392 = vmatprep.subr.mxu0 %v437
    %2393 = vmatpush1.msra.mxu0 %v436
    %2394 = vmatprep.subr.mxu0 %v433
    %2395 = vmatpush1.msra.mxu0 %v432
    %2396 = vmatprep.subr.mxu0 %v429
    %2397 = vmatpush1.msra.mxu0 %v428
    %2398 = vmatprep.subr.mxu0 %v425
    %2399 = vmatpush1.msra.mxu0 %v424
    %2400 = vmatprep.subr.mxu0 %v421
    %2401 = vmatpush1.msra.mxu0 %v420
    %2402 = vmatprep.subr.mxu0 %v417
    %2403 = vmatpush1.msra.mxu0 %v416
    %2404 = vmatprep.subr.mxu0 %v413
    %2405 = vmatpush1.msra.mxu0 %v412
    %2406 = vmatprep.subr.mxu0 %v409
    %2407 = vmatpush1.msra.mxu0 %v408
    %2408 = vmatprep.subr.mxu0 %v405
    %2409 = vmatpush1.msra.mxu0 %v404
    %2410 = vmatprep.subr.mxu0 %v401
    %2411 = vmatpush1.msra.mxu0 %v400
    %2412 = vmatprep.subr.mxu0 %v397
    %2413 = vmatpush1.msra.mxu0 %v396
    %2414 = vmatprep.subr.mxu0 %v393
    %2415 = vmatpush1.msra.mxu0 %v392
    %2416 = vmatprep.subr.mxu0 0.0
    %2417 = vmatpush2.msra.mxu0 0.0
    %2418 = vmatprep.subr.mxu0 0.0
    %2419 = vmatpush2.msra.mxu0 0.0
    %2420 = vmatprep.subr.mxu0 0.0
    %2421 = vmatpush2.msra.mxu0 0.0
    %2422 = vmatprep.subr.mxu0 0.0
    %2423 = vmatpush2.msra.mxu0 0.0
    %2424 = vmatprep.subr.mxu0 0.0
    %2425 = vmatpush2.msra.mxu0 0.0
    %2426 = vmatprep.subr.mxu0 0.0
    %2427 = vmatpush2.msra.mxu0 0.0
    %2428 = vmatprep.subr.mxu0 0.0
    %2429 = vmatpush2.msra.mxu0 0.0
    %2430 = vmatprep.subr.mxu0 0.0
    %2431 = vmatpush2.msra.mxu0 0.0
    %2432 = vmatprep.subr.mxu0 0.0
    %2433 = vmatpush2.msra.mxu0 0.0
    %2434 = vmatprep.subr.mxu0 0.0
    %2435 = vmatpush2.msra.mxu0 0.0
    %2436 = vmatprep.subr.mxu0 0.0
    %2437 = vmatpush2.msra.mxu0 0.0
    %2438 = vmatprep.subr.mxu0 0.0
    %2439 = vmatpush2.msra.mxu0 0.0
    %2440 = vmatprep.subr.mxu0 0.0
    %2441 = vmatpush2.msra.mxu0 0.0
    %2442 = vmatprep.subr.mxu0 0.0
    %2443 = vmatpush2.msra.mxu0 0.0
    %2444 = vmatprep.subr.mxu0 0.0
    %2445 = vmatpush2.msra.mxu0 0.0
    %2446 = vmatprep.subr.mxu0 0.0
    %2447 = vmatpush2.msra.mxu0 0.0
    %2448 = vmatprep.mubr.f32.mxu0 0.0
    %2449 = vmatmul.mubr.f32.gmra.mxu0 %v2381
    %v2450 = vpop.f32.mrf.mxu0
    %v2451 = vadd.f32 %v461, %v2450
    %v2452 = vpop.f32.mrf.mxu0
    %v2453 = vadd.f32 %v465, %v2452
    %2454 = vdwg.mxu0
    %2455 = vmatprep.subr.mxu0 %v455
    %2456 = vmatpush1.msra.mxu0 %v454
    %2457 = vmatprep.subr.mxu0 %v451
    %2458 = vmatpush1.msra.mxu0 %v450
    %2459 = vmatprep.subr.mxu0 %v447
    %2460 = vmatpush1.msra.mxu0 %v446
    %2461 = vmatprep.subr.mxu0 %v443
    %2462 = vmatpush1.msra.mxu0 %v442
    %2463 = vmatprep.subr.mxu0 %v439
    %2464 = vmatpush1.msra.mxu0 %v438
    %2465 = vmatprep.subr.mxu0 %v435
    %2466 = vmatpush1.msra.mxu0 %v434
    %2467 = vmatprep.subr.mxu0 %v431
    %2468 = vmatpush1.msra.mxu0 %v430
    %2469 = vmatprep.subr.mxu0 %v427
    %2470 = vmatpush1.msra.mxu0 %v426
    %2471 = vmatprep.subr.mxu0 %v423
    %2472 = vmatpush1.msra.mxu0 %v422
    %2473 = vmatprep.subr.mxu0 %v419
    %2474 = vmatpush1.msra.mxu0 %v418
    %2475 = vmatprep.subr.mxu0 %v415
    %2476 = vmatpush1.msra.mxu0 %v414
    %2477 = vmatprep.subr.mxu0 %v411
    %2478 = vmatpush1.msra.mxu0 %v410
    %2479 = vmatprep.subr.mxu0 %v407
    %2480 = vmatpush1.msra.mxu0 %v406
    %2481 = vmatprep.subr.mxu0 %v403
    %2482 = vmatpush1.msra.mxu0 %v402
    %2483 = vmatprep.subr.mxu0 %v399
    %2484 = vmatpush1.msra.mxu0 %v398
    %2485 = vmatprep.subr.mxu0 %v395
    %2486 = vmatpush1.msra.mxu0 %v394
    %2487 = vmatprep.subr.mxu0 0.0
    %2488 = vmatpush2.msra.mxu0 0.0
    %2489 = vmatprep.subr.mxu0 0.0
    %2490 = vmatpush2.msra.mxu0 0.0
    %2491 = vmatprep.subr.mxu0 0.0
    %2492 = vmatpush2.msra.mxu0 0.0
    %2493 = vmatprep.subr.mxu0 0.0
    %2494 = vmatpush2.msra.mxu0 0.0
    %2495 = vmatprep.subr.mxu0 0.0
    %2496 = vmatpush2.msra.mxu0 0.0
    %2497 = vmatprep.subr.mxu0 0.0
    %2498 = vmatpush2.msra.mxu0 0.0
    %2499 = vmatprep.subr.mxu0 0.0
    %2500 = vmatpush2.msra.mxu0 0.0
    %2501 = vmatprep.subr.mxu0 0.0
    %2502 = vmatpush2.msra.mxu0 0.0
    %2503 = vmatprep.subr.mxu0 0.0
    %2504 = vmatpush2.msra.mxu0 0.0
    %2505 = vmatprep.subr.mxu0 0.0
    %2506 = vmatpush2.msra.mxu0 0.0
    %2507 = vmatprep.subr.mxu0 0.0
    %2508 = vmatpush2.msra.mxu0 0.0
    %2509 = vmatprep.subr.mxu0 0.0
    %2510 = vmatpush2.msra.mxu0 0.0
    %2511 = vmatprep.subr.mxu0 0.0
    %2512 = vmatpush2.msra.mxu0 0.0
    %2513 = vmatprep.subr.mxu0 0.0
    %2514 = vmatpush2.msra.mxu0 0.0
    %2515 = vmatprep.subr.mxu0 0.0
    %2516 = vmatpush2.msra.mxu0 0.0
    %2517 = vmatprep.subr.mxu0 0.0
    %2518 = vmatpush2.msra.mxu0 0.0
    %2519 = vmatprep.mubr.f32.mxu0 0.0
    %2520 = vmatmul.mubr.f32.gmra.mxu0 %v2381
    %v2521 = vpop.f32.mrf.mxu0
    %v2522 = vadd.f32 %v469, %v2521
    %v2523 = vpop.f32.mrf.mxu0
    %v2524 = vadd.f32 %v473, %v2523
    %2525 = vdwg.mxu0
    %s2526 = scalar_lea.vmem [#allocation2], 128
    %v2527 = vld [vmem:[%s2526] sm:$0xff]
    %v2528 = vld [vmem:[%s2526 + $0x8] sm:$0xff]
    %v2529 = vld [vmem:[%s2526 + $0x10] sm:$0xff]
    %v2530 = vld [vmem:[%s2526 + $0x18] sm:$0xff]
    %2531 = vmatprep.subr.mxu0 %v325
    %2532 = vmatpush1.msra.mxu0 %v324
    %2533 = vmatprep.subr.mxu0 %v321
    %2534 = vmatpush1.msra.mxu0 %v320
    %2535 = vmatprep.subr.mxu0 %v317
    %2536 = vmatpush1.msra.mxu0 %v316
    %2537 = vmatprep.subr.mxu0 %v313
    %2538 = vmatpush1.msra.mxu0 %v312
    %2539 = vmatprep.subr.mxu0 %v309
    %2540 = vmatpush1.msra.mxu0 %v308
    %2541 = vmatprep.subr.mxu0 %v305
    %2542 = vmatpush1.msra.mxu0 %v304
    %2543 = vmatprep.subr.mxu0 %v301
    %2544 = vmatpush1.msra.mxu0 %v300
    %2545 = vmatprep.subr.mxu0 %v297
    %2546 = vmatpush1.msra.mxu0 %v296
    %2547 = vmatprep.subr.mxu0 %v293
    %2548 = vmatpush1.msra.mxu0 %v292
    %2549 = vmatprep.subr.mxu0 %v289
    %2550 = vmatpush1.msra.mxu0 %v288
    %2551 = vmatprep.subr.mxu0 %v285
    %2552 = vmatpush1.msra.mxu0 %v284
    %2553 = vmatprep.subr.mxu0 %v281
    %2554 = vmatpush1.msra.mxu0 %v280
    %2555 = vmatprep.subr.mxu0 %v277
    %2556 = vmatpush1.msra.mxu0 %v276
    %2557 = vmatprep.subr.mxu0 %v273
    %2558 = vmatpush1.msra.mxu0 %v272
    %2559 = vmatprep.subr.mxu0 %v269
    %2560 = vmatpush1.msra.mxu0 %v268
    %2561 = vmatprep.subr.mxu0 %v265
    %2562 = vmatpush1.msra.mxu0 %v264
    %2563 = vmatprep.subr.mxu0 0.0
    %2564 = vmatpush2.msra.mxu0 0.0
    %2565 = vmatprep.subr.mxu0 0.0
    %2566 = vmatpush2.msra.mxu0 0.0
    %2567 = vmatprep.subr.mxu0 0.0
    %2568 = vmatpush2.msra.mxu0 0.0
    %2569 = vmatprep.subr.mxu0 0.0
    %2570 = vmatpush2.msra.mxu0 0.0
    %2571 = vmatprep.subr.mxu0 0.0
    %2572 = vmatpush2.msra.mxu0 0.0
    %2573 = vmatprep.subr.mxu0 0.0
    %2574 = vmatpush2.msra.mxu0 0.0
    %2575 = vmatprep.subr.mxu0 0.0
    %2576 = vmatpush2.msra.mxu0 0.0
    %2577 = vmatprep.subr.mxu0 0.0
    %2578 = vmatpush2.msra.mxu0 0.0
    %2579 = vmatprep.subr.mxu0 0.0
    %2580 = vmatpush2.msra.mxu0 0.0
    %2581 = vmatprep.subr.mxu0 0.0
    %2582 = vmatpush2.msra.mxu0 0.0
    %2583 = vmatprep.subr.mxu0 0.0
    %2584 = vmatpush2.msra.mxu0 0.0
    %2585 = vmatprep.subr.mxu0 0.0
    %2586 = vmatpush2.msra.mxu0 0.0
    %2587 = vmatprep.subr.mxu0 0.0
    %2588 = vmatpush2.msra.mxu0 0.0
    %2589 = vmatprep.subr.mxu0 0.0
    %2590 = vmatpush2.msra.mxu0 0.0
    %2591 = vmatprep.subr.mxu0 0.0
    %2592 = vmatpush2.msra.mxu0 0.0
    %2593 = vmatprep.subr.mxu0 0.0
    %2594 = vmatpush2.msra.mxu0 0.0
    %2595 = vmatprep.mubr.f32.mxu0 0.0
    %2596 = vmatmul.mubr.f32.gmra.mxu0 %v2217
    %v2597 = vpop.f32.mrf.mxu0
    %v2598 = vadd.f32 0.0, %v2597
    %v2599 = vpop.f32.mrf.mxu0
    %v2600 = vadd.f32 0.0, %v2599
    %2601 = vdwg.mxu0
    %2602 = vmatprep.subr.mxu0 %v327
    %2603 = vmatpush1.msra.mxu0 %v326
    %2604 = vmatprep.subr.mxu0 %v323
    %2605 = vmatpush1.msra.mxu0 %v322
    %2606 = vmatprep.subr.mxu0 %v319
    %2607 = vmatpush1.msra.mxu0 %v318
    %2608 = vmatprep.subr.mxu0 %v315
    %2609 = vmatpush1.msra.mxu0 %v314
    %2610 = vmatprep.subr.mxu0 %v311
    %2611 = vmatpush1.msra.mxu0 %v310
    %2612 = vmatprep.subr.mxu0 %v307
    %2613 = vmatpush1.msra.mxu0 %v306
    %2614 = vmatprep.subr.mxu0 %v303
    %2615 = vmatpush1.msra.mxu0 %v302
    %2616 = vmatprep.subr.mxu0 %v299
    %2617 = vmatpush1.msra.mxu0 %v298
    %2618 = vmatprep.subr.mxu0 %v295
    %2619 = vmatpush1.msra.mxu0 %v294
    %2620 = vmatprep.subr.mxu0 %v291
    %2621 = vmatpush1.msra.mxu0 %v290
    %2622 = vmatprep.subr.mxu0 %v287
    %2623 = vmatpush1.msra.mxu0 %v286
    %2624 = vmatprep.subr.mxu0 %v283
    %2625 = vmatpush1.msra.mxu0 %v282
    %2626 = vmatprep.subr.mxu0 %v279
    %2627 = vmatpush1.msra.mxu0 %v278
    %2628 = vmatprep.subr.mxu0 %v275
    %2629 = vmatpush1.msra.mxu0 %v274
    %2630 = vmatprep.subr.mxu0 %v271
    %2631 = vmatpush1.msra.mxu0 %v270
    %2632 = vmatprep.subr.mxu0 %v267
    %2633 = vmatpush1.msra.mxu0 %v266
    %2634 = vmatprep.subr.mxu0 0.0
    %2635 = vmatpush2.msra.mxu0 0.0
    %2636 = vmatprep.subr.mxu0 0.0
    %2637 = vmatpush2.msra.mxu0 0.0
    %2638 = vmatprep.subr.mxu0 0.0
    %2639 = vmatpush2.msra.mxu0 0.0
    %2640 = vmatprep.subr.mxu0 0.0
    %2641 = vmatpush2.msra.mxu0 0.0
    %2642 = vmatprep.subr.mxu0 0.0
    %2643 = vmatpush2.msra.mxu0 0.0
    %2644 = vmatprep.subr.mxu0 0.0
    %2645 = vmatpush2.msra.mxu0 0.0
    %2646 = vmatprep.subr.mxu0 0.0
    %2647 = vmatpush2.msra.mxu0 0.0
    %2648 = vmatprep.subr.mxu0 0.0
    %2649 = vmatpush2.msra.mxu0 0.0
    %2650 = vmatprep.subr.mxu0 0.0
    %2651 = vmatpush2.msra.mxu0 0.0
    %2652 = vmatprep.subr.mxu0 0.0
    %2653 = vmatpush2.msra.mxu0 0.0
    %2654 = vmatprep.subr.mxu0 0.0
    %2655 = vmatpush2.msra.mxu0 0.0
    %2656 = vmatprep.subr.mxu0 0.0
    %2657 = vmatpush2.msra.mxu0 0.0
    %2658 = vmatprep.subr.mxu0 0.0
    %2659 = vmatpush2.msra.mxu0 0.0
    %2660 = vmatprep.subr.mxu0 0.0
    %2661 = vmatpush2.msra.mxu0 0.0
    %2662 = vmatprep.subr.mxu0 0.0
    %2663 = vmatpush2.msra.mxu0 0.0
    %2664 = vmatprep.subr.mxu0 0.0
    %2665 = vmatpush2.msra.mxu0 0.0
    %2666 = vmatprep.mubr.f32.mxu0 0.0
    %2667 = vmatmul.mubr.f32.gmra.mxu0 %v2217
    %v2668 = vpop.f32.mrf.mxu0
    %v2669 = vadd.f32 0.0, %v2668
    %v2670 = vpop.f32.mrf.mxu0
    %v2671 = vadd.f32 0.0, %v2670
    %2672 = vdwg.mxu0
    %v2673 = vadd.f32 %v2527, %v2598
    %v2674 = vadd.f32 %v2528, %v2600
    %v2675 = vadd.f32 %v2529, %v2669
    %v2676 = vadd.f32 %v2530, %v2671
    %v2677 = vmul.f32 %v2673, 0.5
    %v2678 = vmul.f32 %v2674, 0.5
    %v2679 = vmul.f32 %v2675, 0.5
    %v2680 = vtanh.pop %v2677
    %v2681 = vtanh.pop %v2678
    %v2682 = vtanh.pop %v2679
    %v2683 = vmul.f32 %v2680, 0.5
    %v2684 = vmul.f32 %v2681, 0.5
    %v2685 = vmul.f32 %v2682, 0.5
    %v2686 = vadd.f32 %v2683, 0.5
    %v2687 = vadd.f32 %v2684, 0.5
    %v2688 = vadd.f32 %v2685, 0.5
    %v2689 = vtanh.pop %v2676
    %v2690 = vmul.f32 %v2687, %v2215
    %v2691 = vmul.f32 %v2686, %v2689
    %v2692 = vadd.f32 %v2690, %v2691
    %v2693 = vtanh.pop %v2692
    %v2694 = vmul.f32 %v2688, %v2693
    %2695 = vmatprep.subr.mxu0 %v389
    %2696 = vmatpush1.msra.mxu0 %v388
    %2697 = vmatprep.subr.mxu0 %v385
    %2698 = vmatpush1.msra.mxu0 %v384
    %2699 = vmatprep.subr.mxu0 %v381
    %2700 = vmatpush1.msra.mxu0 %v380
    %2701 = vmatprep.subr.mxu0 %v377
    %2702 = vmatpush1.msra.mxu0 %v376
    %2703 = vmatprep.subr.mxu0 %v373
    %2704 = vmatpush1.msra.mxu0 %v372
    %2705 = vmatprep.subr.mxu0 %v369
    %2706 = vmatpush1.msra.mxu0 %v368
    %2707 = vmatprep.subr.mxu0 %v365
    %2708 = vmatpush1.msra.mxu0 %v364
    %2709 = vmatprep.subr.mxu0 %v361
    %2710 = vmatpush1.msra.mxu0 %v360
    %2711 = vmatprep.subr.mxu0 %v357
    %2712 = vmatpush1.msra.mxu0 %v356
    %2713 = vmatprep.subr.mxu0 %v353
    %2714 = vmatpush1.msra.mxu0 %v352
    %2715 = vmatprep.subr.mxu0 %v349
    %2716 = vmatpush1.msra.mxu0 %v348
    %2717 = vmatprep.subr.mxu0 %v345
    %2718 = vmatpush1.msra.mxu0 %v344
    %2719 = vmatprep.subr.mxu0 %v341
    %2720 = vmatpush1.msra.mxu0 %v340
    %2721 = vmatprep.subr.mxu0 %v337
    %2722 = vmatpush1.msra.mxu0 %v336
    %2723 = vmatprep.subr.mxu0 %v333
    %2724 = vmatpush1.msra.mxu0 %v332
    %2725 = vmatprep.subr.mxu0 %v329
    %2726 = vmatpush1.msra.mxu0 %v328
    %2727 = vmatprep.subr.mxu0 0.0
    %2728 = vmatpush2.msra.mxu0 0.0
    %2729 = vmatprep.subr.mxu0 0.0
    %2730 = vmatpush2.msra.mxu0 0.0
    %2731 = vmatprep.subr.mxu0 0.0
    %2732 = vmatpush2.msra.mxu0 0.0
    %2733 = vmatprep.subr.mxu0 0.0
    %2734 = vmatpush2.msra.mxu0 0.0
    %2735 = vmatprep.subr.mxu0 0.0
    %2736 = vmatpush2.msra.mxu0 0.0
    %2737 = vmatprep.subr.mxu0 0.0
    %2738 = vmatpush2.msra.mxu0 0.0
    %2739 = vmatprep.subr.mxu0 0.0
    %2740 = vmatpush2.msra.mxu0 0.0
    %2741 = vmatprep.subr.mxu0 0.0
    %2742 = vmatpush2.msra.mxu0 0.0
    %2743 = vmatprep.subr.mxu0 0.0
    %2744 = vmatpush2.msra.mxu0 0.0
    %2745 = vmatprep.subr.mxu0 0.0
    %2746 = vmatpush2.msra.mxu0 0.0
    %2747 = vmatprep.subr.mxu0 0.0
    %2748 = vmatpush2.msra.mxu0 0.0
    %2749 = vmatprep.subr.mxu0 0.0
    %2750 = vmatpush2.msra.mxu0 0.0
    %2751 = vmatprep.subr.mxu0 0.0
    %2752 = vmatpush2.msra.mxu0 0.0
    %2753 = vmatprep.subr.mxu0 0.0
    %2754 = vmatpush2.msra.mxu0 0.0
    %2755 = vmatprep.subr.mxu0 0.0
    %2756 = vmatpush2.msra.mxu0 0.0
    %2757 = vmatprep.subr.mxu0 0.0
    %2758 = vmatpush2.msra.mxu0 0.0
    %2759 = vmatprep.mubr.f32.mxu0 0.0
    %2760 = vmatmul.mubr.f32.gmra.mxu0 %v2694
    %v2761 = vpop.f32.mrf.mxu0
    %v2762 = vadd.f32 0.0, %v2761
    %v2763 = vpop.f32.mrf.mxu0
    %v2764 = vadd.f32 0.0, %v2763
    %2765 = vdwg.mxu0
    %2766 = vmatprep.subr.mxu0 %v391
    %2767 = vmatpush1.msra.mxu0 %v390
    %2768 = vmatprep.subr.mxu0 %v387
    %2769 = vmatpush1.msra.mxu0 %v386
    %2770 = vmatprep.subr.mxu0 %v383
    %2771 = vmatpush1.msra.mxu0 %v382
    %2772 = vmatprep.subr.mxu0 %v379
    %2773 = vmatpush1.msra.mxu0 %v378
    %2774 = vmatprep.subr.mxu0 %v375
    %2775 = vmatpush1.msra.mxu0 %v374
    %2776 = vmatprep.subr.mxu0 %v371
    %2777 = vmatpush1.msra.mxu0 %v370
    %2778 = vmatprep.subr.mxu0 %v367
    %2779 = vmatpush1.msra.mxu0 %v366
    %2780 = vmatprep.subr.mxu0 %v363
    %2781 = vmatpush1.msra.mxu0 %v362
    %2782 = vmatprep.subr.mxu0 %v359
    %2783 = vmatpush1.msra.mxu0 %v358
    %2784 = vmatprep.subr.mxu0 %v355
    %2785 = vmatpush1.msra.mxu0 %v354
    %2786 = vmatprep.subr.mxu0 %v351
    %2787 = vmatpush1.msra.mxu0 %v350
    %2788 = vmatprep.subr.mxu0 %v347
    %2789 = vmatpush1.msra.mxu0 %v346
    %2790 = vmatprep.subr.mxu0 %v343
    %2791 = vmatpush1.msra.mxu0 %v342
    %2792 = vmatprep.subr.mxu0 %v339
    %2793 = vmatpush1.msra.mxu0 %v338
    %2794 = vmatprep.subr.mxu0 %v335
    %2795 = vmatpush1.msra.mxu0 %v334
    %2796 = vmatprep.subr.mxu0 %v331
    %2797 = vmatpush1.msra.mxu0 %v330
    %2798 = vmatprep.subr.mxu0 0.0
    %2799 = vmatpush2.msra.mxu0 0.0
    %2800 = vmatprep.subr.mxu0 0.0
    %2801 = vmatpush2.msra.mxu0 0.0
    %2802 = vmatprep.subr.mxu0 0.0
    %2803 = vmatpush2.msra.mxu0 0.0
    %2804 = vmatprep.subr.mxu0 0.0
    %2805 = vmatpush2.msra.mxu0 0.0
    %2806 = vmatprep.subr.mxu0 0.0
    %2807 = vmatpush2.msra.mxu0 0.0
    %2808 = vmatprep.subr.mxu0 0.0
    %2809 = vmatpush2.msra.mxu0 0.0
    %2810 = vmatprep.subr.mxu0 0.0
    %2811 = vmatpush2.msra.mxu0 0.0
    %2812 = vmatprep.subr.mxu0 0.0
    %2813 = vmatpush2.msra.mxu0 0.0
    %2814 = vmatprep.subr.mxu0 0.0
    %2815 = vmatpush2.msra.mxu0 0.0
    %2816 = vmatprep.subr.mxu0 0.0
    %2817 = vmatpush2.msra.mxu0 0.0
    %2818 = vmatprep.subr.mxu0 0.0
    %2819 = vmatpush2.msra.mxu0 0.0
    %2820 = vmatprep.subr.mxu0 0.0
    %2821 = vmatpush2.msra.mxu0 0.0
    %2822 = vmatprep.subr.mxu0 0.0
    %2823 = vmatpush2.msra.mxu0 0.0
    %2824 = vmatprep.subr.mxu0 0.0
    %2825 = vmatpush2.msra.mxu0 0.0
    %2826 = vmatprep.subr.mxu0 0.0
    %2827 = vmatpush2.msra.mxu0 0.0
    %2828 = vmatprep.subr.mxu0 0.0
    %2829 = vmatpush2.msra.mxu0 0.0
    %2830 = vmatprep.mubr.f32.mxu0 0.0
    %2831 = vmatmul.mubr.f32.gmra.mxu0 %v2694
    %v2832 = vpop.f32.mrf.mxu0
    %v2833 = vadd.f32 0.0, %v2832
    %v2834 = vpop.f32.mrf.mxu0
    %v2835 = vadd.f32 0.0, %v2834
    %2836 = vdwg.mxu0
    %v2837 = vadd.f32 %v2451, %v2762
    %v2838 = vadd.f32 %v2453, %v2764
    %v2839 = vadd.f32 %v2522, %v2833
    %v2840 = vadd.f32 %v2524, %v2835
    %v2841 = vmul.f32 %v2837, 0.5
    %v2842 = vmul.f32 %v2838, 0.5
    %v2843 = vmul.f32 %v2839, 0.5
    %v2844 = vtanh.pop %v2841
    %v2845 = vtanh.pop %v2842
    %v2846 = vtanh.pop %v2843
    %v2847 = vmul.f32 %v2844, 0.5
    %v2848 = vmul.f32 %v2845, 0.5
    %v2849 = vmul.f32 %v2846, 0.5
    %v2850 = vadd.f32 %v2847, 0.5
    %v2851 = vadd.f32 %v2848, 0.5
    %v2852 = vadd.f32 %v2849, 0.5
    %v2853 = vtanh.pop %v2840
    %v2854 = vmul.f32 %v2851, %v2379
    %v2855 = vmul.f32 %v2850, %v2853
    %v2856 = vadd.f32 %v2854, %v2855
    %v2857 = vtanh.pop %v2856
    %v2858 = vmul.f32 %v2852, %v2857
    %s2859 = scalar_lea.vmem [#allocation3], 32
    %2860 = vst [vmem:[%s2859] sm:$0xff] %v2858
    %2861 = vmatprep.subr.mxu0 %v453
    %2862 = vmatpush1.msra.mxu0 %v452
    %2863 = vmatprep.subr.mxu0 %v449
    %2864 = vmatpush1.msra.mxu0 %v448
    %2865 = vmatprep.subr.mxu0 %v445
    %2866 = vmatpush1.msra.mxu0 %v444
    %2867 = vmatprep.subr.mxu0 %v441
    %2868 = vmatpush1.msra.mxu0 %v440
    %2869 = vmatprep.subr.mxu0 %v437
    %2870 = vmatpush1.msra.mxu0 %v436
    %2871 = vmatprep.subr.mxu0 %v433
    %2872 = vmatpush1.msra.mxu0 %v432
    %2873 = vmatprep.subr.mxu0 %v429
    %2874 = vmatpush1.msra.mxu0 %v428
    %2875 = vmatprep.subr.mxu0 %v425
    %2876 = vmatpush1.msra.mxu0 %v424
    %2877 = vmatprep.subr.mxu0 %v421
    %2878 = vmatpush1.msra.mxu0 %v420
    %2879 = vmatprep.subr.mxu0 %v417
    %2880 = vmatpush1.msra.mxu0 %v416
    %2881 = vmatprep.subr.mxu0 %v413
    %2882 = vmatpush1.msra.mxu0 %v412
    %2883 = vmatprep.subr.mxu0 %v409
    %2884 = vmatpush1.msra.mxu0 %v408
    %2885 = vmatprep.subr.mxu0 %v405
    %2886 = vmatpush1.msra.mxu0 %v404
    %2887 = vmatprep.subr.mxu0 %v401
    %2888 = vmatpush1.msra.mxu0 %v400
    %2889 = vmatprep.subr.mxu0 %v397
    %2890 = vmatpush1.msra.mxu0 %v396
    %2891 = vmatprep.subr.mxu0 %v393
    %2892 = vmatpush1.msra.mxu0 %v392
    %2893 = vmatprep.subr.mxu0 0.0
    %2894 = vmatpush2.msra.mxu0 0.0
    %2895 = vmatprep.subr.mxu0 0.0
    %2896 = vmatpush2.msra.mxu0 0.0
    %2897 = vmatprep.subr.mxu0 0.0
    %2898 = vmatpush2.msra.mxu0 0.0
    %2899 = vmatprep.subr.mxu0 0.0
    %2900 = vmatpush2.msra.mxu0 0.0
    %2901 = vmatprep.subr.mxu0 0.0
    %2902 = vmatpush2.msra.mxu0 0.0
    %2903 = vmatprep.subr.mxu0 0.0
    %2904 = vmatpush2.msra.mxu0 0.0
    %2905 = vmatprep.subr.mxu0 0.0
    %2906 = vmatpush2.msra.mxu0 0.0
    %2907 = vmatprep.subr.mxu0 0.0
    %2908 = vmatpush2.msra.mxu0 0.0
    %2909 = vmatprep.subr.mxu0 0.0
    %2910 = vmatpush2.msra.mxu0 0.0
    %2911 = vmatprep.subr.mxu0 0.0
    %2912 = vmatpush2.msra.mxu0 0.0
    %2913 = vmatprep.subr.mxu0 0.0
    %2914 = vmatpush2.msra.mxu0 0.0
    %2915 = vmatprep.subr.mxu0 0.0
    %2916 = vmatpush2.msra.mxu0 0.0
    %2917 = vmatprep.subr.mxu0 0.0
    %2918 = vmatpush2.msra.mxu0 0.0
    %2919 = vmatprep.subr.mxu0 0.0
    %2920 = vmatpush2.msra.mxu0 0.0
    %2921 = vmatprep.subr.mxu0 0.0
    %2922 = vmatpush2.msra.mxu0 0.0
    %2923 = vmatprep.subr.mxu0 0.0
    %2924 = vmatpush2.msra.mxu0 0.0
    %2925 = vmatprep.mubr.f32.mxu0 0.0
    %2926 = vmatmul.mubr.f32.gmra.mxu0 %v2858
    %v2927 = vpop.f32.mrf.mxu0
    %v2928 = vadd.f32 %v461, %v2927
    %v2929 = vpop.f32.mrf.mxu0
    %v2930 = vadd.f32 %v465, %v2929
    %2931 = vdwg.mxu0
    %2932 = vmatprep.subr.mxu0 %v455
    %2933 = vmatpush1.msra.mxu0 %v454
    %2934 = vmatprep.subr.mxu0 %v451
    %2935 = vmatpush1.msra.mxu0 %v450
    %2936 = vmatprep.subr.mxu0 %v447
    %2937 = vmatpush1.msra.mxu0 %v446
    %2938 = vmatprep.subr.mxu0 %v443
    %2939 = vmatpush1.msra.mxu0 %v442
    %2940 = vmatprep.subr.mxu0 %v439
    %2941 = vmatpush1.msra.mxu0 %v438
    %2942 = vmatprep.subr.mxu0 %v435
    %2943 = vmatpush1.msra.mxu0 %v434
    %2944 = vmatprep.subr.mxu0 %v431
    %2945 = vmatpush1.msra.mxu0 %v430
    %2946 = vmatprep.subr.mxu0 %v427
    %2947 = vmatpush1.msra.mxu0 %v426
    %2948 = vmatprep.subr.mxu0 %v423
    %2949 = vmatpush1.msra.mxu0 %v422
    %2950 = vmatprep.subr.mxu0 %v419
    %2951 = vmatpush1.msra.mxu0 %v418
    %2952 = vmatprep.subr.mxu0 %v415
    %2953 = vmatpush1.msra.mxu0 %v414
    %2954 = vmatprep.subr.mxu0 %v411
    %2955 = vmatpush1.msra.mxu0 %v410
    %2956 = vmatprep.subr.mxu0 %v407
    %2957 = vmatpush1.msra.mxu0 %v406
    %2958 = vmatprep.subr.mxu0 %v403
    %2959 = vmatpush1.msra.mxu0 %v402
    %2960 = vmatprep.subr.mxu0 %v399
    %2961 = vmatpush1.msra.mxu0 %v398
    %2962 = vmatprep.subr.mxu0 %v395
    %2963 = vmatpush1.msra.mxu0 %v394
    %2964 = vmatprep.subr.mxu0 0.0
    %2965 = vmatpush2.msra.mxu0 0.0
    %2966 = vmatprep.subr.mxu0 0.0
    %2967 = vmatpush2.msra.mxu0 0.0
    %2968 = vmatprep.subr.mxu0 0.0
    %2969 = vmatpush2.msra.mxu0 0.0
    %2970 = vmatprep.subr.mxu0 0.0
    %2971 = vmatpush2.msra.mxu0 0.0
    %2972 = vmatprep.subr.mxu0 0.0
    %2973 = vmatpush2.msra.mxu0 0.0
    %2974 = vmatprep.subr.mxu0 0.0
    %2975 = vmatpush2.msra.mxu0 0.0
    %2976 = vmatprep.subr.mxu0 0.0
    %2977 = vmatpush2.msra.mxu0 0.0
    %2978 = vmatprep.subr.mxu0 0.0
    %2979 = vmatpush2.msra.mxu0 0.0
    %2980 = vmatprep.subr.mxu0 0.0
    %2981 = vmatpush2.msra.mxu0 0.0
    %2982 = vmatprep.subr.mxu0 0.0
    %2983 = vmatpush2.msra.mxu0 0.0
    %2984 = vmatprep.subr.mxu0 0.0
    %2985 = vmatpush2.msra.mxu0 0.0
    %2986 = vmatprep.subr.mxu0 0.0
    %2987 = vmatpush2.msra.mxu0 0.0
    %2988 = vmatprep.subr.mxu0 0.0
    %2989 = vmatpush2.msra.mxu0 0.0
    %2990 = vmatprep.subr.mxu0 0.0
    %2991 = vmatpush2.msra.mxu0 0.0
    %2992 = vmatprep.subr.mxu0 0.0
    %2993 = vmatpush2.msra.mxu0 0.0
    %2994 = vmatprep.subr.mxu0 0.0
    %2995 = vmatpush2.msra.mxu0 0.0
    %2996 = vmatprep.mubr.f32.mxu0 0.0
    %2997 = vmatmul.mubr.f32.gmra.mxu0 %v2858
    %v2998 = vpop.f32.mrf.mxu0
    %v2999 = vadd.f32 %v469, %v2998
    %v3000 = vpop.f32.mrf.mxu0
    %v3001 = vadd.f32 %v473, %v3000
    %3002 = vdwg.mxu0
    %s3003 = scalar_lea.vmem [#allocation2], 160
    %v3004 = vld [vmem:[%s3003] sm:$0xff]
    %v3005 = vld [vmem:[%s3003 + $0x8] sm:$0xff]
    %v3006 = vld [vmem:[%s3003 + $0x10] sm:$0xff]
    %v3007 = vld [vmem:[%s3003 + $0x18] sm:$0xff]
    %3008 = vmatprep.subr.mxu0 %v325
    %3009 = vmatpush1.msra.mxu0 %v324
    %3010 = vmatprep.subr.mxu0 %v321
    %3011 = vmatpush1.msra.mxu0 %v320
    %3012 = vmatprep.subr.mxu0 %v317
    %3013 = vmatpush1.msra.mxu0 %v316
    %3014 = vmatprep.subr.mxu0 %v313
    %3015 = vmatpush1.msra.mxu0 %v312
    %3016 = vmatprep.subr.mxu0 %v309
    %3017 = vmatpush1.msra.mxu0 %v308
    %3018 = vmatprep.subr.mxu0 %v305
    %3019 = vmatpush1.msra.mxu0 %v304
    %3020 = vmatprep.subr.mxu0 %v301
    %3021 = vmatpush1.msra.mxu0 %v300
    %3022 = vmatprep.subr.mxu0 %v297
    %3023 = vmatpush1.msra.mxu0 %v296
    %3024 = vmatprep.subr.mxu0 %v293
    %3025 = vmatpush1.msra.mxu0 %v292
    %3026 = vmatprep.subr.mxu0 %v289
    %3027 = vmatpush1.msra.mxu0 %v288
    %3028 = vmatprep.subr.mxu0 %v285
    %3029 = vmatpush1.msra.mxu0 %v284
    %3030 = vmatprep.subr.mxu0 %v281
    %3031 = vmatpush1.msra.mxu0 %v280
    %3032 = vmatprep.subr.mxu0 %v277
    %3033 = vmatpush1.msra.mxu0 %v276
    %3034 = vmatprep.subr.mxu0 %v273
    %3035 = vmatpush1.msra.mxu0 %v272
    %3036 = vmatprep.subr.mxu0 %v269
    %3037 = vmatpush1.msra.mxu0 %v268
    %3038 = vmatprep.subr.mxu0 %v265
    %3039 = vmatpush1.msra.mxu0 %v264
    %3040 = vmatprep.subr.mxu0 0.0
    %3041 = vmatpush2.msra.mxu0 0.0
    %3042 = vmatprep.subr.mxu0 0.0
    %3043 = vmatpush2.msra.mxu0 0.0
    %3044 = vmatprep.subr.mxu0 0.0
    %3045 = vmatpush2.msra.mxu0 0.0
    %3046 = vmatprep.subr.mxu0 0.0
    %3047 = vmatpush2.msra.mxu0 0.0
    %3048 = vmatprep.subr.mxu0 0.0
    %3049 = vmatpush2.msra.mxu0 0.0
    %3050 = vmatprep.subr.mxu0 0.0
    %3051 = vmatpush2.msra.mxu0 0.0
    %3052 = vmatprep.subr.mxu0 0.0
    %3053 = vmatpush2.msra.mxu0 0.0
    %3054 = vmatprep.subr.mxu0 0.0
    %3055 = vmatpush2.msra.mxu0 0.0
    %3056 = vmatprep.subr.mxu0 0.0
    %3057 = vmatpush2.msra.mxu0 0.0
    %3058 = vmatprep.subr.mxu0 0.0
    %3059 = vmatpush2.msra.mxu0 0.0
    %3060 = vmatprep.subr.mxu0 0.0
    %3061 = vmatpush2.msra.mxu0 0.0
    %3062 = vmatprep.subr.mxu0 0.0
    %3063 = vmatpush2.msra.mxu0 0.0
    %3064 = vmatprep.subr.mxu0 0.0
    %3065 = vmatpush2.msra.mxu0 0.0
    %3066 = vmatprep.subr.mxu0 0.0
    %3067 = vmatpush2.msra.mxu0 0.0
    %3068 = vmatprep.subr.mxu0 0.0
    %3069 = vmatpush2.msra.mxu0 0.0
    %3070 = vmatprep.subr.mxu0 0.0
    %3071 = vmatpush2.msra.mxu0 0.0
    %3072 = vmatprep.mubr.f32.mxu0 0.0
    %3073 = vmatmul.mubr.f32.gmra.mxu0 %v2694
    %v3074 = vpop.f32.mrf.mxu0
    %v3075 = vadd.f32 0.0, %v3074
    %v3076 = vpop.f32.mrf.mxu0
    %v3077 = vadd.f32 0.0, %v3076
    %3078 = vdwg.mxu0
    %3079 = vmatprep.subr.mxu0 %v327
    %3080 = vmatpush1.msra.mxu0 %v326
    %3081 = vmatprep.subr.mxu0 %v323
    %3082 = vmatpush1.msra.mxu0 %v322
    %3083 = vmatprep.subr.mxu0 %v319
    %3084 = vmatpush1.msra.mxu0 %v318
    %3085 = vmatprep.subr.mxu0 %v315
    %3086 = vmatpush1.msra.mxu0 %v314
    %3087 = vmatprep.subr.mxu0 %v311
    %3088 = vmatpush1.msra.mxu0 %v310
    %3089 = vmatprep.subr.mxu0 %v307
    %3090 = vmatpush1.msra.mxu0 %v306
    %3091 = vmatprep.subr.mxu0 %v303
    %3092 = vmatpush1.msra.mxu0 %v302
    %3093 = vmatprep.subr.mxu0 %v299
    %3094 = vmatpush1.msra.mxu0 %v298
    %3095 = vmatprep.subr.mxu0 %v295
    %3096 = vmatpush1.msra.mxu0 %v294
    %3097 = vmatprep.subr.mxu0 %v291
    %3098 = vmatpush1.msra.mxu0 %v290
    %3099 = vmatprep.subr.mxu0 %v287
    %3100 = vmatpush1.msra.mxu0 %v286
    %3101 = vmatprep.subr.mxu0 %v283
    %3102 = vmatpush1.msra.mxu0 %v282
    %3103 = vmatprep.subr.mxu0 %v279
    %3104 = vmatpush1.msra.mxu0 %v278
    %3105 = vmatprep.subr.mxu0 %v275
    %3106 = vmatpush1.msra.mxu0 %v274
    %3107 = vmatprep.subr.mxu0 %v271
    %3108 = vmatpush1.msra.mxu0 %v270
    %3109 = vmatprep.subr.mxu0 %v267
    %3110 = vmatpush1.msra.mxu0 %v266
    %3111 = vmatprep.subr.mxu0 0.0
    %3112 = vmatpush2.msra.mxu0 0.0
    %3113 = vmatprep.subr.mxu0 0.0
    %3114 = vmatpush2.msra.mxu0 0.0
    %3115 = vmatprep.subr.mxu0 0.0
    %3116 = vmatpush2.msra.mxu0 0.0
    %3117 = vmatprep.subr.mxu0 0.0
    %3118 = vmatpush2.msra.mxu0 0.0
    %3119 = vmatprep.subr.mxu0 0.0
    %3120 = vmatpush2.msra.mxu0 0.0
    %3121 = vmatprep.subr.mxu0 0.0
    %3122 = vmatpush2.msra.mxu0 0.0
    %3123 = vmatprep.subr.mxu0 0.0
    %3124 = vmatpush2.msra.mxu0 0.0
    %3125 = vmatprep.subr.mxu0 0.0
    %3126 = vmatpush2.msra.mxu0 0.0
    %3127 = vmatprep.subr.mxu0 0.0
    %3128 = vmatpush2.msra.mxu0 0.0
    %3129 = vmatprep.subr.mxu0 0.0
    %3130 = vmatpush2.msra.mxu0 0.0
    %3131 = vmatprep.subr.mxu0 0.0
    %3132 = vmatpush2.msra.mxu0 0.0
    %3133 = vmatprep.subr.mxu0 0.0
    %3134 = vmatpush2.msra.mxu0 0.0
    %3135 = vmatprep.subr.mxu0 0.0
    %3136 = vmatpush2.msra.mxu0 0.0
    %3137 = vmatprep.subr.mxu0 0.0
    %3138 = vmatpush2.msra.mxu0 0.0
    %3139 = vmatprep.subr.mxu0 0.0
    %3140 = vmatpush2.msra.mxu0 0.0
    %3141 = vmatprep.subr.mxu0 0.0
    %3142 = vmatpush2.msra.mxu0 0.0
    %3143 = vmatprep.mubr.f32.mxu0 0.0
    %3144 = vmatmul.mubr.f32.gmra.mxu0 %v2694
    %v3145 = vpop.f32.mrf.mxu0
    %v3146 = vadd.f32 0.0, %v3145
    %v3147 = vpop.f32.mrf.mxu0
    %v3148 = vadd.f32 0.0, %v3147
    %3149 = vdwg.mxu0
    %v3150 = vadd.f32 %v3004, %v3075
    %v3151 = vadd.f32 %v3005, %v3077
    %v3152 = vadd.f32 %v3006, %v3146
    %v3153 = vadd.f32 %v3007, %v3148
    %v3154 = vmul.f32 %v3150, 0.5
    %v3155 = vmul.f32 %v3151, 0.5
    %v3156 = vmul.f32 %v3152, 0.5
    %v3157 = vtanh.pop %v3154
    %v3158 = vtanh.pop %v3155
    %v3159 = vtanh.pop %v3156
    %v3160 = vmul.f32 %v3157, 0.5
    %v3161 = vmul.f32 %v3158, 0.5
    %v3162 = vmul.f32 %v3159, 0.5
    %v3163 = vadd.f32 %v3160, 0.5
    %v3164 = vadd.f32 %v3161, 0.5
    %v3165 = vadd.f32 %v3162, 0.5
    %v3166 = vtanh.pop %v3153
    %v3167 = vmul.f32 %v3164, %v2692
    %v3168 = vmul.f32 %v3163, %v3166
    %v3169 = vadd.f32 %v3167, %v3168
    %v3170 = vtanh.pop %v3169
    %v3171 = vmul.f32 %v3165, %v3170
    %3172 = vmatprep.subr.mxu0 %v389
    %3173 = vmatpush1.msra.mxu0 %v388
    %3174 = vmatprep.subr.mxu0 %v385
    %3175 = vmatpush1.msra.mxu0 %v384
    %3176 = vmatprep.subr.mxu0 %v381
    %3177 = vmatpush1.msra.mxu0 %v380
    %3178 = vmatprep.subr.mxu0 %v377
    %3179 = vmatpush1.msra.mxu0 %v376
    %3180 = vmatprep.subr.mxu0 %v373
    %3181 = vmatpush1.msra.mxu0 %v372
    %3182 = vmatprep.subr.mxu0 %v369
    %3183 = vmatpush1.msra.mxu0 %v368
    %3184 = vmatprep.subr.mxu0 %v365
    %3185 = vmatpush1.msra.mxu0 %v364
    %3186 = vmatprep.subr.mxu0 %v361
    %3187 = vmatpush1.msra.mxu0 %v360
    %3188 = vmatprep.subr.mxu0 %v357
    %3189 = vmatpush1.msra.mxu0 %v356
    %3190 = vmatprep.subr.mxu0 %v353
    %3191 = vmatpush1.msra.mxu0 %v352
    %3192 = vmatprep.subr.mxu0 %v349
    %3193 = vmatpush1.msra.mxu0 %v348
    %3194 = vmatprep.subr.mxu0 %v345
    %3195 = vmatpush1.msra.mxu0 %v344
    %3196 = vmatprep.subr.mxu0 %v341
    %3197 = vmatpush1.msra.mxu0 %v340
    %3198 = vmatprep.subr.mxu0 %v337
    %3199 = vmatpush1.msra.mxu0 %v336
    %3200 = vmatprep.subr.mxu0 %v333
    %3201 = vmatpush1.msra.mxu0 %v332
    %3202 = vmatprep.subr.mxu0 %v329
    %3203 = vmatpush1.msra.mxu0 %v328
    %3204 = vmatprep.subr.mxu0 0.0
    %3205 = vmatpush2.msra.mxu0 0.0
    %3206 = vmatprep.subr.mxu0 0.0
    %3207 = vmatpush2.msra.mxu0 0.0
    %3208 = vmatprep.subr.mxu0 0.0
    %3209 = vmatpush2.msra.mxu0 0.0
    %3210 = vmatprep.subr.mxu0 0.0
    %3211 = vmatpush2.msra.mxu0 0.0
    %3212 = vmatprep.subr.mxu0 0.0
    %3213 = vmatpush2.msra.mxu0 0.0
    %3214 = vmatprep.subr.mxu0 0.0
    %3215 = vmatpush2.msra.mxu0 0.0
    %3216 = vmatprep.subr.mxu0 0.0
    %3217 = vmatpush2.msra.mxu0 0.0
    %3218 = vmatprep.subr.mxu0 0.0
    %3219 = vmatpush2.msra.mxu0 0.0
    %3220 = vmatprep.subr.mxu0 0.0
    %3221 = vmatpush2.msra.mxu0 0.0
    %3222 = vmatprep.subr.mxu0 0.0
    %3223 = vmatpush2.msra.mxu0 0.0
    %3224 = vmatprep.subr.mxu0 0.0
    %3225 = vmatpush2.msra.mxu0 0.0
    %3226 = vmatprep.subr.mxu0 0.0
    %3227 = vmatpush2.msra.mxu0 0.0
    %3228 = vmatprep.subr.mxu0 0.0
    %3229 = vmatpush2.msra.mxu0 0.0
    %3230 = vmatprep.subr.mxu0 0.0
    %3231 = vmatpush2.msra.mxu0 0.0
    %3232 = vmatprep.subr.mxu0 0.0
    %3233 = vmatpush2.msra.mxu0 0.0
    %3234 = vmatprep.subr.mxu0 0.0
    %3235 = vmatpush2.msra.mxu0 0.0
    %3236 = vmatprep.mubr.f32.mxu0 0.0
    %3237 = vmatmul.mubr.f32.gmra.mxu0 %v3171
    %v3238 = vpop.f32.mrf.mxu0
    %v3239 = vadd.f32 0.0, %v3238
    %v3240 = vpop.f32.mrf.mxu0
    %v3241 = vadd.f32 0.0, %v3240
    %3242 = vdwg.mxu0
    %3243 = vmatprep.subr.mxu0 %v391
    %3244 = vmatpush1.msra.mxu0 %v390
    %3245 = vmatprep.subr.mxu0 %v387
    %3246 = vmatpush1.msra.mxu0 %v386
    %3247 = vmatprep.subr.mxu0 %v383
    %3248 = vmatpush1.msra.mxu0 %v382
    %3249 = vmatprep.subr.mxu0 %v379
    %3250 = vmatpush1.msra.mxu0 %v378
    %3251 = vmatprep.subr.mxu0 %v375
    %3252 = vmatpush1.msra.mxu0 %v374
    %3253 = vmatprep.subr.mxu0 %v371
    %3254 = vmatpush1.msra.mxu0 %v370
    %3255 = vmatprep.subr.mxu0 %v367
    %3256 = vmatpush1.msra.mxu0 %v366
    %3257 = vmatprep.subr.mxu0 %v363
    %3258 = vmatpush1.msra.mxu0 %v362
    %3259 = vmatprep.subr.mxu0 %v359
    %3260 = vmatpush1.msra.mxu0 %v358
    %3261 = vmatprep.subr.mxu0 %v355
    %3262 = vmatpush1.msra.mxu0 %v354
    %3263 = vmatprep.subr.mxu0 %v351
    %3264 = vmatpush1.msra.mxu0 %v350
    %3265 = vmatprep.subr.mxu0 %v347
    %3266 = vmatpush1.msra.mxu0 %v346
    %3267 = vmatprep.subr.mxu0 %v343
    %3268 = vmatpush1.msra.mxu0 %v342
    %3269 = vmatprep.subr.mxu0 %v339
    %3270 = vmatpush1.msra.mxu0 %v338
    %3271 = vmatprep.subr.mxu0 %v335
    %3272 = vmatpush1.msra.mxu0 %v334
    %3273 = vmatprep.subr.mxu0 %v331
    %3274 = vmatpush1.msra.mxu0 %v330
    %3275 = vmatprep.subr.mxu0 0.0
    %3276 = vmatpush2.msra.mxu0 0.0
    %3277 = vmatprep.subr.mxu0 0.0
    %3278 = vmatpush2.msra.mxu0 0.0
    %3279 = vmatprep.subr.mxu0 0.0
    %3280 = vmatpush2.msra.mxu0 0.0
    %3281 = vmatprep.subr.mxu0 0.0
    %3282 = vmatpush2.msra.mxu0 0.0
    %3283 = vmatprep.subr.mxu0 0.0
    %3284 = vmatpush2.msra.mxu0 0.0
    %3285 = vmatprep.subr.mxu0 0.0
    %3286 = vmatpush2.msra.mxu0 0.0
    %3287 = vmatprep.subr.mxu0 0.0
    %3288 = vmatpush2.msra.mxu0 0.0
    %3289 = vmatprep.subr.mxu0 0.0
    %3290 = vmatpush2.msra.mxu0 0.0
    %3291 = vmatprep.subr.mxu0 0.0
    %3292 = vmatpush2.msra.mxu0 0.0
    %3293 = vmatprep.subr.mxu0 0.0
    %3294 = vmatpush2.msra.mxu0 0.0
    %3295 = vmatprep.subr.mxu0 0.0
    %3296 = vmatpush2.msra.mxu0 0.0
    %3297 = vmatprep.subr.mxu0 0.0
    %3298 = vmatpush2.msra.mxu0 0.0
    %3299 = vmatprep.subr.mxu0 0.0
    %3300 = vmatpush2.msra.mxu0 0.0
    %3301 = vmatprep.subr.mxu0 0.0
    %3302 = vmatpush2.msra.mxu0 0.0
    %3303 = vmatprep.subr.mxu0 0.0
    %3304 = vmatpush2.msra.mxu0 0.0
    %3305 = vmatprep.subr.mxu0 0.0
    %3306 = vmatpush2.msra.mxu0 0.0
    %3307 = vmatprep.mubr.f32.mxu0 0.0
    %3308 = vmatmul.mubr.f32.gmra.mxu0 %v3171
    %v3309 = vpop.f32.mrf.mxu0
    %v3310 = vadd.f32 0.0, %v3309
    %v3311 = vpop.f32.mrf.mxu0
    %v3312 = vadd.f32 0.0, %v3311
    %3313 = vdwg.mxu0
    %v3314 = vadd.f32 %v2928, %v3239
    %v3315 = vadd.f32 %v2930, %v3241
    %v3316 = vadd.f32 %v2999, %v3310
    %v3317 = vadd.f32 %v3001, %v3312
    %v3318 = vmul.f32 %v3314, 0.5
    %v3319 = vmul.f32 %v3315, 0.5
    %v3320 = vmul.f32 %v3316, 0.5
    %v3321 = vtanh.pop %v3318
    %v3322 = vtanh.pop %v3319
    %v3323 = vtanh.pop %v3320
    %v3324 = vmul.f32 %v3321, 0.5
    %v3325 = vmul.f32 %v3322, 0.5
    %v3326 = vmul.f32 %v3323, 0.5
    %v3327 = vadd.f32 %v3324, 0.5
    %v3328 = vadd.f32 %v3325, 0.5
    %v3329 = vadd.f32 %v3326, 0.5
    %v3330 = vtanh.pop %v3317
    %v3331 = vmul.f32 %v3328, %v2856
    %v3332 = vmul.f32 %v3327, %v3330
    %v3333 = vadd.f32 %v3331, %v3332
    %v3334 = vtanh.pop %v3333
    %v3335 = vmul.f32 %v3329, %v3334
    %s3336 = scalar_lea.vmem [#allocation3], 40
    %3337 = vst [vmem:[%s3336] sm:$0xff] %v3335
    %3338 = vmatprep.subr.mxu0 %v453
    %3339 = vmatpush1.msra.mxu0 %v452
    %3340 = vmatprep.subr.mxu0 %v449
    %3341 = vmatpush1.msra.mxu0 %v448
    %3342 = vmatprep.subr.mxu0 %v445
    %3343 = vmatpush1.msra.mxu0 %v444
    %3344 = vmatprep.subr.mxu0 %v441
    %3345 = vmatpush1.msra.mxu0 %v440
    %3346 = vmatprep.subr.mxu0 %v437
    %3347 = vmatpush1.msra.mxu0 %v436
    %3348 = vmatprep.subr.mxu0 %v433
    %3349 = vmatpush1.msra.mxu0 %v432
    %3350 = vmatprep.subr.mxu0 %v429
    %3351 = vmatpush1.msra.mxu0 %v428
    %3352 = vmatprep.subr.mxu0 %v425
    %3353 = vmatpush1.msra.mxu0 %v424
    %3354 = vmatprep.subr.mxu0 %v421
    %3355 = vmatpush1.msra.mxu0 %v420
    %3356 = vmatprep.subr.mxu0 %v417
    %3357 = vmatpush1.msra.mxu0 %v416
    %3358 = vmatprep.subr.mxu0 %v413
    %3359 = vmatpush1.msra.mxu0 %v412
    %3360 = vmatprep.subr.mxu0 %v409
    %3361 = vmatpush1.msra.mxu0 %v408
    %3362 = vmatprep.subr.mxu0 %v405
    %3363 = vmatpush1.msra.mxu0 %v404
    %3364 = vmatprep.subr.mxu0 %v401
    %3365 = vmatpush1.msra.mxu0 %v400
    %3366 = vmatprep.subr.mxu0 %v397
    %3367 = vmatpush1.msra.mxu0 %v396
    %3368 = vmatprep.subr.mxu0 %v393
    %3369 = vmatpush1.msra.mxu0 %v392
    %3370 = vmatprep.subr.mxu0 0.0
    %3371 = vmatpush2.msra.mxu0 0.0
    %3372 = vmatprep.subr.mxu0 0.0
    %3373 = vmatpush2.msra.mxu0 0.0
    %3374 = vmatprep.subr.mxu0 0.0
    %3375 = vmatpush2.msra.mxu0 0.0
    %3376 = vmatprep.subr.mxu0 0.0
    %3377 = vmatpush2.msra.mxu0 0.0
    %3378 = vmatprep.subr.mxu0 0.0
    %3379 = vmatpush2.msra.mxu0 0.0
    %3380 = vmatprep.subr.mxu0 0.0
    %3381 = vmatpush2.msra.mxu0 0.0
    %3382 = vmatprep.subr.mxu0 0.0
    %3383 = vmatpush2.msra.mxu0 0.0
    %3384 = vmatprep.subr.mxu0 0.0
    %3385 = vmatpush2.msra.mxu0 0.0
    %3386 = vmatprep.subr.mxu0 0.0
    %3387 = vmatpush2.msra.mxu0 0.0
    %3388 = vmatprep.subr.mxu0 0.0
    %3389 = vmatpush2.msra.mxu0 0.0
    %3390 = vmatprep.subr.mxu0 0.0
    %3391 = vmatpush2.msra.mxu0 0.0
    %3392 = vmatprep.subr.mxu0 0.0
    %3393 = vmatpush2.msra.mxu0 0.0
    %3394 = vmatprep.subr.mxu0 0.0
    %3395 = vmatpush2.msra.mxu0 0.0
    %3396 = vmatprep.subr.mxu0 0.0
    %3397 = vmatpush2.msra.mxu0 0.0
    %3398 = vmatprep.subr.mxu0 0.0
    %3399 = vmatpush2.msra.mxu0 0.0
    %3400 = vmatprep.subr.mxu0 0.0
    %3401 = vmatpush2.msra.mxu0 0.0
    %3402 = vmatprep.mubr.f32.mxu0 0.0
    %3403 = vmatmul.mubr.f32.gmra.mxu0 %v3335
    %v3404 = vpop.f32.mrf.mxu0
    %v3405 = vadd.f32 %v461, %v3404
    %v3406 = vpop.f32.mrf.mxu0
    %v3407 = vadd.f32 %v465, %v3406
    %3408 = vdwg.mxu0
    %3409 = vmatprep.subr.mxu0 %v455
    %3410 = vmatpush1.msra.mxu0 %v454
    %3411 = vmatprep.subr.mxu0 %v451
    %3412 = vmatpush1.msra.mxu0 %v450
    %3413 = vmatprep.subr.mxu0 %v447
    %3414 = vmatpush1.msra.mxu0 %v446
    %3415 = vmatprep.subr.mxu0 %v443
    %3416 = vmatpush1.msra.mxu0 %v442
    %3417 = vmatprep.subr.mxu0 %v439
    %3418 = vmatpush1.msra.mxu0 %v438
    %3419 = vmatprep.subr.mxu0 %v435
    %3420 = vmatpush1.msra.mxu0 %v434
    %3421 = vmatprep.subr.mxu0 %v431
    %3422 = vmatpush1.msra.mxu0 %v430
    %3423 = vmatprep.subr.mxu0 %v427
    %3424 = vmatpush1.msra.mxu0 %v426
    %3425 = vmatprep.subr.mxu0 %v423
    %3426 = vmatpush1.msra.mxu0 %v422
    %3427 = vmatprep.subr.mxu0 %v419
    %3428 = vmatpush1.msra.mxu0 %v418
    %3429 = vmatprep.subr.mxu0 %v415
    %3430 = vmatpush1.msra.mxu0 %v414
    %3431 = vmatprep.subr.mxu0 %v411
    %3432 = vmatpush1.msra.mxu0 %v410
    %3433 = vmatprep.subr.mxu0 %v407
    %3434 = vmatpush1.msra.mxu0 %v406
    %3435 = vmatprep.subr.mxu0 %v403
    %3436 = vmatpush1.msra.mxu0 %v402
    %3437 = vmatprep.subr.mxu0 %v399
    %3438 = vmatpush1.msra.mxu0 %v398
    %3439 = vmatprep.subr.mxu0 %v395
    %3440 = vmatpush1.msra.mxu0 %v394
    %3441 = vmatprep.subr.mxu0 0.0
    %3442 = vmatpush2.msra.mxu0 0.0
    %3443 = vmatprep.subr.mxu0 0.0
    %3444 = vmatpush2.msra.mxu0 0.0
    %3445 = vmatprep.subr.mxu0 0.0
    %3446 = vmatpush2.msra.mxu0 0.0
    %3447 = vmatprep.subr.mxu0 0.0
    %3448 = vmatpush2.msra.mxu0 0.0
    %3449 = vmatprep.subr.mxu0 0.0
    %3450 = vmatpush2.msra.mxu0 0.0
    %3451 = vmatprep.subr.mxu0 0.0
    %3452 = vmatpush2.msra.mxu0 0.0
    %3453 = vmatprep.subr.mxu0 0.0
    %3454 = vmatpush2.msra.mxu0 0.0
    %3455 = vmatprep.subr.mxu0 0.0
    %3456 = vmatpush2.msra.mxu0 0.0
    %3457 = vmatprep.subr.mxu0 0.0
    %3458 = vmatpush2.msra.mxu0 0.0
    %3459 = vmatprep.subr.mxu0 0.0
    %3460 = vmatpush2.msra.mxu0 0.0
    %3461 = vmatprep.subr.mxu0 0.0
    %3462 = vmatpush2.msra.mxu0 0.0
    %3463 = vmatprep.subr.mxu0 0.0
    %3464 = vmatpush2.msra.mxu0 0.0
    %3465 = vmatprep.subr.mxu0 0.0
    %3466 = vmatpush2.msra.mxu0 0.0
    %3467 = vmatprep.subr.mxu0 0.0
    %3468 = vmatpush2.msra.mxu0 0.0
    %3469 = vmatprep.subr.mxu0 0.0
    %3470 = vmatpush2.msra.mxu0 0.0
    %3471 = vmatprep.subr.mxu0 0.0
    %3472 = vmatpush2.msra.mxu0 0.0
    %3473 = vmatprep.mubr.f32.mxu0 0.0
    %3474 = vmatmul.mubr.f32.gmra.mxu0 %v3335
    %v3475 = vpop.f32.mrf.mxu0
    %v3476 = vadd.f32 %v469, %v3475
    %v3477 = vpop.f32.mrf.mxu0
    %v3478 = vadd.f32 %v473, %v3477
    %3479 = vdwg.mxu0
    %s3480 = scalar_lea.vmem [#allocation2], 192
    %v3481 = vld [vmem:[%s3480] sm:$0xff]
    %v3482 = vld [vmem:[%s3480 + $0x8] sm:$0xff]
    %v3483 = vld [vmem:[%s3480 + $0x10] sm:$0xff]
    %v3484 = vld [vmem:[%s3480 + $0x18] sm:$0xff]
    %3485 = vmatprep.subr.mxu0 %v325
    %3486 = vmatpush1.msra.mxu0 %v324
    %3487 = vmatprep.subr.mxu0 %v321
    %3488 = vmatpush1.msra.mxu0 %v320
    %3489 = vmatprep.subr.mxu0 %v317
    %3490 = vmatpush1.msra.mxu0 %v316
    %3491 = vmatprep.subr.mxu0 %v313
    %3492 = vmatpush1.msra.mxu0 %v312
    %3493 = vmatprep.subr.mxu0 %v309
    %3494 = vmatpush1.msra.mxu0 %v308
    %3495 = vmatprep.subr.mxu0 %v305
    %3496 = vmatpush1.msra.mxu0 %v304
    %3497 = vmatprep.subr.mxu0 %v301
    %3498 = vmatpush1.msra.mxu0 %v300
    %3499 = vmatprep.subr.mxu0 %v297
    %3500 = vmatpush1.msra.mxu0 %v296
    %3501 = vmatprep.subr.mxu0 %v293
    %3502 = vmatpush1.msra.mxu0 %v292
    %3503 = vmatprep.subr.mxu0 %v289
    %3504 = vmatpush1.msra.mxu0 %v288
    %3505 = vmatprep.subr.mxu0 %v285
    %3506 = vmatpush1.msra.mxu0 %v284
    %3507 = vmatprep.subr.mxu0 %v281
    %3508 = vmatpush1.msra.mxu0 %v280
    %3509 = vmatprep.subr.mxu0 %v277
    %3510 = vmatpush1.msra.mxu0 %v276
    %3511 = vmatprep.subr.mxu0 %v273
    %3512 = vmatpush1.msra.mxu0 %v272
    %3513 = vmatprep.subr.mxu0 %v269
    %3514 = vmatpush1.msra.mxu0 %v268
    %3515 = vmatprep.subr.mxu0 %v265
    %3516 = vmatpush1.msra.mxu0 %v264
    %3517 = vmatprep.subr.mxu0 0.0
    %3518 = vmatpush2.msra.mxu0 0.0
    %3519 = vmatprep.subr.mxu0 0.0
    %3520 = vmatpush2.msra.mxu0 0.0
    %3521 = vmatprep.subr.mxu0 0.0
    %3522 = vmatpush2.msra.mxu0 0.0
    %3523 = vmatprep.subr.mxu0 0.0
    %3524 = vmatpush2.msra.mxu0 0.0
    %3525 = vmatprep.subr.mxu0 0.0
    %3526 = vmatpush2.msra.mxu0 0.0
    %3527 = vmatprep.subr.mxu0 0.0
    %3528 = vmatpush2.msra.mxu0 0.0
    %3529 = vmatprep.subr.mxu0 0.0
    %3530 = vmatpush2.msra.mxu0 0.0
    %3531 = vmatprep.subr.mxu0 0.0
    %3532 = vmatpush2.msra.mxu0 0.0
    %3533 = vmatprep.subr.mxu0 0.0
    %3534 = vmatpush2.msra.mxu0 0.0
    %3535 = vmatprep.subr.mxu0 0.0
    %3536 = vmatpush2.msra.mxu0 0.0
    %3537 = vmatprep.subr.mxu0 0.0
    %3538 = vmatpush2.msra.mxu0 0.0
    %3539 = vmatprep.subr.mxu0 0.0
    %3540 = vmatpush2.msra.mxu0 0.0
    %3541 = vmatprep.subr.mxu0 0.0
    %3542 = vmatpush2.msra.mxu0 0.0
    %3543 = vmatprep.subr.mxu0 0.0
    %3544 = vmatpush2.msra.mxu0 0.0
    %3545 = vmatprep.subr.mxu0 0.0
    %3546 = vmatpush2.msra.mxu0 0.0
    %3547 = vmatprep.subr.mxu0 0.0
    %3548 = vmatpush2.msra.mxu0 0.0
    %3549 = vmatprep.mubr.f32.mxu0 0.0
    %3550 = vmatmul.mubr.f32.gmra.mxu0 %v3171
    %v3551 = vpop.f32.mrf.mxu0
    %v3552 = vadd.f32 0.0, %v3551
    %v3553 = vpop.f32.mrf.mxu0
    %v3554 = vadd.f32 0.0, %v3553
    %3555 = vdwg.mxu0
    %3556 = vmatprep.subr.mxu0 %v327
    %3557 = vmatpush1.msra.mxu0 %v326
    %3558 = vmatprep.subr.mxu0 %v323
    %3559 = vmatpush1.msra.mxu0 %v322
    %3560 = vmatprep.subr.mxu0 %v319
    %3561 = vmatpush1.msra.mxu0 %v318
    %3562 = vmatprep.subr.mxu0 %v315
    %3563 = vmatpush1.msra.mxu0 %v314
    %3564 = vmatprep.subr.mxu0 %v311
    %3565 = vmatpush1.msra.mxu0 %v310
    %3566 = vmatprep.subr.mxu0 %v307
    %3567 = vmatpush1.msra.mxu0 %v306
    %3568 = vmatprep.subr.mxu0 %v303
    %3569 = vmatpush1.msra.mxu0 %v302
    %3570 = vmatprep.subr.mxu0 %v299
    %3571 = vmatpush1.msra.mxu0 %v298
    %3572 = vmatprep.subr.mxu0 %v295
    %3573 = vmatpush1.msra.mxu0 %v294
    %3574 = vmatprep.subr.mxu0 %v291
    %3575 = vmatpush1.msra.mxu0 %v290
    %3576 = vmatprep.subr.mxu0 %v287
    %3577 = vmatpush1.msra.mxu0 %v286
    %3578 = vmatprep.subr.mxu0 %v283
    %3579 = vmatpush1.msra.mxu0 %v282
    %3580 = vmatprep.subr.mxu0 %v279
    %3581 = vmatpush1.msra.mxu0 %v278
    %3582 = vmatprep.subr.mxu0 %v275
    %3583 = vmatpush1.msra.mxu0 %v274
    %3584 = vmatprep.subr.mxu0 %v271
    %3585 = vmatpush1.msra.mxu0 %v270
    %3586 = vmatprep.subr.mxu0 %v267
    %3587 = vmatpush1.msra.mxu0 %v266
    %3588 = vmatprep.subr.mxu0 0.0
    %3589 = vmatpush2.msra.mxu0 0.0
    %3590 = vmatprep.subr.mxu0 0.0
    %3591 = vmatpush2.msra.mxu0 0.0
    %3592 = vmatprep.subr.mxu0 0.0
    %3593 = vmatpush2.msra.mxu0 0.0
    %3594 = vmatprep.subr.mxu0 0.0
    %3595 = vmatpush2.msra.mxu0 0.0
    %3596 = vmatprep.subr.mxu0 0.0
    %3597 = vmatpush2.msra.mxu0 0.0
    %3598 = vmatprep.subr.mxu0 0.0
    %3599 = vmatpush2.msra.mxu0 0.0
    %3600 = vmatprep.subr.mxu0 0.0
    %3601 = vmatpush2.msra.mxu0 0.0
    %3602 = vmatprep.subr.mxu0 0.0
    %3603 = vmatpush2.msra.mxu0 0.0
    %3604 = vmatprep.subr.mxu0 0.0
    %3605 = vmatpush2.msra.mxu0 0.0
    %3606 = vmatprep.subr.mxu0 0.0
    %3607 = vmatpush2.msra.mxu0 0.0
    %3608 = vmatprep.subr.mxu0 0.0
    %3609 = vmatpush2.msra.mxu0 0.0
    %3610 = vmatprep.subr.mxu0 0.0
    %3611 = vmatpush2.msra.mxu0 0.0
    %3612 = vmatprep.subr.mxu0 0.0
    %3613 = vmatpush2.msra.mxu0 0.0
    %3614 = vmatprep.subr.mxu0 0.0
    %3615 = vmatpush2.msra.mxu0 0.0
    %3616 = vmatprep.subr.mxu0 0.0
    %3617 = vmatpush2.msra.mxu0 0.0
    %3618 = vmatprep.subr.mxu0 0.0
    %3619 = vmatpush2.msra.mxu0 0.0
    %3620 = vmatprep.mubr.f32.mxu0 0.0
    %3621 = vmatmul.mubr.f32.gmra.mxu0 %v3171
    %v3622 = vpop.f32.mrf.mxu0
    %v3623 = vadd.f32 0.0, %v3622
    %v3624 = vpop.f32.mrf.mxu0
    %v3625 = vadd.f32 0.0, %v3624
    %3626 = vdwg.mxu0
    %v3627 = vadd.f32 %v3481, %v3552
    %v3628 = vadd.f32 %v3482, %v3554
    %v3629 = vadd.f32 %v3483, %v3623
    %v3630 = vadd.f32 %v3484, %v3625
    %v3631 = vmul.f32 %v3627, 0.5
    %v3632 = vmul.f32 %v3628, 0.5
    %v3633 = vmul.f32 %v3629, 0.5
    %v3634 = vtanh.pop %v3631
    %v3635 = vtanh.pop %v3632
    %v3636 = vtanh.pop %v3633
    %v3637 = vmul.f32 %v3634, 0.5
    %v3638 = vmul.f32 %v3635, 0.5
    %v3639 = vmul.f32 %v3636, 0.5
    %v3640 = vadd.f32 %v3637, 0.5
    %v3641 = vadd.f32 %v3638, 0.5
    %v3642 = vadd.f32 %v3639, 0.5
    %v3643 = vtanh.pop %v3630
    %v3644 = vmul.f32 %v3641, %v3169
    %v3645 = vmul.f32 %v3640, %v3643
    %v3646 = vadd.f32 %v3644, %v3645
    %v3647 = vtanh.pop %v3646
    %v3648 = vmul.f32 %v3642, %v3647
    %3649 = vmatprep.subr.mxu0 %v389
    %3650 = vmatpush1.msra.mxu0 %v388
    %3651 = vmatprep.subr.mxu0 %v385
    %3652 = vmatpush1.msra.mxu0 %v384
    %3653 = vmatprep.subr.mxu0 %v381
    %3654 = vmatpush1.msra.mxu0 %v380
    %3655 = vmatprep.subr.mxu0 %v377
    %3656 = vmatpush1.msra.mxu0 %v376
    %3657 = vmatprep.subr.mxu0 %v373
    %3658 = vmatpush1.msra.mxu0 %v372
    %3659 = vmatprep.subr.mxu0 %v369
    %3660 = vmatpush1.msra.mxu0 %v368
    %3661 = vmatprep.subr.mxu0 %v365
    %3662 = vmatpush1.msra.mxu0 %v364
    %3663 = vmatprep.subr.mxu0 %v361
    %3664 = vmatpush1.msra.mxu0 %v360
    %3665 = vmatprep.subr.mxu0 %v357
    %3666 = vmatpush1.msra.mxu0 %v356
    %3667 = vmatprep.subr.mxu0 %v353
    %3668 = vmatpush1.msra.mxu0 %v352
    %3669 = vmatprep.subr.mxu0 %v349
    %3670 = vmatpush1.msra.mxu0 %v348
    %3671 = vmatprep.subr.mxu0 %v345
    %3672 = vmatpush1.msra.mxu0 %v344
    %3673 = vmatprep.subr.mxu0 %v341
    %3674 = vmatpush1.msra.mxu0 %v340
    %3675 = vmatprep.subr.mxu0 %v337
    %3676 = vmatpush1.msra.mxu0 %v336
    %3677 = vmatprep.subr.mxu0 %v333
    %3678 = vmatpush1.msra.mxu0 %v332
    %3679 = vmatprep.subr.mxu0 %v329
    %3680 = vmatpush1.msra.mxu0 %v328
    %3681 = vmatprep.subr.mxu0 0.0
    %3682 = vmatpush2.msra.mxu0 0.0
    %3683 = vmatprep.subr.mxu0 0.0
    %3684 = vmatpush2.msra.mxu0 0.0
    %3685 = vmatprep.subr.mxu0 0.0
    %3686 = vmatpush2.msra.mxu0 0.0
    %3687 = vmatprep.subr.mxu0 0.0
    %3688 = vmatpush2.msra.mxu0 0.0
    %3689 = vmatprep.subr.mxu0 0.0
    %3690 = vmatpush2.msra.mxu0 0.0
    %3691 = vmatprep.subr.mxu0 0.0
    %3692 = vmatpush2.msra.mxu0 0.0
    %3693 = vmatprep.subr.mxu0 0.0
    %3694 = vmatpush2.msra.mxu0 0.0
    %3695 = vmatprep.subr.mxu0 0.0
    %3696 = vmatpush2.msra.mxu0 0.0
    %3697 = vmatprep.subr.mxu0 0.0
    %3698 = vmatpush2.msra.mxu0 0.0
    %3699 = vmatprep.subr.mxu0 0.0
    %3700 = vmatpush2.msra.mxu0 0.0
    %3701 = vmatprep.subr.mxu0 0.0
    %3702 = vmatpush2.msra.mxu0 0.0
    %3703 = vmatprep.subr.mxu0 0.0
    %3704 = vmatpush2.msra.mxu0 0.0
    %3705 = vmatprep.subr.mxu0 0.0
    %3706 = vmatpush2.msra.mxu0 0.0
    %3707 = vmatprep.subr.mxu0 0.0
    %3708 = vmatpush2.msra.mxu0 0.0
    %3709 = vmatprep.subr.mxu0 0.0
    %3710 = vmatpush2.msra.mxu0 0.0
    %3711 = vmatprep.subr.mxu0 0.0
    %3712 = vmatpush2.msra.mxu0 0.0
    %3713 = vmatprep.mubr.f32.mxu0 0.0
    %3714 = vmatmul.mubr.f32.gmra.mxu0 %v3648
    %v3715 = vpop.f32.mrf.mxu0
    %v3716 = vadd.f32 0.0, %v3715
    %v3717 = vpop.f32.mrf.mxu0
    %v3718 = vadd.f32 0.0, %v3717
    %3719 = vdwg.mxu0
    %3720 = vmatprep.subr.mxu0 %v391
    %3721 = vmatpush1.msra.mxu0 %v390
    %3722 = vmatprep.subr.mxu0 %v387
    %3723 = vmatpush1.msra.mxu0 %v386
    %3724 = vmatprep.subr.mxu0 %v383
    %3725 = vmatpush1.msra.mxu0 %v382
    %3726 = vmatprep.subr.mxu0 %v379
    %3727 = vmatpush1.msra.mxu0 %v378
    %3728 = vmatprep.subr.mxu0 %v375
    %3729 = vmatpush1.msra.mxu0 %v374
    %3730 = vmatprep.subr.mxu0 %v371
    %3731 = vmatpush1.msra.mxu0 %v370
    %3732 = vmatprep.subr.mxu0 %v367
    %3733 = vmatpush1.msra.mxu0 %v366
    %3734 = vmatprep.subr.mxu0 %v363
    %3735 = vmatpush1.msra.mxu0 %v362
    %3736 = vmatprep.subr.mxu0 %v359
    %3737 = vmatpush1.msra.mxu0 %v358
    %3738 = vmatprep.subr.mxu0 %v355
    %3739 = vmatpush1.msra.mxu0 %v354
    %3740 = vmatprep.subr.mxu0 %v351
    %3741 = vmatpush1.msra.mxu0 %v350
    %3742 = vmatprep.subr.mxu0 %v347
    %3743 = vmatpush1.msra.mxu0 %v346
    %3744 = vmatprep.subr.mxu0 %v343
    %3745 = vmatpush1.msra.mxu0 %v342
    %3746 = vmatprep.subr.mxu0 %v339
    %3747 = vmatpush1.msra.mxu0 %v338
    %3748 = vmatprep.subr.mxu0 %v335
    %3749 = vmatpush1.msra.mxu0 %v334
    %3750 = vmatprep.subr.mxu0 %v331
    %3751 = vmatpush1.msra.mxu0 %v330
    %3752 = vmatprep.subr.mxu0 0.0
    %3753 = vmatpush2.msra.mxu0 0.0
    %3754 = vmatprep.subr.mxu0 0.0
    %3755 = vmatpush2.msra.mxu0 0.0
    %3756 = vmatprep.subr.mxu0 0.0
    %3757 = vmatpush2.msra.mxu0 0.0
    %3758 = vmatprep.subr.mxu0 0.0
    %3759 = vmatpush2.msra.mxu0 0.0
    %3760 = vmatprep.subr.mxu0 0.0
    %3761 = vmatpush2.msra.mxu0 0.0
    %3762 = vmatprep.subr.mxu0 0.0
    %3763 = vmatpush2.msra.mxu0 0.0
    %3764 = vmatprep.subr.mxu0 0.0
    %3765 = vmatpush2.msra.mxu0 0.0
    %3766 = vmatprep.subr.mxu0 0.0
    %3767 = vmatpush2.msra.mxu0 0.0
    %3768 = vmatprep.subr.mxu0 0.0
    %3769 = vmatpush2.msra.mxu0 0.0
    %3770 = vmatprep.subr.mxu0 0.0
    %3771 = vmatpush2.msra.mxu0 0.0
    %3772 = vmatprep.subr.mxu0 0.0
    %3773 = vmatpush2.msra.mxu0 0.0
    %3774 = vmatprep.subr.mxu0 0.0
    %3775 = vmatpush2.msra.mxu0 0.0
    %3776 = vmatprep.subr.mxu0 0.0
    %3777 = vmatpush2.msra.mxu0 0.0
    %3778 = vmatprep.subr.mxu0 0.0
    %3779 = vmatpush2.msra.mxu0 0.0
    %3780 = vmatprep.subr.mxu0 0.0
    %3781 = vmatpush2.msra.mxu0 0.0
    %3782 = vmatprep.subr.mxu0 0.0
    %3783 = vmatpush2.msra.mxu0 0.0
    %3784 = vmatprep.mubr.f32.mxu0 0.0
    %3785 = vmatmul.mubr.f32.gmra.mxu0 %v3648
    %v3786 = vpop.f32.mrf.mxu0
    %v3787 = vadd.f32 0.0, %v3786
    %v3788 = vpop.f32.mrf.mxu0
    %v3789 = vadd.f32 0.0, %v3788
    %3790 = vdwg.mxu0
    %v3791 = vadd.f32 %v3405, %v3716
    %v3792 = vadd.f32 %v3407, %v3718
    %v3793 = vadd.f32 %v3476, %v3787
    %v3794 = vadd.f32 %v3478, %v3789
    %v3795 = vmul.f32 %v3791, 0.5
    %v3796 = vmul.f32 %v3792, 0.5
    %v3797 = vmul.f32 %v3793, 0.5
    %v3798 = vtanh.pop %v3795
    %v3799 = vtanh.pop %v3796
    %v3800 = vtanh.pop %v3797
    %v3801 = vmul.f32 %v3798, 0.5
    %v3802 = vmul.f32 %v3799, 0.5
    %v3803 = vmul.f32 %v3800, 0.5
    %v3804 = vadd.f32 %v3801, 0.5
    %v3805 = vadd.f32 %v3802, 0.5
    %v3806 = vadd.f32 %v3803, 0.5
    %v3807 = vtanh.pop %v3794
    %v3808 = vmul.f32 %v3805, %v3333
    %v3809 = vmul.f32 %v3804, %v3807
    %v3810 = vadd.f32 %v3808, %v3809
    %v3811 = vtanh.pop %v3810
    %v3812 = vmul.f32 %v3806, %v3811
    %s3813 = scalar_lea.vmem [#allocation3], 48
    %3814 = vst [vmem:[%s3813] sm:$0xff] %v3812
    %3815 = vmatprep.subr.mxu0 %v453
    %3816 = vmatpush1.msra.mxu0 %v452
    %3817 = vmatprep.subr.mxu0 %v449
    %3818 = vmatpush1.msra.mxu0 %v448
    %3819 = vmatprep.subr.mxu0 %v445
    %3820 = vmatpush1.msra.mxu0 %v444
    %3821 = vmatprep.subr.mxu0 %v441
    %3822 = vmatpush1.msra.mxu0 %v440
    %3823 = vmatprep.subr.mxu0 %v437
    %3824 = vmatpush1.msra.mxu0 %v436
    %3825 = vmatprep.subr.mxu0 %v433
    %3826 = vmatpush1.msra.mxu0 %v432
    %3827 = vmatprep.subr.mxu0 %v429
    %3828 = vmatpush1.msra.mxu0 %v428
    %3829 = vmatprep.subr.mxu0 %v425
    %3830 = vmatpush1.msra.mxu0 %v424
    %3831 = vmatprep.subr.mxu0 %v421
    %3832 = vmatpush1.msra.mxu0 %v420
    %3833 = vmatprep.subr.mxu0 %v417
    %3834 = vmatpush1.msra.mxu0 %v416
    %3835 = vmatprep.subr.mxu0 %v413
    %3836 = vmatpush1.msra.mxu0 %v412
    %3837 = vmatprep.subr.mxu0 %v409
    %3838 = vmatpush1.msra.mxu0 %v408
    %3839 = vmatprep.subr.mxu0 %v405
    %3840 = vmatpush1.msra.mxu0 %v404
    %3841 = vmatprep.subr.mxu0 %v401
    %3842 = vmatpush1.msra.mxu0 %v400
    %3843 = vmatprep.subr.mxu0 %v397
    %3844 = vmatpush1.msra.mxu0 %v396
    %3845 = vmatprep.subr.mxu0 %v393
    %3846 = vmatpush1.msra.mxu0 %v392
    %3847 = vmatprep.subr.mxu0 0.0
    %3848 = vmatpush2.msra.mxu0 0.0
    %3849 = vmatprep.subr.mxu0 0.0
    %3850 = vmatpush2.msra.mxu0 0.0
    %3851 = vmatprep.subr.mxu0 0.0
    %3852 = vmatpush2.msra.mxu0 0.0
    %3853 = vmatprep.subr.mxu0 0.0
    %3854 = vmatpush2.msra.mxu0 0.0
    %3855 = vmatprep.subr.mxu0 0.0
    %3856 = vmatpush2.msra.mxu0 0.0
    %3857 = vmatprep.subr.mxu0 0.0
    %3858 = vmatpush2.msra.mxu0 0.0
    %3859 = vmatprep.subr.mxu0 0.0
    %3860 = vmatpush2.msra.mxu0 0.0
    %3861 = vmatprep.subr.mxu0 0.0
    %3862 = vmatpush2.msra.mxu0 0.0
    %3863 = vmatprep.subr.mxu0 0.0
    %3864 = vmatpush2.msra.mxu0 0.0
    %3865 = vmatprep.subr.mxu0 0.0
    %3866 = vmatpush2.msra.mxu0 0.0
    %3867 = vmatprep.subr.mxu0 0.0
    %3868 = vmatpush2.msra.mxu0 0.0
    %3869 = vmatprep.subr.mxu0 0.0
    %3870 = vmatpush2.msra.mxu0 0.0
    %3871 = vmatprep.subr.mxu0 0.0
    %3872 = vmatpush2.msra.mxu0 0.0
    %3873 = vmatprep.subr.mxu0 0.0
    %3874 = vmatpush2.msra.mxu0 0.0
    %3875 = vmatprep.subr.mxu0 0.0
    %3876 = vmatpush2.msra.mxu0 0.0
    %3877 = vmatprep.subr.mxu0 0.0
    %3878 = vmatpush2.msra.mxu0 0.0
    %3879 = vmatprep.mubr.f32.mxu0 0.0
    %3880 = vmatmul.mubr.f32.gmra.mxu0 %v3812
    %v3881 = vpop.f32.mrf.mxu0
    %v3882 = vadd.f32 %v461, %v3881
    %v3883 = vpop.f32.mrf.mxu0
    %v3884 = vadd.f32 %v465, %v3883
    %3885 = vdwg.mxu0
    %3886 = vmatprep.subr.mxu0 %v455
    %3887 = vmatpush1.msra.mxu0 %v454
    %3888 = vmatprep.subr.mxu0 %v451
    %3889 = vmatpush1.msra.mxu0 %v450
    %3890 = vmatprep.subr.mxu0 %v447
    %3891 = vmatpush1.msra.mxu0 %v446
    %3892 = vmatprep.subr.mxu0 %v443
    %3893 = vmatpush1.msra.mxu0 %v442
    %3894 = vmatprep.subr.mxu0 %v439
    %3895 = vmatpush1.msra.mxu0 %v438
    %3896 = vmatprep.subr.mxu0 %v435
    %3897 = vmatpush1.msra.mxu0 %v434
    %3898 = vmatprep.subr.mxu0 %v431
    %3899 = vmatpush1.msra.mxu0 %v430
    %3900 = vmatprep.subr.mxu0 %v427
    %3901 = vmatpush1.msra.mxu0 %v426
    %3902 = vmatprep.subr.mxu0 %v423
    %3903 = vmatpush1.msra.mxu0 %v422
    %3904 = vmatprep.subr.mxu0 %v419
    %3905 = vmatpush1.msra.mxu0 %v418
    %3906 = vmatprep.subr.mxu0 %v415
    %3907 = vmatpush1.msra.mxu0 %v414
    %3908 = vmatprep.subr.mxu0 %v411
    %3909 = vmatpush1.msra.mxu0 %v410
    %3910 = vmatprep.subr.mxu0 %v407
    %3911 = vmatpush1.msra.mxu0 %v406
    %3912 = vmatprep.subr.mxu0 %v403
    %3913 = vmatpush1.msra.mxu0 %v402
    %3914 = vmatprep.subr.mxu0 %v399
    %3915 = vmatpush1.msra.mxu0 %v398
    %3916 = vmatprep.subr.mxu0 %v395
    %3917 = vmatpush1.msra.mxu0 %v394
    %3918 = vmatprep.subr.mxu0 0.0
    %3919 = vmatpush2.msra.mxu0 0.0
    %3920 = vmatprep.subr.mxu0 0.0
    %3921 = vmatpush2.msra.mxu0 0.0
    %3922 = vmatprep.subr.mxu0 0.0
    %3923 = vmatpush2.msra.mxu0 0.0
    %3924 = vmatprep.subr.mxu0 0.0
    %3925 = vmatpush2.msra.mxu0 0.0
    %3926 = vmatprep.subr.mxu0 0.0
    %3927 = vmatpush2.msra.mxu0 0.0
    %3928 = vmatprep.subr.mxu0 0.0
    %3929 = vmatpush2.msra.mxu0 0.0
    %3930 = vmatprep.subr.mxu0 0.0
    %3931 = vmatpush2.msra.mxu0 0.0
    %3932 = vmatprep.subr.mxu0 0.0
    %3933 = vmatpush2.msra.mxu0 0.0
    %3934 = vmatprep.subr.mxu0 0.0
    %3935 = vmatpush2.msra.mxu0 0.0
    %3936 = vmatprep.subr.mxu0 0.0
    %3937 = vmatpush2.msra.mxu0 0.0
    %3938 = vmatprep.subr.mxu0 0.0
    %3939 = vmatpush2.msra.mxu0 0.0
    %3940 = vmatprep.subr.mxu0 0.0
    %3941 = vmatpush2.msra.mxu0 0.0
    %3942 = vmatprep.subr.mxu0 0.0
    %3943 = vmatpush2.msra.mxu0 0.0
    %3944 = vmatprep.subr.mxu0 0.0
    %3945 = vmatpush2.msra.mxu0 0.0
    %3946 = vmatprep.subr.mxu0 0.0
    %3947 = vmatpush2.msra.mxu0 0.0
    %3948 = vmatprep.subr.mxu0 0.0
    %3949 = vmatpush2.msra.mxu0 0.0
    %3950 = vmatprep.mubr.f32.mxu0 0.0
    %3951 = vmatmul.mubr.f32.gmra.mxu0 %v3812
    %v3952 = vpop.f32.mrf.mxu0
    %v3953 = vadd.f32 %v469, %v3952
    %v3954 = vpop.f32.mrf.mxu0
    %v3955 = vadd.f32 %v473, %v3954
    %3956 = vdwg.mxu0
    %s3957 = scalar_lea.vmem [#allocation2], 224
    %v3958 = vld [vmem:[%s3957] sm:$0xff]
    %v3959 = vld [vmem:[%s3957 + $0x8] sm:$0xff]
    %v3960 = vld [vmem:[%s3957 + $0x10] sm:$0xff]
    %v3961 = vld [vmem:[%s3957 + $0x18] sm:$0xff]
    %3962 = vmatprep.subr.mxu0 %v325
    %3963 = vmatpush1.msra.mxu0 %v324
    %3964 = vmatprep.subr.mxu0 %v321
    %3965 = vmatpush1.msra.mxu0 %v320
    %3966 = vmatprep.subr.mxu0 %v317
    %3967 = vmatpush1.msra.mxu0 %v316
    %3968 = vmatprep.subr.mxu0 %v313
    %3969 = vmatpush1.msra.mxu0 %v312
    %3970 = vmatprep.subr.mxu0 %v309
    %3971 = vmatpush1.msra.mxu0 %v308
    %3972 = vmatprep.subr.mxu0 %v305
    %3973 = vmatpush1.msra.mxu0 %v304
    %3974 = vmatprep.subr.mxu0 %v301
    %3975 = vmatpush1.msra.mxu0 %v300
    %3976 = vmatprep.subr.mxu0 %v297
    %3977 = vmatpush1.msra.mxu0 %v296
    %3978 = vmatprep.subr.mxu0 %v293
    %3979 = vmatpush1.msra.mxu0 %v292
    %3980 = vmatprep.subr.mxu0 %v289
    %3981 = vmatpush1.msra.mxu0 %v288
    %3982 = vmatprep.subr.mxu0 %v285
    %3983 = vmatpush1.msra.mxu0 %v284
    %3984 = vmatprep.subr.mxu0 %v281
    %3985 = vmatpush1.msra.mxu0 %v280
    %3986 = vmatprep.subr.mxu0 %v277
    %3987 = vmatpush1.msra.mxu0 %v276
    %3988 = vmatprep.subr.mxu0 %v273
    %3989 = vmatpush1.msra.mxu0 %v272
    %3990 = vmatprep.subr.mxu0 %v269
    %3991 = vmatpush1.msra.mxu0 %v268
    %3992 = vmatprep.subr.mxu0 %v265
    %3993 = vmatpush1.msra.mxu0 %v264
    %3994 = vmatprep.subr.mxu0 0.0
    %3995 = vmatpush2.msra.mxu0 0.0
    %3996 = vmatprep.subr.mxu0 0.0
    %3997 = vmatpush2.msra.mxu0 0.0
    %3998 = vmatprep.subr.mxu0 0.0
    %3999 = vmatpush2.msra.mxu0 0.0
    %4000 = vmatprep.subr.mxu0 0.0
    %4001 = vmatpush2.msra.mxu0 0.0
    %4002 = vmatprep.subr.mxu0 0.0
    %4003 = vmatpush2.msra.mxu0 0.0
    %4004 = vmatprep.subr.mxu0 0.0
    %4005 = vmatpush2.msra.mxu0 0.0
    %4006 = vmatprep.subr.mxu0 0.0
    %4007 = vmatpush2.msra.mxu0 0.0
    %4008 = vmatprep.subr.mxu0 0.0
    %4009 = vmatpush2.msra.mxu0 0.0
    %4010 = vmatprep.subr.mxu0 0.0
    %4011 = vmatpush2.msra.mxu0 0.0
    %4012 = vmatprep.subr.mxu0 0.0
    %4013 = vmatpush2.msra.mxu0 0.0
    %4014 = vmatprep.subr.mxu0 0.0
    %4015 = vmatpush2.msra.mxu0 0.0
    %4016 = vmatprep.subr.mxu0 0.0
    %4017 = vmatpush2.msra.mxu0 0.0
    %4018 = vmatprep.subr.mxu0 0.0
    %4019 = vmatpush2.msra.mxu0 0.0
    %4020 = vmatprep.subr.mxu0 0.0
    %4021 = vmatpush2.msra.mxu0 0.0
    %4022 = vmatprep.subr.mxu0 0.0
    %4023 = vmatpush2.msra.mxu0 0.0
    %4024 = vmatprep.subr.mxu0 0.0
    %4025 = vmatpush2.msra.mxu0 0.0
    %4026 = vmatprep.mubr.f32.mxu0 0.0
    %4027 = vmatmul.mubr.f32.gmra.mxu0 %v3648
    %v4028 = vpop.f32.mrf.mxu0
    %v4029 = vadd.f32 0.0, %v4028
    %v4030 = vpop.f32.mrf.mxu0
    %v4031 = vadd.f32 0.0, %v4030
    %4032 = vdwg.mxu0
    %4033 = vmatprep.subr.mxu0 %v327
    %4034 = vmatpush1.msra.mxu0 %v326
    %4035 = vmatprep.subr.mxu0 %v323
    %4036 = vmatpush1.msra.mxu0 %v322
    %4037 = vmatprep.subr.mxu0 %v319
    %4038 = vmatpush1.msra.mxu0 %v318
    %4039 = vmatprep.subr.mxu0 %v315
    %4040 = vmatpush1.msra.mxu0 %v314
    %4041 = vmatprep.subr.mxu0 %v311
    %4042 = vmatpush1.msra.mxu0 %v310
    %4043 = vmatprep.subr.mxu0 %v307
    %4044 = vmatpush1.msra.mxu0 %v306
    %4045 = vmatprep.subr.mxu0 %v303
    %4046 = vmatpush1.msra.mxu0 %v302
    %4047 = vmatprep.subr.mxu0 %v299
    %4048 = vmatpush1.msra.mxu0 %v298
    %4049 = vmatprep.subr.mxu0 %v295
    %4050 = vmatpush1.msra.mxu0 %v294
    %4051 = vmatprep.subr.mxu0 %v291
    %4052 = vmatpush1.msra.mxu0 %v290
    %4053 = vmatprep.subr.mxu0 %v287
    %4054 = vmatpush1.msra.mxu0 %v286
    %4055 = vmatprep.subr.mxu0 %v283
    %4056 = vmatpush1.msra.mxu0 %v282
    %4057 = vmatprep.subr.mxu0 %v279
    %4058 = vmatpush1.msra.mxu0 %v278
    %4059 = vmatprep.subr.mxu0 %v275
    %4060 = vmatpush1.msra.mxu0 %v274
    %4061 = vmatprep.subr.mxu0 %v271
    %4062 = vmatpush1.msra.mxu0 %v270
    %4063 = vmatprep.subr.mxu0 %v267
    %4064 = vmatpush1.msra.mxu0 %v266
    %4065 = vmatprep.subr.mxu0 0.0
    %4066 = vmatpush2.msra.mxu0 0.0
    %4067 = vmatprep.subr.mxu0 0.0
    %4068 = vmatpush2.msra.mxu0 0.0
    %4069 = vmatprep.subr.mxu0 0.0
    %4070 = vmatpush2.msra.mxu0 0.0
    %4071 = vmatprep.subr.mxu0 0.0
    %4072 = vmatpush2.msra.mxu0 0.0
    %4073 = vmatprep.subr.mxu0 0.0
    %4074 = vmatpush2.msra.mxu0 0.0
    %4075 = vmatprep.subr.mxu0 0.0
    %4076 = vmatpush2.msra.mxu0 0.0
    %4077 = vmatprep.subr.mxu0 0.0
    %4078 = vmatpush2.msra.mxu0 0.0
    %4079 = vmatprep.subr.mxu0 0.0
    %4080 = vmatpush2.msra.mxu0 0.0
    %4081 = vmatprep.subr.mxu0 0.0
    %4082 = vmatpush2.msra.mxu0 0.0
    %4083 = vmatprep.subr.mxu0 0.0
    %4084 = vmatpush2.msra.mxu0 0.0
    %4085 = vmatprep.subr.mxu0 0.0
    %4086 = vmatpush2.msra.mxu0 0.0
    %4087 = vmatprep.subr.mxu0 0.0
    %4088 = vmatpush2.msra.mxu0 0.0
    %4089 = vmatprep.subr.mxu0 0.0
    %4090 = vmatpush2.msra.mxu0 0.0
    %4091 = vmatprep.subr.mxu0 0.0
    %4092 = vmatpush2.msra.mxu0 0.0
    %4093 = vmatprep.subr.mxu0 0.0
    %4094 = vmatpush2.msra.mxu0 0.0
    %4095 = vmatprep.subr.mxu0 0.0
    %4096 = vmatpush2.msra.mxu0 0.0
    %4097 = vmatprep.mubr.f32.mxu0 0.0
    %4098 = vmatmul.mubr.f32.gmra.mxu0 %v3648
    %v4099 = vpop.f32.mrf.mxu0
    %v4100 = vadd.f32 0.0, %v4099
    %v4101 = vpop.f32.mrf.mxu0
    %v4102 = vadd.f32 0.0, %v4101
    %4103 = vdwg.mxu0
    %v4104 = vadd.f32 %v3958, %v4029
    %v4105 = vadd.f32 %v3959, %v4031
    %v4106 = vadd.f32 %v3960, %v4100
    %v4107 = vadd.f32 %v3961, %v4102
    %v4108 = vmul.f32 %v4104, 0.5
    %v4109 = vmul.f32 %v4105, 0.5
    %v4110 = vmul.f32 %v4106, 0.5
    %v4111 = vtanh.pop %v4108
    %v4112 = vtanh.pop %v4109
    %v4113 = vtanh.pop %v4110
    %v4114 = vmul.f32 %v4111, 0.5
    %v4115 = vmul.f32 %v4112, 0.5
    %v4116 = vmul.f32 %v4113, 0.5
    %v4117 = vadd.f32 %v4114, 0.5
    %v4118 = vadd.f32 %v4115, 0.5
    %v4119 = vadd.f32 %v4116, 0.5
    %v4120 = vtanh.pop %v4107
    %v4121 = vmul.f32 %v4118, %v3646
    %v4122 = vmul.f32 %v4117, %v4120
    %v4123 = vadd.f32 %v4121, %v4122
    %v4124 = vtanh.pop %v4123
    %v4125 = vmul.f32 %v4119, %v4124
    %4126 = vmatprep.subr.mxu0 %v389
    %4127 = vmatpush1.msra.mxu0 %v388
    %4128 = vmatprep.subr.mxu0 %v385
    %4129 = vmatpush1.msra.mxu0 %v384
    %4130 = vmatprep.subr.mxu0 %v381
    %4131 = vmatpush1.msra.mxu0 %v380
    %4132 = vmatprep.subr.mxu0 %v377
    %4133 = vmatpush1.msra.mxu0 %v376
    %4134 = vmatprep.subr.mxu0 %v373
    %4135 = vmatpush1.msra.mxu0 %v372
    %4136 = vmatprep.subr.mxu0 %v369
    %4137 = vmatpush1.msra.mxu0 %v368
    %4138 = vmatprep.subr.mxu0 %v365
    %4139 = vmatpush1.msra.mxu0 %v364
    %4140 = vmatprep.subr.mxu0 %v361
    %4141 = vmatpush1.msra.mxu0 %v360
    %4142 = vmatprep.subr.mxu0 %v357
    %4143 = vmatpush1.msra.mxu0 %v356
    %4144 = vmatprep.subr.mxu0 %v353
    %4145 = vmatpush1.msra.mxu0 %v352
    %4146 = vmatprep.subr.mxu0 %v349
    %4147 = vmatpush1.msra.mxu0 %v348
    %4148 = vmatprep.subr.mxu0 %v345
    %4149 = vmatpush1.msra.mxu0 %v344
    %4150 = vmatprep.subr.mxu0 %v341
    %4151 = vmatpush1.msra.mxu0 %v340
    %4152 = vmatprep.subr.mxu0 %v337
    %4153 = vmatpush1.msra.mxu0 %v336
    %4154 = vmatprep.subr.mxu0 %v333
    %4155 = vmatpush1.msra.mxu0 %v332
    %4156 = vmatprep.subr.mxu0 %v329
    %4157 = vmatpush1.msra.mxu0 %v328
    %4158 = vmatprep.subr.mxu0 0.0
    %4159 = vmatpush2.msra.mxu0 0.0
    %4160 = vmatprep.subr.mxu0 0.0
    %4161 = vmatpush2.msra.mxu0 0.0
    %4162 = vmatprep.subr.mxu0 0.0
    %4163 = vmatpush2.msra.mxu0 0.0
    %4164 = vmatprep.subr.mxu0 0.0
    %4165 = vmatpush2.msra.mxu0 0.0
    %4166 = vmatprep.subr.mxu0 0.0
    %4167 = vmatpush2.msra.mxu0 0.0
    %4168 = vmatprep.subr.mxu0 0.0
    %4169 = vmatpush2.msra.mxu0 0.0
    %4170 = vmatprep.subr.mxu0 0.0
    %4171 = vmatpush2.msra.mxu0 0.0
    %4172 = vmatprep.subr.mxu0 0.0
    %4173 = vmatpush2.msra.mxu0 0.0
    %4174 = vmatprep.subr.mxu0 0.0
    %4175 = vmatpush2.msra.mxu0 0.0
    %4176 = vmatprep.subr.mxu0 0.0
    %4177 = vmatpush2.msra.mxu0 0.0
    %4178 = vmatprep.subr.mxu0 0.0
    %4179 = vmatpush2.msra.mxu0 0.0
    %4180 = vmatprep.subr.mxu0 0.0
    %4181 = vmatpush2.msra.mxu0 0.0
    %4182 = vmatprep.subr.mxu0 0.0
    %4183 = vmatpush2.msra.mxu0 0.0
    %4184 = vmatprep.subr.mxu0 0.0
    %4185 = vmatpush2.msra.mxu0 0.0
    %4186 = vmatprep.subr.mxu0 0.0
    %4187 = vmatpush2.msra.mxu0 0.0
    %4188 = vmatprep.subr.mxu0 0.0
    %4189 = vmatpush2.msra.mxu0 0.0
    %4190 = vmatprep.mubr.f32.mxu0 0.0
    %4191 = vmatmul.mubr.f32.gmra.mxu0 %v4125
    %v4192 = vpop.f32.mrf.mxu0
    %v4193 = vadd.f32 0.0, %v4192
    %v4194 = vpop.f32.mrf.mxu0
    %v4195 = vadd.f32 0.0, %v4194
    %4196 = vdwg.mxu0
    %4197 = vmatprep.subr.mxu0 %v391
    %4198 = vmatpush1.msra.mxu0 %v390
    %4199 = vmatprep.subr.mxu0 %v387
    %4200 = vmatpush1.msra.mxu0 %v386
    %4201 = vmatprep.subr.mxu0 %v383
    %4202 = vmatpush1.msra.mxu0 %v382
    %4203 = vmatprep.subr.mxu0 %v379
    %4204 = vmatpush1.msra.mxu0 %v378
    %4205 = vmatprep.subr.mxu0 %v375
    %4206 = vmatpush1.msra.mxu0 %v374
    %4207 = vmatprep.subr.mxu0 %v371
    %4208 = vmatpush1.msra.mxu0 %v370
    %4209 = vmatprep.subr.mxu0 %v367
    %4210 = vmatpush1.msra.mxu0 %v366
    %4211 = vmatprep.subr.mxu0 %v363
    %4212 = vmatpush1.msra.mxu0 %v362
    %4213 = vmatprep.subr.mxu0 %v359
    %4214 = vmatpush1.msra.mxu0 %v358
    %4215 = vmatprep.subr.mxu0 %v355
    %4216 = vmatpush1.msra.mxu0 %v354
    %4217 = vmatprep.subr.mxu0 %v351
    %4218 = vmatpush1.msra.mxu0 %v350
    %4219 = vmatprep.subr.mxu0 %v347
    %4220 = vmatpush1.msra.mxu0 %v346
    %4221 = vmatprep.subr.mxu0 %v343
    %4222 = vmatpush1.msra.mxu0 %v342
    %4223 = vmatprep.subr.mxu0 %v339
    %4224 = vmatpush1.msra.mxu0 %v338
    %4225 = vmatprep.subr.mxu0 %v335
    %4226 = vmatpush1.msra.mxu0 %v334
    %4227 = vmatprep.subr.mxu0 %v331
    %4228 = vmatpush1.msra.mxu0 %v330
    %4229 = vmatprep.subr.mxu0 0.0
    %4230 = vmatpush2.msra.mxu0 0.0
    %4231 = vmatprep.subr.mxu0 0.0
    %4232 = vmatpush2.msra.mxu0 0.0
    %4233 = vmatprep.subr.mxu0 0.0
    %4234 = vmatpush2.msra.mxu0 0.0
    %4235 = vmatprep.subr.mxu0 0.0
    %4236 = vmatpush2.msra.mxu0 0.0
    %4237 = vmatprep.subr.mxu0 0.0
    %4238 = vmatpush2.msra.mxu0 0.0
    %4239 = vmatprep.subr.mxu0 0.0
    %4240 = vmatpush2.msra.mxu0 0.0
    %4241 = vmatprep.subr.mxu0 0.0
    %4242 = vmatpush2.msra.mxu0 0.0
    %4243 = vmatprep.subr.mxu0 0.0
    %4244 = vmatpush2.msra.mxu0 0.0
    %4245 = vmatprep.subr.mxu0 0.0
    %4246 = vmatpush2.msra.mxu0 0.0
    %4247 = vmatprep.subr.mxu0 0.0
    %4248 = vmatpush2.msra.mxu0 0.0
    %4249 = vmatprep.subr.mxu0 0.0
    %4250 = vmatpush2.msra.mxu0 0.0
    %4251 = vmatprep.subr.mxu0 0.0
    %4252 = vmatpush2.msra.mxu0 0.0
    %4253 = vmatprep.subr.mxu0 0.0
    %4254 = vmatpush2.msra.mxu0 0.0
    %4255 = vmatprep.subr.mxu0 0.0
    %4256 = vmatpush2.msra.mxu0 0.0
    %4257 = vmatprep.subr.mxu0 0.0
    %4258 = vmatpush2.msra.mxu0 0.0
    %4259 = vmatprep.subr.mxu0 0.0
    %4260 = vmatpush2.msra.mxu0 0.0
    %4261 = vmatprep.mubr.f32.mxu0 0.0
    %4262 = vmatmul.mubr.f32.gmra.mxu0 %v4125
    %v4263 = vpop.f32.mrf.mxu0
    %v4264 = vadd.f32 0.0, %v4263
    %v4265 = vpop.f32.mrf.mxu0
    %v4266 = vadd.f32 0.0, %v4265
    %4267 = vdwg.mxu0
    %v4268 = vadd.f32 %v3882, %v4193
    %v4269 = vadd.f32 %v3884, %v4195
    %v4270 = vadd.f32 %v3953, %v4264
    %v4271 = vadd.f32 %v3955, %v4266
    %v4272 = vmul.f32 %v4268, 0.5
    %v4273 = vmul.f32 %v4269, 0.5
    %v4274 = vmul.f32 %v4270, 0.5
    %v4275 = vtanh.pop %v4272
    %v4276 = vtanh.pop %v4273
    %v4277 = vtanh.pop %v4274
    %v4278 = vmul.f32 %v4275, 0.5
    %v4279 = vmul.f32 %v4276, 0.5
    %v4280 = vmul.f32 %v4277, 0.5
    %v4281 = vadd.f32 %v4278, 0.5
    %v4282 = vadd.f32 %v4279, 0.5
    %v4283 = vadd.f32 %v4280, 0.5
    %v4284 = vtanh.pop %v4271
    %v4285 = vmul.f32 %v4282, %v3810
    %v4286 = vmul.f32 %v4281, %v4284
    %v4287 = vadd.f32 %v4285, %v4286
    %v4288 = vtanh.pop %v4287
    %v4289 = vmul.f32 %v4283, %v4288
    %s4290 = scalar_lea.vmem [#allocation3], 56
    %4291 = vst [vmem:[%s4290] sm:$0xff] %v4289
    %v4292 = vld [vmem:[#allocation3] sm:$0xff]
    %v4293 = vld [vmem:[#allocation3 + $0x8] sm:$0xff]
    %v4294 = vld [vmem:[#allocation3 + $0x10] sm:$0xff]
    %v4295 = vld [vmem:[#allocation3 + $0x18] sm:$0xff]
    %v4296 = vld [vmem:[#allocation3 + $0x20] sm:$0xff]
    %v4297 = vld [vmem:[#allocation3 + $0x28] sm:$0xff]
    %v4298 = vld [vmem:[#allocation3 + $0x30] sm:$0xff]
    %v4299 = vld [vmem:[#allocation3 + $0x38] sm:$0xff]
    %v4300 = vld [vmem:[%s7] sm:$0x1]
    %v4302 = vlaneseq
    %v4303 = vshrl.u32 %v4302, 7
    %v4304 = vsub.s32 0, %v4303
    %v4305 = vrot.slane %v4300, %v4304
    %v4307 = vmul.f32 %v4292, %v4305
    %v4308 = vmul.f32 %v4293, %v4305
    %v4309 = vmul.f32 %v4294, %v4305
    %v4310 = vmul.f32 %v4295, %v4305
    %v4311 = vmul.f32 %v4296, %v4305
    %v4312 = vmul.f32 %v4297, %v4305
    %v4313 = vmul.f32 %v4298, %v4305
    %v4314 = vmul.f32 %v4299, %v4305
    %4315 = vadd.xlane.f32.xlu0 %v4307
    %v4316 = vpop.xlane.xlu0 %4315
    %4317 = vadd.xlane.f32.xlu0 %v4308
    %v4318 = vpop.xlane.xlu0 %4317
    %4319 = vadd.xlane.f32.xlu0 %v4309
    %v4320 = vpop.xlane.xlu0 %4319
    %4321 = vadd.xlane.f32.xlu0 %v4310
    %v4322 = vpop.xlane.xlu0 %4321
    %4323 = vadd.xlane.f32.xlu0 %v4311
    %v4324 = vpop.xlane.xlu0 %4323
    %4325 = vadd.xlane.f32.xlu0 %v4312
    %v4326 = vpop.xlane.xlu0 %4325
    %4327 = vadd.xlane.f32.xlu0 %v4313
    %v4328 = vpop.xlane.xlu0 %4327
    %4329 = vadd.xlane.f32.xlu0 %v4314
    %v4330 = vpop.xlane.xlu0 %4329
    %v4331 = vld [vmem:[#allocation4] sm:$0x1]
    %v4333 = vlaneseq
    %v4334 = vshrl.u32 %v4333, 7
    %v4335 = vsub.s32 0, %v4334
    %v4336 = vrot.slane %v4331, %v4335
    %4337 = vset.pattern.permute.xlu0 0
    %4338 = vperm.xlu0 %4337, %v4336
    %v4339 = vpop.permute.xlu0 %4338
    %v4341 = vadd.f32 %v4316, %v4339
    %v4342 = vadd.f32 %v4318, %v4339
    %v4343 = vadd.f32 %v4320, %v4339
    %v4344 = vadd.f32 %v4322, %v4339
    %v4345 = vadd.f32 %v4324, %v4339
    %v4346 = vadd.f32 %v4326, %v4339
    %v4347 = vadd.f32 %v4328, %v4339
    %v4348 = vadd.f32 %v4330, %v4339
    %v4357 = vlaneseq
    %v4358 = vand.u32 %v4357, 127
    %v4359 = vlaneseq
    %v4360 = vshrl.u32 %v4359, 7
    %v4361 = vsub.s32 %v4358, %v4360
    %v4362 = vrot.slane %v4341, %v4361
    %v4363 = vlaneseq
    %v4364 = vshrl.u32 %v4363, 7
    %v4365 = vsub.s32 %v4358, %v4364
    %v4366 = vrot.slane %v4342, %v4365
    %v4367 = vlaneseq
    %v4368 = vshrl.u32 %v4367, 7
    %v4369 = vsub.s32 %v4358, %v4368
    %v4370 = vrot.slane %v4343, %v4369
    %v4371 = vlaneseq
    %v4372 = vshrl.u32 %v4371, 7
    %v4373 = vsub.s32 %v4358, %v4372
    %v4374 = vrot.slane %v4344, %v4373
    %v4375 = vlaneseq
    %v4376 = vshrl.u32 %v4375, 7
    %v4377 = vsub.s32 %v4358, %v4376
    %v4378 = vrot.slane %v4345, %v4377
    %v4379 = vlaneseq
    %v4380 = vshrl.u32 %v4379, 7
    %v4381 = vsub.s32 %v4358, %v4380
    %v4382 = vrot.slane %v4346, %v4381
    %v4383 = vlaneseq
    %v4384 = vshrl.u32 %v4383, 7
    %v4385 = vsub.s32 %v4358, %v4384
    %v4386 = vrot.slane %v4347, %v4385
    %v4387 = vlaneseq
    %v4388 = vshrl.u32 %v4387, 7
    %v4389 = vsub.s32 %v4358, %v4388
    %v4390 = vrot.slane %v4348, %v4389
    %vm4391 = vcmask 1041409
    %v4392 = vsel %vm4391, %v4366, %v4362
    %vm4393 = vcmask 1042434
    %v4394 = vsel %vm4393, %v4370, %v4392
    %vm4395 = vcmask 1043459
    %v4396 = vsel %vm4395, %v4374, %v4394
    %vm4397 = vcmask 1044484
    %v4398 = vsel %vm4397, %v4378, %v4396
    %vm4399 = vcmask 1045509
    %v4400 = vsel %vm4399, %v4382, %v4398
    %vm4401 = vcmask 1046534
    %v4402 = vsel %vm4401, %v4386, %v4400
    %vm4403 = vcmask 1047559
    %v4404 = vsel %vm4403, %v4390, %v4402
    %vm4406 = vcmask 64512
    %4407 = vst.msk [vmem:[#allocation11] sm:$0xff] %vm4406, %v4404
    // Predicated region
    $region50: #{tpu_custom_call.1} parent=1 // pred_check
      _
    $region51: #{tpu_custom_call.1} parent=1 // pred_check_branch
      %4409 = sbr.rel (0) target = $region53
    $region52: #{tpu_custom_call.1} parent=1 // pred_region
      %s4411 = ssub.s32 128, 128
      %4412 = vsyncadd [#allocation7], %s4411
      %s4414 = sshll.u32 [#allocation11], 4
      %s4415 = int_to_ptr.vmem [resolvable:$true] %s4414
      %4417 = dma.vmem_to_hbm [thread:$0]  %s4415, 128, %s9, [#allocation7]
    $region53: #{tpu_custom_call.1} parent=1 // pred_fallthru
      _
    // Predicated region
    $region54: #{tpu_custom_call.1} parent=1 // pred_check
      _
    $region55: #{tpu_custom_call.1} parent=1 // pred_check_branch
      %4419 = sbr.rel (0) target = $region57
    $region56: #{tpu_custom_call.1} parent=1 // pred_region
      %4420 = dma.done [#allocation7], 128
    $region57: #{tpu_custom_call.1} parent=1 // pred_fallthru
      _
    %4421 = vsyncpa [#allocation6], 1
    %4422 = vsyncpa [#allocation9], 1
    %4423 = vsyncpa [#allocation7], 1

</llo_original>
